<compile_context>
chip_gen: v7x
topology: tpu7x:2x2x1
jax: 0.10.0
libtpu: 0.0.40
codegen_flags: <defaults>
</compile_context>

<pallas_src>
import functools

import jax
import jax.numpy as jnp
from jax import lax
from jax.experimental import pallas as pl
from jax.experimental.pallas import tpu as pltpu


_TAPS = tuple((dy, dx) for dy in range(3) for dx in range(3))


# ----------------------------------------------------------------------------
# Fused kernel (one image per grid step)
# ----------------------------------------------------------------------------
def _simple_cnn_kernel(x_ref, w1_ref, b1_ref, w2_ref, b2_ref, w3_ref, b3_ref,
                       o_ref, pad1_ref, cols1_ref, pad2_ref, cols2_ref,
                       *, H, W):
    """Fused SimpleCNN forward for one image.

    x_ref    : (1, H, W, Cin)        NHWC input tile
    w1_ref   : (9*Cin, C1)           conv1 weights, K ordered (dy, dx, ci)
    b1_ref   : (1, C1)
    w2_ref   : (9*C1, C1)            conv2 weights, K ordered (dy, dx, ci)
    b2_ref   : (1, C1)
    w3_ref   : (C1, n_classes)       1x1 conv weights
    b3_ref   : (1, n_classes)
    o_ref    : (1, n_classes, H*W)   lane-dense NCHW(-flat) output
    pad*_ref : (H+2, W+2, C)         zero-padded activation scratch (VMEM)
    cols*_ref: (H, W, 9*C)           im2col patch scratch (VMEM)
    """
    cin = x_ref.shape[-1]
    c1 = b1_ref.shape[-1]

    # ---------------- layer 1: 3x3 conv (pad=1) + ReLU -----------------------
    pad1_ref[...] = jnp.zeros_like(pad1_ref)            # in-kernel zero padding
    pad1_ref[1:H + 1, 1:W + 1, :] = x_ref[0]
    for t, (dy, dx) in enumerate(_TAPS):                # build im2col buffer once
        cols1_ref[:, :, t * cin:(t + 1) * cin] = pad1_ref[dy:dy + H, dx:dx + W, :]
    a1 = jnp.dot(cols1_ref[...].reshape(H * W, 9 * cin), w1_ref[...],
                 preferred_element_type=jnp.float32)    # one matmul, K = 9*Cin
    a1 = jnp.maximum(a1 + b1_ref[0], 0.0)               # (H*W, C1)

    # ---------------- layer 2: 3x3 conv (pad=1) + ReLU -----------------------
    pad2_ref[...] = jnp.zeros_like(pad2_ref)
    pad2_ref[1:H + 1, 1:W + 1, :] = a1.reshape(H, W, c1)
    for t, (dy, dx) in enumerate(_TAPS):
        cols2_ref[:, :, t * c1:(t + 1) * c1] = pad2_ref[dy:dy + H, dx:dx + W, :]
    a2 = jnp.dot(cols2_ref[...].reshape(H * W, 9 * c1), w2_ref[...],
                 preferred_element_type=jnp.float32)    # one matmul, K = 9*C1
    a2 = jnp.maximum(a2 + b2_ref[0], 0.0)               # (H*W, C1)

    # ---------------- layer 3: 1x1 conv, lane-dense NCHW output --------------
    y = jnp.dot(a2, w3_ref[...], preferred_element_type=jnp.float32) + b3_ref[0]
    o_ref[0] = y.T.astype(o_ref.dtype)                  # (n_classes, H*W)


# ----------------------------------------------------------------------------
# Wrapper: single pallas_call over the batch
# ----------------------------------------------------------------------------
def simple_cnn_pallas(x_nhwc, params):
    N, H, W, Cin = x_nhwc.shape
    C1 = params["b1"].shape[0]
    ncls = params["b3"].shape[0]

    # Weight layout glue (tiny): HWIO (3,3,Cin,Cout) -> (9*Cin, Cout),
    # K ordered (dy, dx, ci) to match the im2col buffer built in the kernel.
    w1r = params["w1"].reshape(9 * Cin, C1)
    w2r = params["w2"].reshape(9 * C1, C1)
    b1 = params["b1"].reshape(1, C1)
    b2 = params["b2"].reshape(1, C1)
    w3 = params["w3"]
    b3 = params["b3"].reshape(1, ncls)

    kern = functools.partial(_simple_cnn_kernel, H=H, W=W)
    out_flat = pl.pallas_call(
        kern,
        out_shape=jax.ShapeDtypeStruct((N, ncls, H * W), x_nhwc.dtype),
        grid_spec=pltpu.PrefetchScalarGridSpec(
            num_scalar_prefetch=0,
            grid=(N,),
            in_specs=[
                pl.BlockSpec((1, H, W, Cin), lambda n: (n, 0, 0, 0)),
                pl.BlockSpec((9 * Cin, C1), lambda n: (0, 0)),
                pl.BlockSpec((1, C1), lambda n: (0, 0)),
                pl.BlockSpec((9 * C1, C1), lambda n: (0, 0)),
                pl.BlockSpec((1, C1), lambda n: (0, 0)),
                pl.BlockSpec((C1, ncls), lambda n: (0, 0)),
                pl.BlockSpec((1, ncls), lambda n: (0, 0)),
            ],
            out_specs=pl.BlockSpec((1, ncls, H * W), lambda n: (n, 0, 0)),
            scratch_shapes=[
                pltpu.VMEM((H + 2, W + 2, Cin), jnp.float32),   # pad1
                pltpu.VMEM((H, W, 9 * Cin), jnp.float32),       # cols1
                pltpu.VMEM((H + 2, W + 2, C1), jnp.float32),    # pad2
                pltpu.VMEM((H, W, 9 * C1), jnp.float32),        # cols2
            ],
        ),
        compiler_params=pltpu.CompilerParams(
            dimension_semantics=("parallel",)),
    )(x_nhwc, w1r, b1, w2r, b2, w3, b3)
    # Free: split the lane-dense H*W axis back into (H, W); already NCHW.
    return out_flat.reshape(N, ncls, H, W)


# ----------------------------------------------------------------------------
# SimpleCNN params + forward
# ----------------------------------------------------------------------------
def init_params(key, n_classes, in_channels, base_channels):
    """Weights stored HWIO (kH, kW, Cin, Cout) == PyTorch (Cout, Cin, kH, kW)
    transposed. Deterministic normal init."""
    k1, k2, k3, k4, k5, k6 = jax.random.split(key, 6)
    s = 0.1
    return {
        "w1": jax.random.normal(k1, (3, 3, in_channels, base_channels), jnp.float32) * s,
        "b1": jax.random.normal(k2, (base_channels,), jnp.float32) * s,
        "w2": jax.random.normal(k3, (3, 3, base_channels, base_channels), jnp.float32) * s,
        "b2": jax.random.normal(k4, (base_channels,), jnp.float32) * s,
        "w3": jax.random.normal(k5, (base_channels, n_classes), jnp.float32) * s,  # 1x1 conv
        "b3": jax.random.normal(k6, (n_classes,), jnp.float32) * s,
    }


@jax.jit
def simple_cnn_forward(params, x_nchw):
    # NCHW (PyTorch) -> NHWC at the input boundary only; the kernel emits
    # NCHW(-flat) directly, so there is no output transpose.
    x = jnp.transpose(x_nchw, (0, 2, 3, 1))
    return simple_cnn_pallas(x, params)


def _reference_forward(params, x_nchw):
    """Pure-JAX reference (lax conv) for a correctness check."""
    x = jnp.transpose(x_nchw, (0, 2, 3, 1))
    dn = lax.conv_dimension_numbers(x.shape, params["w1"].shape,
                                    ("NHWC", "HWIO", "NHWC"))
    x = lax.conv_general_dilated(x, params["w1"], (1, 1), "SAME",
                                 dimension_numbers=dn) + params["b1"]
    x = jnp.maximum(x, 0.0)
    x = lax.conv_general_dilated(x, params["w2"], (1, 1), "SAME",
                                 dimension_numbers=dn) + params["b2"]
    x = jnp.maximum(x, 0.0)
    x = jnp.einsum("nhwc,cd->nhwd", x, params["w3"]) + params["b3"]
    return jnp.transpose(x, (0, 3, 1, 2))


if __name__ == "__main__":
    N, C_IN, H, W = 2, 3, 16, 16
    N_CLASSES, BASE = 4, 32

    key = jax.random.PRNGKey(0)
    k_x, k_p = jax.random.split(key)
    x = jax.random.normal(k_x, (N, C_IN, H, W), jnp.float32)
    params = init_params(k_p, N_CLASSES, C_IN, BASE)

    out = simple_cnn_forward(params, x)
    out = jax.block_until_ready(out)

    assert out.shape == (N, N_CLASSES, H, W), out.shape

    ref = _reference_forward(params, x)
    assert jnp.allclose(out, ref, atol=1e-4, rtol=1e-4), (
        float(jnp.max(jnp.abs(out - ref))))

    print("KERNEL_OK")
</pallas_src>

<mosaic_0001>
module attributes {stable_mosaic.version = 11 : i64} {
  func.func @_simple_cnn_kernel(%arg0: i32, %arg1: memref<1x16x16x3xf32, #tpu.memory_space<vmem>>, %arg2: memref<27x32xf32, #tpu.memory_space<vmem>>, %arg3: memref<1x32xf32, #tpu.memory_space<vmem>>, %arg4: memref<288x32xf32, #tpu.memory_space<vmem>>, %arg5: memref<1x32xf32, #tpu.memory_space<vmem>>, %arg6: memref<32x4xf32, #tpu.memory_space<vmem>>, %arg7: memref<1x4xf32, #tpu.memory_space<vmem>>, %arg8: memref<1x4x256xf32, #tpu.memory_space<vmem>>, %arg9: memref<18x18x3xf32, #tpu.memory_space<vmem>>, %arg10: memref<16x16x27xf32, #tpu.memory_space<vmem>>, %arg11: memref<18x18x32xf32, #tpu.memory_space<vmem>>, %arg12: memref<16x16x288xf32, #tpu.memory_space<vmem>>) attributes {dimension_semantics = [#tpu.dimension_semantics<parallel>], iteration_bounds = array<i64: 2>, scalar_prefetch = 0 : i64, scratch_operands = 4 : i64, tpu.core_type = #tpu.core_type<tc>, window_params = [{transform_indices = @transform_0, window_bounds = array<i64: 1, 16, 16, 3>}, {pipeline_mode = #tpu.pipeline_mode<synchronous>, transform_indices = @transform_1, window_bounds = array<i64: 27, 32>}, {pipeline_mode = #tpu.pipeline_mode<synchronous>, transform_indices = @transform_2, window_bounds = array<i64: 1, 32>}, {pipeline_mode = #tpu.pipeline_mode<synchronous>, transform_indices = @transform_3, window_bounds = array<i64: 288, 32>}, {pipeline_mode = #tpu.pipeline_mode<synchronous>, transform_indices = @transform_4, window_bounds = array<i64: 1, 32>}, {pipeline_mode = #tpu.pipeline_mode<synchronous>, transform_indices = @transform_5, window_bounds = array<i64: 32, 4>}, {pipeline_mode = #tpu.pipeline_mode<synchronous>, transform_indices = @transform_6, window_bounds = array<i64: 1, 4>}, {transform_indices = @transform_7, window_bounds = array<i64: 1, 4, 256>}]} {
    %cst = arith.constant 0.000000e+00 : f32
    %0 = vector.broadcast %cst : f32 to vector<18x18x3xf32>
    %c0 = arith.constant 0 : index
    %c0_0 = arith.constant 0 : index
    %c0_1 = arith.constant 0 : index
    %1 = vector.load %arg9[%c0, %c0_0, %c0_1] : memref<18x18x3xf32, #tpu.memory_space<vmem>>, vector<18x18x3xf32>
    tpu.vector_store %arg9[%c0, %c0_0, %c0_1], %0 {strides = array<i32>} : memref<18x18x3xf32, #tpu.memory_space<vmem>>, vector<18x18x3xf32>,
    %c0_2 = arith.constant 0 : index
    %c0_3 = arith.constant 0 : index
    %c0_4 = arith.constant 0 : index
    %c0_5 = arith.constant 0 : index
    %2 = vector.load %arg1[%c0_2, %c0_3, %c0_4, %c0_5] : memref<1x16x16x3xf32, #tpu.memory_space<vmem>>, vector<1x16x16x3xf32>
    %3 = vector.shape_cast %2 : vector<1x16x16x3xf32> to vector<16x16x3xf32>
    %c1 = arith.constant 1 : index
    %c1_6 = arith.constant 1 : index
    %c0_7 = arith.constant 0 : index
    %4 = vector.load %arg9[%c1, %c1_6, %c0_7] : memref<18x18x3xf32, #tpu.memory_space<vmem>>, vector<16x16x3xf32>
    tpu.vector_store %arg9[%c1, %c1_6, %c0_7], %3 {strides = array<i32>} : memref<18x18x3xf32, #tpu.memory_space<vmem>>, vector<16x16x3xf32>,
    %c0_8 = arith.constant 0 : index
    %c0_9 = arith.constant 0 : index
    %c0_10 = arith.constant 0 : index
    %5 = vector.load %arg9[%c0_8, %c0_9, %c0_10] : memref<18x18x3xf32, #tpu.memory_space<vmem>>, vector<16x16x3xf32>
    %c0_11 = arith.constant 0 : index
    %c0_12 = arith.constant 0 : index
    %c0_13 = arith.constant 0 : index
    %6 = vector.load %arg10[%c0_11, %c0_12, %c0_13] : memref<16x16x27xf32, #tpu.memory_space<vmem>>, vector<16x16x3xf32>
    tpu.vector_store %arg10[%c0_11, %c0_12, %c0_13], %5 {strides = array<i32>} : memref<16x16x27xf32, #tpu.memory_space<vmem>>, vector<16x16x3xf32>,
    %c0_14 = arith.constant 0 : index
    %c1_15 = arith.constant 1 : index
    %c0_16 = arith.constant 0 : index
    %7 = vector.load %arg9[%c0_14, %c1_15, %c0_16] : memref<18x18x3xf32, #tpu.memory_space<vmem>>, vector<16x16x3xf32>
    %c0_17 = arith.constant 0 : index
    %c0_18 = arith.constant 0 : index
    %c3 = arith.constant 3 : index
    %8 = vector.load %arg10[%c0_17, %c0_18, %c3] : memref<16x16x27xf32, #tpu.memory_space<vmem>>, vector<16x16x3xf32>
    tpu.vector_store %arg10[%c0_17, %c0_18, %c3], %7 {strides = array<i32>} : memref<16x16x27xf32, #tpu.memory_space<vmem>>, vector<16x16x3xf32>,
    %c0_19 = arith.constant 0 : index
    %c2 = arith.constant 2 : index
    %c0_20 = arith.constant 0 : index
    %9 = vector.load %arg9[%c0_19, %c2, %c0_20] : memref<18x18x3xf32, #tpu.memory_space<vmem>>, vector<16x16x3xf32>
    %c0_21 = arith.constant 0 : index
    %c0_22 = arith.constant 0 : index
    %c6 = arith.constant 6 : index
    %10 = vector.load %arg10[%c0_21, %c0_22, %c6] : memref<16x16x27xf32, #tpu.memory_space<vmem>>, vector<16x16x3xf32>
    tpu.vector_store %arg10[%c0_21, %c0_22, %c6], %9 {strides = array<i32>} : memref<16x16x27xf32, #tpu.memory_space<vmem>>, vector<16x16x3xf32>,
    %c1_23 = arith.constant 1 : index
    %c0_24 = arith.constant 0 : index
    %c0_25 = arith.constant 0 : index
    %11 = vector.load %arg9[%c1_23, %c0_24, %c0_25] : memref<18x18x3xf32, #tpu.memory_space<vmem>>, vector<16x16x3xf32>
    %c0_26 = arith.constant 0 : index
    %c0_27 = arith.constant 0 : index
    %c9 = arith.constant 9 : index
    %12 = vector.load %arg10[%c0_26, %c0_27, %c9] : memref<16x16x27xf32, #tpu.memory_space<vmem>>, vector<16x16x3xf32>
    tpu.vector_store %arg10[%c0_26, %c0_27, %c9], %11 {strides = array<i32>} : memref<16x16x27xf32, #tpu.memory_space<vmem>>, vector<16x16x3xf32>,
    %c1_28 = arith.constant 1 : index
    %c1_29 = arith.constant 1 : index
    %c0_30 = arith.constant 0 : index
    %13 = vector.load %arg9[%c1_28, %c1_29, %c0_30] : memref<18x18x3xf32, #tpu.memory_space<vmem>>, vector<16x16x3xf32>
    %c0_31 = arith.constant 0 : index
    %c0_32 = arith.constant 0 : index
    %c12 = arith.constant 12 : index
    %14 = vector.load %arg10[%c0_31, %c0_32, %c12] : memref<16x16x27xf32, #tpu.memory_space<vmem>>, vector<16x16x3xf32>
    tpu.vector_store %arg10[%c0_31, %c0_32, %c12], %13 {strides = array<i32>} : memref<16x16x27xf32, #tpu.memory_space<vmem>>, vector<16x16x3xf32>,
    %c1_33 = arith.constant 1 : index
    %c2_34 = arith.constant 2 : index
    %c0_35 = arith.constant 0 : index
    %15 = vector.load %arg9[%c1_33, %c2_34, %c0_35] : memref<18x18x3xf32, #tpu.memory_space<vmem>>, vector<16x16x3xf32>
    %c0_36 = arith.constant 0 : index
    %c0_37 = arith.constant 0 : index
    %c15 = arith.constant 15 : index
    %16 = vector.load %arg10[%c0_36, %c0_37, %c15] : memref<16x16x27xf32, #tpu.memory_space<vmem>>, vector<16x16x3xf32>
    tpu.vector_store %arg10[%c0_36, %c0_37, %c15], %15 {strides = array<i32>} : memref<16x16x27xf32, #tpu.memory_space<vmem>>, vector<16x16x3xf32>,
    %c2_38 = arith.constant 2 : index
    %c0_39 = arith.constant 0 : index
    %c0_40 = arith.constant 0 : index
    %17 = vector.load %arg9[%c2_38, %c0_39, %c0_40] : memref<18x18x3xf32, #tpu.memory_space<vmem>>, vector<16x16x3xf32>
    %c0_41 = arith.constant 0 : index
    %c0_42 = arith.constant 0 : index
    %c18 = arith.constant 18 : index
    %18 = vector.load %arg10[%c0_41, %c0_42, %c18] : memref<16x16x27xf32, #tpu.memory_space<vmem>>, vector<16x16x3xf32>
    tpu.vector_store %arg10[%c0_41, %c0_42, %c18], %17 {strides = array<i32>} : memref<16x16x27xf32, #tpu.memory_space<vmem>>, vector<16x16x3xf32>,
    %c2_43 = arith.constant 2 : index
    %c1_44 = arith.constant 1 : index
    %c0_45 = arith.constant 0 : index
    %19 = vector.load %arg9[%c2_43, %c1_44, %c0_45] : memref<18x18x3xf32, #tpu.memory_space<vmem>>, vector<16x16x3xf32>
    %c0_46 = arith.constant 0 : index
    %c0_47 = arith.constant 0 : index
    %c21 = arith.constant 21 : index
    %20 = vector.load %arg10[%c0_46, %c0_47, %c21] : memref<16x16x27xf32, #tpu.memory_space<vmem>>, vector<16x16x3xf32>
    tpu.vector_store %arg10[%c0_46, %c0_47, %c21], %19 {strides = array<i32>} : memref<16x16x27xf32, #tpu.memory_space<vmem>>, vector<16x16x3xf32>,
    %c2_48 = arith.constant 2 : index
    %c2_49 = arith.constant 2 : index
    %c0_50 = arith.constant 0 : index
    %21 = vector.load %arg9[%c2_48, %c2_49, %c0_50] : memref<18x18x3xf32, #tpu.memory_space<vmem>>, vector<16x16x3xf32>
    %c0_51 = arith.constant 0 : index
    %c0_52 = arith.constant 0 : index
    %c24 = arith.constant 24 : index
    %22 = vector.load %arg10[%c0_51, %c0_52, %c24] : memref<16x16x27xf32, #tpu.memory_space<vmem>>, vector<16x16x3xf32>
    tpu.vector_store %arg10[%c0_51, %c0_52, %c24], %21 {strides = array<i32>} : memref<16x16x27xf32, #tpu.memory_space<vmem>>, vector<16x16x3xf32>,
    %c0_53 = arith.constant 0 : index
    %c0_54 = arith.constant 0 : index
    %c0_55 = arith.constant 0 : index
    %23 = vector.load %arg10[%c0_53, %c0_54, %c0_55] : memref<16x16x27xf32, #tpu.memory_space<vmem>>, vector<16x16x27xf32>
    %24 = vector.shape_cast %23 : vector<16x16x27xf32> to vector<256x27xf32>
    %c0_56 = arith.constant 0 : index
    %c0_57 = arith.constant 0 : index
    %25 = vector.load %arg2[%c0_56, %c0_57] : memref<27x32xf32, #tpu.memory_space<vmem>>, vector<27x32xf32>
    %cst_58 = arith.constant dense<0.000000e+00> : vector<256x32xf32>
    %26 = tpu.matmul %24, %25, %cst_58 {dimension_numbers = #tpu.dot_dimension_numbers<[1], [0], [0], [1], [0, 0, 1, 1], [], []>} : vector<256x27xf32>, vector<27x32xf32>, vector<256x32xf32> -> vector<256x32xf32>
    %c0_59 = arith.constant 0 : index
    %c0_60 = arith.constant 0 : index
    %27 = vector.load %arg3[%c0_59, %c0_60] : memref<1x32xf32, #tpu.memory_space<vmem>>, vector<1x32xf32>
    %28 = vector.shape_cast %27 : vector<1x32xf32> to vector<32xf32>
    %29 = vector.shape_cast %28 : vector<32xf32> to vector<1x32xf32>
    %30 = vector.broadcast %29 : vector<1x32xf32> to vector<256x32xf32>
    %31 = arith.addf %26, %30 : vector<256x32xf32>
    %cst_61 = arith.constant 0.000000e+00 : f32
    %32 = vector.broadcast %cst_61 : f32 to vector<256x32xf32>
    %33 = arith.maximumf %31, %32 : vector<256x32xf32>
    %cst_62 = arith.constant 0.000000e+00 : f32
    %34 = vector.broadcast %cst_62 : f32 to vector<18x18x32xf32>
    %c0_63 = arith.constant 0 : index
    %c0_64 = arith.constant 0 : index
    %c0_65 = arith.constant 0 : index
    %35 = vector.load %arg11[%c0_63, %c0_64, %c0_65] : memref<18x18x32xf32, #tpu.memory_space<vmem>>, vector<18x18x32xf32>
    tpu.vector_store %arg11[%c0_63, %c0_64, %c0_65], %34 {strides = array<i32>} : memref<18x18x32xf32, #tpu.memory_space<vmem>>, vector<18x18x32xf32>,
    %36 = vector.shape_cast %33 : vector<256x32xf32> to vector<16x16x32xf32>
    %c1_66 = arith.constant 1 : index
    %c1_67 = arith.constant 1 : index
    %c0_68 = arith.constant 0 : index
    %37 = vector.load %arg11[%c1_66, %c1_67, %c0_68] : memref<18x18x32xf32, #tpu.memory_space<vmem>>, vector<16x16x32xf32>
    tpu.vector_store %arg11[%c1_66, %c1_67, %c0_68], %36 {strides = array<i32>} : memref<18x18x32xf32, #tpu.memory_space<vmem>>, vector<16x16x32xf32>,
    %c0_69 = arith.constant 0 : index
    %c0_70 = arith.constant 0 : index
    %c0_71 = arith.constant 0 : index
    %38 = vector.load %arg11[%c0_69, %c0_70, %c0_71] : memref<18x18x32xf32, #tpu.memory_space<vmem>>, vector<16x16x32xf32>
    %c0_72 = arith.constant 0 : index
    %c0_73 = arith.constant 0 : index
    %c0_74 = arith.constant 0 : index
    %39 = vector.load %arg12[%c0_72, %c0_73, %c0_74] : memref<16x16x288xf32, #tpu.memory_space<vmem>>, vector<16x16x32xf32>
    tpu.vector_store %arg12[%c0_72, %c0_73, %c0_74], %38 {strides = array<i32>} : memref<16x16x288xf32, #tpu.memory_space<vmem>>, vector<16x16x32xf32>,
    %c0_75 = arith.constant 0 : index
    %c1_76 = arith.constant 1 : index
    %c0_77 = arith.constant 0 : index
    %40 = vector.load %arg11[%c0_75, %c1_76, %c0_77] : memref<18x18x32xf32, #tpu.memory_space<vmem>>, vector<16x16x32xf32>
    %c0_78 = arith.constant 0 : index
    %c0_79 = arith.constant 0 : index
    %c32 = arith.constant 32 : index
    %41 = vector.load %arg12[%c0_78, %c0_79, %c32] : memref<16x16x288xf32, #tpu.memory_space<vmem>>, vector<16x16x32xf32>
    tpu.vector_store %arg12[%c0_78, %c0_79, %c32], %40 {strides = array<i32>} : memref<16x16x288xf32, #tpu.memory_space<vmem>>, vector<16x16x32xf32>,
    %c0_80 = arith.constant 0 : index
    %c2_81 = arith.constant 2 : index
    %c0_82 = arith.constant 0 : index
    %42 = vector.load %arg11[%c0_80, %c2_81, %c0_82] : memref<18x18x32xf32, #tpu.memory_space<vmem>>, vector<16x16x32xf32>
    %c0_83 = arith.constant 0 : index
    %c0_84 = arith.constant 0 : index
    %c64 = arith.constant 64 : index
    %43 = vector.load %arg12[%c0_83, %c0_84, %c64] : memref<16x16x288xf32, #tpu.memory_space<vmem>>, vector<16x16x32xf32>
    tpu.vector_store %arg12[%c0_83, %c0_84, %c64], %42 {strides = array<i32>} : memref<16x16x288xf32, #tpu.memory_space<vmem>>, vector<16x16x32xf32>,
    %c1_85 = arith.constant 1 : index
    %c0_86 = arith.constant 0 : index
    %c0_87 = arith.constant 0 : index
    %44 = vector.load %arg11[%c1_85, %c0_86, %c0_87] : memref<18x18x32xf32, #tpu.memory_space<vmem>>, vector<16x16x32xf32>
    %c0_88 = arith.constant 0 : index
    %c0_89 = arith.constant 0 : index
    %c96 = arith.constant 96 : index
    %45 = vector.load %arg12[%c0_88, %c0_89, %c96] : memref<16x16x288xf32, #tpu.memory_space<vmem>>, vector<16x16x32xf32>
    tpu.vector_store %arg12[%c0_88, %c0_89, %c96], %44 {strides = array<i32>} : memref<16x16x288xf32, #tpu.memory_space<vmem>>, vector<16x16x32xf32>,
    %c1_90 = arith.constant 1 : index
    %c1_91 = arith.constant 1 : index
    %c0_92 = arith.constant 0 : index
    %46 = vector.load %arg11[%c1_90, %c1_91, %c0_92] : memref<18x18x32xf32, #tpu.memory_space<vmem>>, vector<16x16x32xf32>
    %c0_93 = arith.constant 0 : index
    %c0_94 = arith.constant 0 : index
    %c128 = arith.constant 128 : index
    %47 = vector.load %arg12[%c0_93, %c0_94, %c128] : memref<16x16x288xf32, #tpu.memory_space<vmem>>, vector<16x16x32xf32>
    tpu.vector_store %arg12[%c0_93, %c0_94, %c128], %46 {strides = array<i32>} : memref<16x16x288xf32, #tpu.memory_space<vmem>>, vector<16x16x32xf32>,
    %c1_95 = arith.constant 1 : index
    %c2_96 = arith.constant 2 : index
    %c0_97 = arith.constant 0 : index
    %48 = vector.load %arg11[%c1_95, %c2_96, %c0_97] : memref<18x18x32xf32, #tpu.memory_space<vmem>>, vector<16x16x32xf32>
    %c0_98 = arith.constant 0 : index
    %c0_99 = arith.constant 0 : index
    %c160 = arith.constant 160 : index
    %49 = vector.load %arg12[%c0_98, %c0_99, %c160] : memref<16x16x288xf32, #tpu.memory_space<vmem>>, vector<16x16x32xf32>
    tpu.vector_store %arg12[%c0_98, %c0_99, %c160], %48 {strides = array<i32>} : memref<16x16x288xf32, #tpu.memory_space<vmem>>, vector<16x16x32xf32>,
    %c2_100 = arith.constant 2 : index
    %c0_101 = arith.constant 0 : index
    %c0_102 = arith.constant 0 : index
    %50 = vector.load %arg11[%c2_100, %c0_101, %c0_102] : memref<18x18x32xf32, #tpu.memory_space<vmem>>, vector<16x16x32xf32>
    %c0_103 = arith.constant 0 : index
    %c0_104 = arith.constant 0 : index
    %c192 = arith.constant 192 : index
    %51 = vector.load %arg12[%c0_103, %c0_104, %c192] : memref<16x16x288xf32, #tpu.memory_space<vmem>>, vector<16x16x32xf32>
    tpu.vector_store %arg12[%c0_103, %c0_104, %c192], %50 {strides = array<i32>} : memref<16x16x288xf32, #tpu.memory_space<vmem>>, vector<16x16x32xf32>,
    %c2_105 = arith.constant 2 : index
    %c1_106 = arith.constant 1 : index
    %c0_107 = arith.constant 0 : index
    %52 = vector.load %arg11[%c2_105, %c1_106, %c0_107] : memref<18x18x32xf32, #tpu.memory_space<vmem>>, vector<16x16x32xf32>
    %c0_108 = arith.constant 0 : index
    %c0_109 = arith.constant 0 : index
    %c224 = arith.constant 224 : index
    %53 = vector.load %arg12[%c0_108, %c0_109, %c224] : memref<16x16x288xf32, #tpu.memory_space<vmem>>, vector<16x16x32xf32>
    tpu.vector_store %arg12[%c0_108, %c0_109, %c224], %52 {strides = array<i32>} : memref<16x16x288xf32, #tpu.memory_space<vmem>>, vector<16x16x32xf32>,
    %c2_110 = arith.constant 2 : index
    %c2_111 = arith.constant 2 : index
    %c0_112 = arith.constant 0 : index
    %54 = vector.load %arg11[%c2_110, %c2_111, %c0_112] : memref<18x18x32xf32, #tpu.memory_space<vmem>>, vector<16x16x32xf32>
    %c0_113 = arith.constant 0 : index
    %c0_114 = arith.constant 0 : index
    %c256 = arith.constant 256 : index
    %55 = vector.load %arg12[%c0_113, %c0_114, %c256] : memref<16x16x288xf32, #tpu.memory_space<vmem>>, vector<16x16x32xf32>
    tpu.vector_store %arg12[%c0_113, %c0_114, %c256], %54 {strides = array<i32>} : memref<16x16x288xf32, #tpu.memory_space<vmem>>, vector<16x16x32xf32>,
    %c0_115 = arith.constant 0 : index
    %c0_116 = arith.constant 0 : index
    %c0_117 = arith.constant 0 : index
    %56 = vector.load %arg12[%c0_115, %c0_116, %c0_117] : memref<16x16x288xf32, #tpu.memory_space<vmem>>, vector<16x16x288xf32>
    %57 = vector.shape_cast %56 : vector<16x16x288xf32> to vector<256x288xf32>
    %c0_118 = arith.constant 0 : index
    %c0_119 = arith.constant 0 : index
    %58 = vector.load %arg4[%c0_118, %c0_119] : memref<288x32xf32, #tpu.memory_space<vmem>>, vector<288x32xf32>
    %cst_120 = arith.constant dense<0.000000e+00> : vector<256x32xf32>
    %59 = tpu.matmul %57, %58, %cst_120 {dimension_numbers = #tpu.dot_dimension_numbers<[1], [0], [0], [1], [0, 0, 1, 1], [], []>} : vector<256x288xf32>, vector<288x32xf32>, vector<256x32xf32> -> vector<256x32xf32>
    %c0_121 = arith.constant 0 : index
    %c0_122 = arith.constant 0 : index
    %60 = vector.load %arg5[%c0_121, %c0_122] : memref<1x32xf32, #tpu.memory_space<vmem>>, vector<1x32xf32>
    %61 = vector.shape_cast %60 : vector<1x32xf32> to vector<32xf32>
    %62 = vector.shape_cast %61 : vector<32xf32> to vector<1x32xf32>
    %63 = vector.broadcast %62 : vector<1x32xf32> to vector<256x32xf32>
    %64 = arith.addf %59, %63 : vector<256x32xf32>
    %cst_123 = arith.constant 0.000000e+00 : f32
    %65 = vector.broadcast %cst_123 : f32 to vector<256x32xf32>
    %66 = arith.maximumf %64, %65 : vector<256x32xf32>
    %c0_124 = arith.constant 0 : index
    %c0_125 = arith.constant 0 : index
    %67 = vector.load %arg6[%c0_124, %c0_125] : memref<32x4xf32, #tpu.memory_space<vmem>>, vector<32x4xf32>
    %cst_126 = arith.constant dense<0.000000e+00> : vector<256x4xf32>
    %68 = tpu.matmul %66, %67, %cst_126 {dimension_numbers = #tpu.dot_dimension_numbers<[1], [0], [0], [1], [0, 0, 1, 1], [], []>} : vector<256x32xf32>, vector<32x4xf32>, vector<256x4xf32> -> vector<256x4xf32>
    %c0_127 = arith.constant 0 : index
    %c0_128 = arith.constant 0 : index
    %69 = vector.load %arg7[%c0_127, %c0_128] : memref<1x4xf32, #tpu.memory_space<vmem>>, vector<1x4xf32>
    %70 = vector.shape_cast %69 : vector<1x4xf32> to vector<4xf32>
    %71 = vector.shape_cast %70 : vector<4xf32> to vector<1x4xf32>
    %72 = vector.broadcast %71 : vector<1x4xf32> to vector<256x4xf32>
    %73 = arith.addf %68, %72 : vector<256x4xf32>
    %74 = tpu.transpose %73, [1, 0] : vector<256x4xf32> -> vector<4x256xf32>
    %c0_129 = arith.constant 0 : index
    %c0_130 = arith.constant 0 : index
    %c0_131 = arith.constant 0 : index
    %75 = vector.load %arg8[%c0_129, %c0_130, %c0_131] : memref<1x4x256xf32, #tpu.memory_space<vmem>>, vector<1x4x256xf32>
    %76 = vector.shape_cast %75 : vector<1x4x256xf32> to vector<4x256xf32>
    %77 = vector.shape_cast %74 : vector<4x256xf32> to vector<1x4x256xf32>
    tpu.vector_store %arg8[%c0_129, %c0_130, %c0_131], %77 {strides = array<i32>} : memref<1x4x256xf32, #tpu.memory_space<vmem>>, vector<1x4x256xf32>,
    return
  }
  func.func @transform_0(%arg0: i32) -> (i32, i32, i32, i32) {
    %c0_i32 = arith.constant 0 : i32
    %c0_i32_0 = arith.constant 0 : i32
    %c0_i32_1 = arith.constant 0 : i32
    %c0_i32_2 = arith.constant 0 : i32
    return %arg0, %c0_i32, %c0_i32_0, %c0_i32_1 : i32, i32, i32, i32
  }
  func.func @transform_1(%arg0: i32) -> (i32, i32) {
    %c0_i32 = arith.constant 0 : i32
    %c0_i32_0 = arith.constant 0 : i32
    %c0_i32_1 = arith.constant 0 : i32
    return %c0_i32, %c0_i32_0 : i32, i32
  }
  func.func @transform_2(%arg0: i32) -> (i32, i32) {
    %c0_i32 = arith.constant 0 : i32
    %c0_i32_0 = arith.constant 0 : i32
    %c0_i32_1 = arith.constant 0 : i32
    return %c0_i32, %c0_i32_0 : i32, i32
  }
  func.func @transform_3(%arg0: i32) -> (i32, i32) {
    %c0_i32 = arith.constant 0 : i32
    %c0_i32_0 = arith.constant 0 : i32
    %c0_i32_1 = arith.constant 0 : i32
    return %c0_i32, %c0_i32_0 : i32, i32
  }
  func.func @transform_4(%arg0: i32) -> (i32, i32) {
    %c0_i32 = arith.constant 0 : i32
    %c0_i32_0 = arith.constant 0 : i32
    %c0_i32_1 = arith.constant 0 : i32
    return %c0_i32, %c0_i32_0 : i32, i32
  }
  func.func @transform_5(%arg0: i32) -> (i32, i32) {
    %c0_i32 = arith.constant 0 : i32
    %c0_i32_0 = arith.constant 0 : i32
    %c0_i32_1 = arith.constant 0 : i32
    return %c0_i32, %c0_i32_0 : i32, i32
  }
  func.func @transform_6(%arg0: i32) -> (i32, i32) {
    %c0_i32 = arith.constant 0 : i32
    %c0_i32_0 = arith.constant 0 : i32
    %c0_i32_1 = arith.constant 0 : i32
    return %c0_i32, %c0_i32_0 : i32, i32
  }
  func.func @transform_7(%arg0: i32) -> (i32, i32, i32) {
    %c0_i32 = arith.constant 0 : i32
    %c0_i32_0 = arith.constant 0 : i32
    %c0_i32_1 = arith.constant 0 : i32
    return %arg0, %c0_i32, %c0_i32_0 : i32, i32, i32
  }
}

</mosaic_0001>

<llo_original>
// kernel: simple_cnn_forward.1
$region0: #{simple_cnn_forward.1}
  #allocation0 [shape = 'u32[]', space=smem, size = 0x4, offset = 0x4, fixed_abs, tag = 'smem constant byte address 0x4 - core index']
  #allocation1 [shape = 'u32[144,128]{1,0:T(1,128)}', space=vmem, size = 0x12000, scoped, tag = 'internal scratch']
  #allocation2 [shape = 'f32[18,18,3]{2,1,0:T(8,128)}', space=vmem, size = 0x36000, scoped, tag = 'scratch operand']
  #allocation3 [shape = 'f32[16,16,27]{2,1,0:T(8,128)}', space=vmem, size = 0x20000, scoped, tag = 'scratch operand']
  #allocation4 [shape = 'f32[18,18,32]{2,1,0:T(8,128)}', space=vmem, size = 0x36000, scoped, tag = 'scratch operand']
  #allocation5 [shape = 'f32[16,16,288]{2,1,0:T(8,128)}', space=vmem, size = 0x60000, scoped, tag = 'scratch operand']
  %s0 = inlined_call_operand.vmem [shape: f32[2,16,16,3], index: 0, kind: input, shape index: {}]
  %s1 = inlined_call_operand.vmem [shape: f32[27,32], index: 1, kind: input, shape index: {}]
  %s2 = inlined_call_operand.vmem [shape: f32[1,32], index: 2, kind: input, shape index: {}]
  %s3 = inlined_call_operand.vmem [shape: f32[288,32], index: 3, kind: input, shape index: {}]
  %s4 = inlined_call_operand.vmem [shape: f32[1,32], index: 4, kind: input, shape index: {}]
  %s5 = inlined_call_operand.vmem [shape: f32[32,4], index: 5, kind: input, shape index: {}]
  %s6 = inlined_call_operand.vmem [shape: f32[1,4], index: 6, kind: input, shape index: {}]
  %s7 = inlined_call_operand.vmem [shape: f32[2,4,256], index: 7, kind: output, shape index: {}]
  %s8 = sld [smem:[#allocation0]]
  $region61: #{simple_cnn_forward.1} parent=0
    _
  %s10 = ssub.s32 1, %s8
  %s11 = scalar_select 0, %s10, %s8
  loop: start=0, step=1, limit=4
  $region2: #{simple_cnn_forward.1} parent=0 // loop_pre_header
    _
  $region3: #{simple_cnn_forward.1} parent=0 // loop_header
    %s13 = sphi 0, %s17
    %p14 = scmp.ge.s32.totalorder %s13, 4
    %s23 = sphi 0, %s25
    %s26 = sphi 0, %s23
    %s27 = sphi 0, %s26
    %s43 = sphi 0, %s27
    %s47 = sphi 0, %s47
    %s49 = sphi 0, %s47
    %s50 = sphi 0, %s49
    %s64 = sphi 0, %s50
    %s68 = sphi 0, %s68
    %s70 = sphi 0, %s68
    %s71 = sphi 0, %s70
    %s85 = sphi 0, %s71
    %s89 = sphi 0, %s89
    %s91 = sphi 0, %s89
    %s92 = sphi 0, %s91
    %s106 = sphi 0, %s92
    %s110 = sphi 0, %s110
    %s112 = sphi 0, %s110
    %s113 = sphi 0, %s112
    %s127 = sphi 0, %s113
    %s131 = sphi 0, %s131
    %s133 = sphi 0, %s131
    %s134 = sphi 0, %s133
    %s148 = sphi 0, %s134
    %s152 = sphi 0, %s152
    %s154 = sphi 0, %s152
    %s155 = sphi 0, %s154
    %s169 = sphi 0, %s155
    %s175 = sphi 0, %s177
    %s178 = sphi 0, %s175
    %s179 = sphi 0, %s178
    %s195 = sphi 0, %s179
  $region4: #{simple_cnn_forward.1} parent=0 // loop_header_branch
    %16 = sbr.rel (%p14) target = $region8
  $region5: #{simple_cnn_forward.1} parent=0 // loop_body
    %s18 = ssub.s32 %s13, 1
    %s19 = ssub.s32 %s13, 2
    %s20 = sadd.s32 %s13, 1
    %s21 = ssub.s32 %s13, %s20
    %p22 = scmp.eq.s32.totalorder %s21, 0
    %s24 = sadd.s32 %s23, 1
    %s25 = scalar_select %p22, %s23, %s24
    %p28 = pneg %p22
    %p29 = scmp.eq.s32.totalorder %s13, 1
    %p30 = por %p28, %p29
    %p31 = scmp.ne.s32.totalorder %s23, %s26
    %p32 = scmp.eq.s32.totalorder %s13, 0
    %p33 = por %p31, %p32
    %p34 = scmp.ne.s32.totalorder %s23, %s26
    %p35 = scmp.eq.s32.totalorder %s18, 1
    %p36 = por %p34, %p35
    %p37 = scmp.ne.s32.totalorder %s26, %s27
    %p38 = scmp.eq.s32.totalorder %s18, 0
    %p39 = por %p37, %p38
    %p40 = scmp.ne.s32.totalorder %s26, %s27
    %p41 = scmp.eq.s32.totalorder %s19, 1
    %p42 = por %p40, %p41
    %p44 = scmp.ne.s32.totalorder %s27, %s43
    %p45 = scmp.eq.s32.totalorder %s19, 0
    %p46 = por %p44, %p45
    %s48 = sadd.s32 %s47, 1
    %p51 = scmp.eq.s32.totalorder %s13, 1
    %p52 = scmp.ne.s32.totalorder %s47, %s49
    %p53 = scmp.eq.s32.totalorder %s13, 0
    %p54 = por %p52, %p53
    %p55 = scmp.ne.s32.totalorder %s47, %s49
    %p56 = scmp.eq.s32.totalorder %s18, 1
    %p57 = por %p55, %p56
    %p58 = scmp.ne.s32.totalorder %s49, %s50
    %p59 = scmp.eq.s32.totalorder %s18, 0
    %p60 = por %p58, %p59
    %p61 = scmp.ne.s32.totalorder %s49, %s50
    %p62 = scmp.eq.s32.totalorder %s19, 1
    %p63 = por %p61, %p62
    %p65 = scmp.ne.s32.totalorder %s50, %s64
    %p66 = scmp.eq.s32.totalorder %s19, 0
    %p67 = por %p65, %p66
    %s69 = sadd.s32 %s68, 1
    %p72 = scmp.eq.s32.totalorder %s13, 1
    %p73 = scmp.ne.s32.totalorder %s68, %s70
    %p74 = scmp.eq.s32.totalorder %s13, 0
    %p75 = por %p73, %p74
    %p76 = scmp.ne.s32.totalorder %s68, %s70
    %p77 = scmp.eq.s32.totalorder %s18, 1
    %p78 = por %p76, %p77
    %p79 = scmp.ne.s32.totalorder %s70, %s71
    %p80 = scmp.eq.s32.totalorder %s18, 0
    %p81 = por %p79, %p80
    %p82 = scmp.ne.s32.totalorder %s70, %s71
    %p83 = scmp.eq.s32.totalorder %s19, 1
    %p84 = por %p82, %p83
    %p86 = scmp.ne.s32.totalorder %s71, %s85
    %p87 = scmp.eq.s32.totalorder %s19, 0
    %p88 = por %p86, %p87
    %s90 = sadd.s32 %s89, 1
    %p93 = scmp.eq.s32.totalorder %s13, 1
    %p94 = scmp.ne.s32.totalorder %s89, %s91
    %p95 = scmp.eq.s32.totalorder %s13, 0
    %p96 = por %p94, %p95
    %p97 = scmp.ne.s32.totalorder %s89, %s91
    %p98 = scmp.eq.s32.totalorder %s18, 1
    %p99 = por %p97, %p98
    %p100 = scmp.ne.s32.totalorder %s91, %s92
    %p101 = scmp.eq.s32.totalorder %s18, 0
    %p102 = por %p100, %p101
    %p103 = scmp.ne.s32.totalorder %s91, %s92
    %p104 = scmp.eq.s32.totalorder %s19, 1
    %p105 = por %p103, %p104
    %p107 = scmp.ne.s32.totalorder %s92, %s106
    %p108 = scmp.eq.s32.totalorder %s19, 0
    %p109 = por %p107, %p108
    %s111 = sadd.s32 %s110, 1
    %p114 = scmp.eq.s32.totalorder %s13, 1
    %p115 = scmp.ne.s32.totalorder %s110, %s112
    %p116 = scmp.eq.s32.totalorder %s13, 0
    %p117 = por %p115, %p116
    %p118 = scmp.ne.s32.totalorder %s110, %s112
    %p119 = scmp.eq.s32.totalorder %s18, 1
    %p120 = por %p118, %p119
    %p121 = scmp.ne.s32.totalorder %s112, %s113
    %p122 = scmp.eq.s32.totalorder %s18, 0
    %p123 = por %p121, %p122
    %p124 = scmp.ne.s32.totalorder %s112, %s113
    %p125 = scmp.eq.s32.totalorder %s19, 1
    %p126 = por %p124, %p125
    %p128 = scmp.ne.s32.totalorder %s113, %s127
    %p129 = scmp.eq.s32.totalorder %s19, 0
    %p130 = por %p128, %p129
    %s132 = sadd.s32 %s131, 1
    %p135 = scmp.eq.s32.totalorder %s13, 1
    %p136 = scmp.ne.s32.totalorder %s131, %s133
    %p137 = scmp.eq.s32.totalorder %s13, 0
    %p138 = por %p136, %p137
    %p139 = scmp.ne.s32.totalorder %s131, %s133
    %p140 = scmp.eq.s32.totalorder %s18, 1
    %p141 = por %p139, %p140
    %p142 = scmp.ne.s32.totalorder %s133, %s134
    %p143 = scmp.eq.s32.totalorder %s18, 0
    %p144 = por %p142, %p143
    %p145 = scmp.ne.s32.totalorder %s133, %s134
    %p146 = scmp.eq.s32.totalorder %s19, 1
    %p147 = por %p145, %p146
    %p149 = scmp.ne.s32.totalorder %s134, %s148
    %p150 = scmp.eq.s32.totalorder %s19, 0
    %p151 = por %p149, %p150
    %s153 = sadd.s32 %s152, 1
    %p156 = scmp.eq.s32.totalorder %s13, 1
    %p157 = scmp.ne.s32.totalorder %s152, %s154
    %p158 = scmp.eq.s32.totalorder %s13, 0
    %p159 = por %p157, %p158
    %p160 = scmp.ne.s32.totalorder %s152, %s154
    %p161 = scmp.eq.s32.totalorder %s18, 1
    %p162 = por %p160, %p161
    %p163 = scmp.ne.s32.totalorder %s154, %s155
    %p164 = scmp.eq.s32.totalorder %s18, 0
    %p165 = por %p163, %p164
    %p166 = scmp.ne.s32.totalorder %s154, %s155
    %p167 = scmp.eq.s32.totalorder %s19, 1
    %p168 = por %p166, %p167
    %p170 = scmp.ne.s32.totalorder %s155, %s169
    %p171 = scmp.eq.s32.totalorder %s19, 0
    %p172 = por %p170, %p171
    %s173 = ssub.s32 %s13, %s20
    %p174 = scmp.eq.s32.totalorder %s173, 0
    %s176 = sadd.s32 %s175, 1
    %s177 = scalar_select %p174, %s175, %s176
    %p180 = pneg %p174
    %p181 = scmp.eq.s32.totalorder %s13, 1
    %p182 = por %p180, %p181
    %p183 = scmp.ne.s32.totalorder %s175, %s178
    %p184 = scmp.eq.s32.totalorder %s13, 0
    %p185 = por %p183, %p184
    %p186 = scmp.ne.s32.totalorder %s175, %s178
    %p187 = scmp.eq.s32.totalorder %s18, 1
    %p188 = por %p186, %p187
    %p189 = scmp.ne.s32.totalorder %s178, %s179
    %p190 = scmp.eq.s32.totalorder %s18, 0
    %p191 = por %p189, %p190
    %p192 = scmp.ne.s32.totalorder %s178, %s179
    %p193 = scmp.eq.s32.totalorder %s19, 1
    %p194 = por %p192, %p193
    %p196 = scmp.ne.s32.totalorder %s179, %s195
    %p197 = scmp.eq.s32.totalorder %s19, 0
    %p198 = por %p196, %p197
    %p199 = scmp.le.s32.totalorder 1, %s13
    %p200 = scmp.lt.s32.totalorder %s13, 3
    %p201 = pnand %p199, %p200
    %p202 = pneg %p201
    // Predicated region
    $region9: #{simple_cnn_forward.1} parent=5 // pred_check
      _
    $region10: #{simple_cnn_forward.1} parent=5 // pred_check_branch
      %204 = sbr.rel (%p201) target = $region12
    $region11: #{simple_cnn_forward.1} parent=5 // pred_region
      %s205 = ssub.s32 %s13, 1
      // Predicated region
      $region13: #{simple_cnn_forward.1} parent=11 // pred_check
        %p206 = pneg %p60
      $region14: #{simple_cnn_forward.1} parent=11 // pred_check_branch
        %208 = sbr.rel (%p206) target = $region16
      $region15: #{simple_cnn_forward.1} parent=11 // pred_region
        _
      $region16: #{simple_cnn_forward.1} parent=11 // pred_fallthru
        _
      // Predicated region
      $region17: #{simple_cnn_forward.1} parent=11 // pred_check
        %p209 = pneg %p81
      $region18: #{simple_cnn_forward.1} parent=11 // pred_check_branch
        %211 = sbr.rel (%p209) target = $region20
      $region19: #{simple_cnn_forward.1} parent=11 // pred_region
        _
      $region20: #{simple_cnn_forward.1} parent=11 // pred_fallthru
        _
      // Predicated region
      $region21: #{simple_cnn_forward.1} parent=11 // pred_check
        %p212 = pneg %p102
      $region22: #{simple_cnn_forward.1} parent=11 // pred_check_branch
        %214 = sbr.rel (%p212) target = $region24
      $region23: #{simple_cnn_forward.1} parent=11 // pred_region
        _
      $region24: #{simple_cnn_forward.1} parent=11 // pred_fallthru
        _
      // Predicated region
      $region25: #{simple_cnn_forward.1} parent=11 // pred_check
        %p215 = pneg %p123
      $region26: #{simple_cnn_forward.1} parent=11 // pred_check_branch
        %217 = sbr.rel (%p215) target = $region28
      $region27: #{simple_cnn_forward.1} parent=11 // pred_region
        _
      $region28: #{simple_cnn_forward.1} parent=11 // pred_fallthru
        _
      // Predicated region
      $region29: #{simple_cnn_forward.1} parent=11 // pred_check
        %p218 = pneg %p144
      $region30: #{simple_cnn_forward.1} parent=11 // pred_check_branch
        %220 = sbr.rel (%p218) target = $region32
      $region31: #{simple_cnn_forward.1} parent=11 // pred_region
        _
      $region32: #{simple_cnn_forward.1} parent=11 // pred_fallthru
        _
      // Predicated region
      $region33: #{simple_cnn_forward.1} parent=11 // pred_check
        %p221 = pneg %p165
      $region34: #{simple_cnn_forward.1} parent=11 // pred_check_branch
        %223 = sbr.rel (%p221) target = $region36
      $region35: #{simple_cnn_forward.1} parent=11 // pred_region
        _
      $region36: #{simple_cnn_forward.1} parent=11 // pred_fallthru
        _
    $region12: #{simple_cnn_forward.1} parent=5 // pred_fallthru
      _
    %p224 = scmp.lt.s32.totalorder %s13, 2
    // Predicated region
    $region37: #{simple_cnn_forward.1} parent=5 // pred_check
      %p225 = pneg %p224
    $region38: #{simple_cnn_forward.1} parent=5 // pred_check_branch
      %227 = sbr.rel (%p225) target = $region40
    $region39: #{simple_cnn_forward.1} parent=5 // pred_region
      // Predicated region
      $region41: #{simple_cnn_forward.1} parent=39 // pred_check
        %p228 = pneg %p33
      $region42: #{simple_cnn_forward.1} parent=39 // pred_check_branch
        %230 = sbr.rel (%p228) target = $region44
      $region43: #{simple_cnn_forward.1} parent=39 // pred_region
        %p231 = scmp.lt.s32.totalorder %s13, 1
        %s232 = scalar_select %p231, %s13, 1
        %s233 = smul.addr %s232, 32
        %s234 = smul.addr %s233, 8
        %s235 = scalar_lea.vmem %s0, %s234
      $region44: #{simple_cnn_forward.1} parent=39 // pred_fallthru
        _
    $region40: #{simple_cnn_forward.1} parent=5 // pred_fallthru
      _
    %p236 = scmp.le.s32.totalorder 1, %s13
    %p237 = scmp.lt.s32.totalorder %s13, 3
    %p238 = pnand %p236, %p237
    %p239 = pneg %p238
    // Predicated region
    $region45: #{simple_cnn_forward.1} parent=5 // pred_check
      _
    $region46: #{simple_cnn_forward.1} parent=5 // pred_check_branch
      %241 = sbr.rel (%p238) target = $region48
    $region47: #{simple_cnn_forward.1} parent=5 // pred_region
      %s242 = ssub.s32 %s13, 1
      %p243 = scmp.lt.s32.totalorder %s18, 1
      %s244 = scalar_select %p243, %s18, 1
      %s245 = smul.addr %s244, 32
      %s246 = smul.addr %s245, 8
      %s247 = scalar_lea.vmem %s0, %s246
      %p248 = pneg %p39
      %p249 = pneg %p36
      %p250 = pneg %p60
      %p251 = pneg %p57
      %p252 = pneg %p81
      %p253 = pneg %p78
      %p254 = pneg %p102
      %p255 = pneg %p99
      %p256 = pneg %p123
      %p257 = pneg %p120
      %p258 = pneg %p144
      %p259 = pneg %p141
      %p260 = pneg %p165
      %p261 = pneg %p162
      %p262 = pneg %p191
      %p263 = pneg %p188
      %p264 = scmp.lt.s32.totalorder %s18, 1
      %s265 = scalar_select %p264, %s18, 1
      %s266 = smul.addr %s265, 2
      %s267 = smul.addr %s266, 4
      %s268 = scalar_lea.vmem %s7, %s267
      %p269 = scmp.lt.s32.totalorder %s18, 1
      %s270 = scalar_select %p269, %s18, 1
      %s271 = smul.addr %s270, 32
      %s272 = smul.addr %s271, 8
      %s273 = scalar_lea.vmem %s0, %s272
      %p274 = scmp.lt.s32.totalorder %s18, 1
      %s275 = scalar_select %p274, %s18, 1
      %s276 = smul.addr %s275, 2
      %s277 = smul.addr %s276, 4
      %s278 = scalar_lea.vmem %s7, %s277
      %vm279 = vcmask 23552
      %280 = vst.msk [vmem:[#allocation2] sm:$0xff] %vm279, 0.0
      %281 = vst.msk [vmem:[#allocation2 + $0x8] sm:$0xff] %vm279, 0.0
      %vm282 = vcmask 17408
      %283 = vst.msk [vmem:[#allocation2 + $0x10] sm:$0x3] %vm282, 0.0
      %284 = vst.msk [vmem:[#allocation2 + $0x18] sm:$0xff] %vm279, 0.0
      %285 = vst.msk [vmem:[#allocation2 + $0x20] sm:$0xff] %vm279, 0.0
      %286 = vst.msk [vmem:[#allocation2 + $0x28] sm:$0x3] %vm282, 0.0
      %287 = vst.msk [vmem:[#allocation2 + $0x30] sm:$0xff] %vm279, 0.0
      %288 = vst.msk [vmem:[#allocation2 + $0x38] sm:$0xff] %vm279, 0.0
      %289 = vst.msk [vmem:[#allocation2 + $0x40] sm:$0x3] %vm282, 0.0
      %290 = vst.msk [vmem:[#allocation2 + $0x48] sm:$0xff] %vm279, 0.0
      %291 = vst.msk [vmem:[#allocation2 + $0x50] sm:$0xff] %vm279, 0.0
      %292 = vst.msk [vmem:[#allocation2 + $0x58] sm:$0x3] %vm282, 0.0
      %293 = vst.msk [vmem:[#allocation2 + $0x60] sm:$0xff] %vm279, 0.0
      %294 = vst.msk [vmem:[#allocation2 + $0x68] sm:$0xff] %vm279, 0.0
      %295 = vst.msk [vmem:[#allocation2 + $0x70] sm:$0x3] %vm282, 0.0
      %296 = vst.msk [vmem:[#allocation2 + $0x78] sm:$0xff] %vm279, 0.0
      %297 = vst.msk [vmem:[#allocation2 + $0x80] sm:$0xff] %vm279, 0.0
      %298 = vst.msk [vmem:[#allocation2 + $0x88] sm:$0x3] %vm282, 0.0
      %299 = vst.msk [vmem:[#allocation2 + $0x90] sm:$0xff] %vm279, 0.0
      %300 = vst.msk [vmem:[#allocation2 + $0x98] sm:$0xff] %vm279, 0.0
      %301 = vst.msk [vmem:[#allocation2 + $0xa0] sm:$0x3] %vm282, 0.0
      %302 = vst.msk [vmem:[#allocation2 + $0xa8] sm:$0xff] %vm279, 0.0
      %303 = vst.msk [vmem:[#allocation2 + $0xb0] sm:$0xff] %vm279, 0.0
      %304 = vst.msk [vmem:[#allocation2 + $0xb8] sm:$0x3] %vm282, 0.0
      %305 = vst.msk [vmem:[#allocation2 + $0xc0] sm:$0xff] %vm279, 0.0
      %306 = vst.msk [vmem:[#allocation2 + $0xc8] sm:$0xff] %vm279, 0.0
      %307 = vst.msk [vmem:[#allocation2 + $0xd0] sm:$0x3] %vm282, 0.0
      %308 = vst.msk [vmem:[#allocation2 + $0xd8] sm:$0xff] %vm279, 0.0
      %309 = vst.msk [vmem:[#allocation2 + $0xe0] sm:$0xff] %vm279, 0.0
      %310 = vst.msk [vmem:[#allocation2 + $0xe8] sm:$0x3] %vm282, 0.0
      %311 = vst.msk [vmem:[#allocation2 + $0xf0] sm:$0xff] %vm279, 0.0
      %312 = vst.msk [vmem:[#allocation2 + $0xf8] sm:$0xff] %vm279, 0.0
      %313 = vst.msk [vmem:[#allocation2 + $0x100] sm:$0x3] %vm282, 0.0
      %314 = vst.msk [vmem:[#allocation2 + $0x108] sm:$0xff] %vm279, 0.0
      %315 = vst.msk [vmem:[#allocation2 + $0x110] sm:$0xff] %vm279, 0.0
      %316 = vst.msk [vmem:[#allocation2 + $0x118] sm:$0x3] %vm282, 0.0
      %317 = vst.msk [vmem:[#allocation2 + $0x120] sm:$0xff] %vm279, 0.0
      %318 = vst.msk [vmem:[#allocation2 + $0x128] sm:$0xff] %vm279, 0.0
      %319 = vst.msk [vmem:[#allocation2 + $0x130] sm:$0x3] %vm282, 0.0
      %320 = vst.msk [vmem:[#allocation2 + $0x138] sm:$0xff] %vm279, 0.0
      %321 = vst.msk [vmem:[#allocation2 + $0x140] sm:$0xff] %vm279, 0.0
      %322 = vst.msk [vmem:[#allocation2 + $0x148] sm:$0x3] %vm282, 0.0
      %323 = vst.msk [vmem:[#allocation2 + $0x150] sm:$0xff] %vm279, 0.0
      %324 = vst.msk [vmem:[#allocation2 + $0x158] sm:$0xff] %vm279, 0.0
      %325 = vst.msk [vmem:[#allocation2 + $0x160] sm:$0x3] %vm282, 0.0
      %326 = vst.msk [vmem:[#allocation2 + $0x168] sm:$0xff] %vm279, 0.0
      %327 = vst.msk [vmem:[#allocation2 + $0x170] sm:$0xff] %vm279, 0.0
      %328 = vst.msk [vmem:[#allocation2 + $0x178] sm:$0x3] %vm282, 0.0
      %329 = vst.msk [vmem:[#allocation2 + $0x180] sm:$0xff] %vm279, 0.0
      %330 = vst.msk [vmem:[#allocation2 + $0x188] sm:$0xff] %vm279, 0.0
      %331 = vst.msk [vmem:[#allocation2 + $0x190] sm:$0x3] %vm282, 0.0
      %332 = vst.msk [vmem:[#allocation2 + $0x198] sm:$0xff] %vm279, 0.0
      %333 = vst.msk [vmem:[#allocation2 + $0x1a0] sm:$0xff] %vm279, 0.0
      %334 = vst.msk [vmem:[#allocation2 + $0x1a8] sm:$0x3] %vm282, 0.0
      %v335 = vld [vmem:[%s273] sm:$0xff]
      %v336 = vld [vmem:[%s273 + $0x8] sm:$0xff]
      %v337 = vld [vmem:[%s273 + $0x10] sm:$0xff]
      %v338 = vld [vmem:[%s273 + $0x18] sm:$0xff]
      %v339 = vld [vmem:[%s273 + $0x20] sm:$0xff]
      %v340 = vld [vmem:[%s273 + $0x28] sm:$0xff]
      %v341 = vld [vmem:[%s273 + $0x30] sm:$0xff]
      %v342 = vld [vmem:[%s273 + $0x38] sm:$0xff]
      %v343 = vld [vmem:[%s273 + $0x40] sm:$0xff]
      %v344 = vld [vmem:[%s273 + $0x48] sm:$0xff]
      %v345 = vld [vmem:[%s273 + $0x50] sm:$0xff]
      %v346 = vld [vmem:[%s273 + $0x58] sm:$0xff]
      %v347 = vld [vmem:[%s273 + $0x60] sm:$0xff]
      %v348 = vld [vmem:[%s273 + $0x68] sm:$0xff]
      %v349 = vld [vmem:[%s273 + $0x70] sm:$0xff]
      %v350 = vld [vmem:[%s273 + $0x78] sm:$0xff]
      %v351 = vld [vmem:[%s273 + $0x80] sm:$0xff]
      %v352 = vld [vmem:[%s273 + $0x88] sm:$0xff]
      %v353 = vld [vmem:[%s273 + $0x90] sm:$0xff]
      %v354 = vld [vmem:[%s273 + $0x98] sm:$0xff]
      %v355 = vld [vmem:[%s273 + $0xa0] sm:$0xff]
      %v356 = vld [vmem:[%s273 + $0xa8] sm:$0xff]
      %v357 = vld [vmem:[%s273 + $0xb0] sm:$0xff]
      %v358 = vld [vmem:[%s273 + $0xb8] sm:$0xff]
      %v359 = vld [vmem:[%s273 + $0xc0] sm:$0xff]
      %v360 = vld [vmem:[%s273 + $0xc8] sm:$0xff]
      %v361 = vld [vmem:[%s273 + $0xd0] sm:$0xff]
      %v362 = vld [vmem:[%s273 + $0xd8] sm:$0xff]
      %v363 = vld [vmem:[%s273 + $0xe0] sm:$0xff]
      %v364 = vld [vmem:[%s273 + $0xe8] sm:$0xff]
      %v365 = vld [vmem:[%s273 + $0xf0] sm:$0xff]
      %v366 = vld [vmem:[%s273 + $0xf8] sm:$0xff]
      %s367 = scalar_lea.vmem [#allocation2], 24
      %368 = vst.msk [vmem:[%s367 + $0x1] sm:$0xff] %vm279, %v335
      %369 = vst.msk [vmem:[%s367 + $0x9] sm:$0xff] %vm279, %v336
      %370 = vst.msk [vmem:[%s367 + $0x19] sm:$0xff] %vm279, %v337
      %371 = vst.msk [vmem:[%s367 + $0x21] sm:$0xff] %vm279, %v338
      %372 = vst.msk [vmem:[%s367 + $0x31] sm:$0xff] %vm279, %v339
      %373 = vst.msk [vmem:[%s367 + $0x39] sm:$0xff] %vm279, %v340
      %374 = vst.msk [vmem:[%s367 + $0x49] sm:$0xff] %vm279, %v341
      %375 = vst.msk [vmem:[%s367 + $0x51] sm:$0xff] %vm279, %v342
      %376 = vst.msk [vmem:[%s367 + $0x61] sm:$0xff] %vm279, %v343
      %377 = vst.msk [vmem:[%s367 + $0x69] sm:$0xff] %vm279, %v344
      %378 = vst.msk [vmem:[%s367 + $0x79] sm:$0xff] %vm279, %v345
      %379 = vst.msk [vmem:[%s367 + $0x81] sm:$0xff] %vm279, %v346
      %380 = vst.msk [vmem:[%s367 + $0x91] sm:$0xff] %vm279, %v347
      %381 = vst.msk [vmem:[%s367 + $0x99] sm:$0xff] %vm279, %v348
      %382 = vst.msk [vmem:[%s367 + $0xa9] sm:$0xff] %vm279, %v349
      %383 = vst.msk [vmem:[%s367 + $0xb1] sm:$0xff] %vm279, %v350
      %384 = vst.msk [vmem:[%s367 + $0xc1] sm:$0xff] %vm279, %v351
      %385 = vst.msk [vmem:[%s367 + $0xc9] sm:$0xff] %vm279, %v352
      %386 = vst.msk [vmem:[%s367 + $0xd9] sm:$0xff] %vm279, %v353
      %387 = vst.msk [vmem:[%s367 + $0xe1] sm:$0xff] %vm279, %v354
      %388 = vst.msk [vmem:[%s367 + $0xf1] sm:$0xff] %vm279, %v355
      %389 = vst.msk [vmem:[%s367 + $0xf9] sm:$0xff] %vm279, %v356
      %390 = vst.msk [vmem:[%s367 + $0x109] sm:$0xff] %vm279, %v357
      %391 = vst.msk [vmem:[%s367 + $0x111] sm:$0xff] %vm279, %v358
      %392 = vst.msk [vmem:[%s367 + $0x121] sm:$0xff] %vm279, %v359
      %393 = vst.msk [vmem:[%s367 + $0x129] sm:$0xff] %vm279, %v360
      %394 = vst.msk [vmem:[%s367 + $0x139] sm:$0xff] %vm279, %v361
      %395 = vst.msk [vmem:[%s367 + $0x141] sm:$0xff] %vm279, %v362
      %396 = vst.msk [vmem:[%s367 + $0x151] sm:$0xff] %vm279, %v363
      %397 = vst.msk [vmem:[%s367 + $0x159] sm:$0xff] %vm279, %v364
      %398 = vst.msk [vmem:[%s367 + $0x169] sm:$0xff] %vm279, %v365
      %399 = vst.msk [vmem:[%s367 + $0x171] sm:$0xff] %vm279, %v366
      %v400 = vld [vmem:[#allocation2] sm:$0xff]
      %v401 = vld [vmem:[#allocation2 + $0x8] sm:$0xff]
      %v402 = vld [vmem:[#allocation2 + $0x18] sm:$0xff]
      %v403 = vld [vmem:[#allocation2 + $0x20] sm:$0xff]
      %v404 = vld [vmem:[#allocation2 + $0x30] sm:$0xff]
      %v405 = vld [vmem:[#allocation2 + $0x38] sm:$0xff]
      %v406 = vld [vmem:[#allocation2 + $0x48] sm:$0xff]
      %v407 = vld [vmem:[#allocation2 + $0x50] sm:$0xff]
      %v408 = vld [vmem:[#allocation2 + $0x60] sm:$0xff]
      %v409 = vld [vmem:[#allocation2 + $0x68] sm:$0xff]
      %v410 = vld [vmem:[#allocation2 + $0x78] sm:$0xff]
      %v411 = vld [vmem:[#allocation2 + $0x80] sm:$0xff]
      %v412 = vld [vmem:[#allocation2 + $0x90] sm:$0xff]
      %v413 = vld [vmem:[#allocation2 + $0x98] sm:$0xff]
      %v414 = vld [vmem:[#allocation2 + $0xa8] sm:$0xff]
      %v415 = vld [vmem:[#allocation2 + $0xb0] sm:$0xff]
      %v416 = vld [vmem:[#allocation2 + $0xc0] sm:$0xff]
      %v417 = vld [vmem:[#allocation2 + $0xc8] sm:$0xff]
      %v418 = vld [vmem:[#allocation2 + $0xd8] sm:$0xff]
      %v419 = vld [vmem:[#allocation2 + $0xe0] sm:$0xff]
      %v420 = vld [vmem:[#allocation2 + $0xf0] sm:$0xff]
      %v421 = vld [vmem:[#allocation2 + $0xf8] sm:$0xff]
      %v422 = vld [vmem:[#allocation2 + $0x108] sm:$0xff]
      %v423 = vld [vmem:[#allocation2 + $0x110] sm:$0xff]
      %v424 = vld [vmem:[#allocation2 + $0x120] sm:$0xff]
      %v425 = vld [vmem:[#allocation2 + $0x128] sm:$0xff]
      %v426 = vld [vmem:[#allocation2 + $0x138] sm:$0xff]
      %v427 = vld [vmem:[#allocation2 + $0x140] sm:$0xff]
      %v428 = vld [vmem:[#allocation2 + $0x150] sm:$0xff]
      %v429 = vld [vmem:[#allocation2 + $0x158] sm:$0xff]
      %v430 = vld [vmem:[#allocation2 + $0x168] sm:$0xff]
      %v431 = vld [vmem:[#allocation2 + $0x170] sm:$0xff]
      %432 = vst.msk [vmem:[#allocation3] sm:$0xff] %vm279, %v400
      %433 = vst.msk [vmem:[#allocation3 + $0x8] sm:$0xff] %vm279, %v401
      %434 = vst.msk [vmem:[#allocation3 + $0x10] sm:$0xff] %vm279, %v402
      %435 = vst.msk [vmem:[#allocation3 + $0x18] sm:$0xff] %vm279, %v403
      %436 = vst.msk [vmem:[#allocation3 + $0x20] sm:$0xff] %vm279, %v404
      %437 = vst.msk [vmem:[#allocation3 + $0x28] sm:$0xff] %vm279, %v405
      %438 = vst.msk [vmem:[#allocation3 + $0x30] sm:$0xff] %vm279, %v406
      %439 = vst.msk [vmem:[#allocation3 + $0x38] sm:$0xff] %vm279, %v407
      %440 = vst.msk [vmem:[#allocation3 + $0x40] sm:$0xff] %vm279, %v408
      %441 = vst.msk [vmem:[#allocation3 + $0x48] sm:$0xff] %vm279, %v409
      %442 = vst.msk [vmem:[#allocation3 + $0x50] sm:$0xff] %vm279, %v410
      %443 = vst.msk [vmem:[#allocation3 + $0x58] sm:$0xff] %vm279, %v411
      %444 = vst.msk [vmem:[#allocation3 + $0x60] sm:$0xff] %vm279, %v412
      %445 = vst.msk [vmem:[#allocation3 + $0x68] sm:$0xff] %vm279, %v413
      %446 = vst.msk [vmem:[#allocation3 + $0x70] sm:$0xff] %vm279, %v414
      %447 = vst.msk [vmem:[#allocation3 + $0x78] sm:$0xff] %vm279, %v415
      %448 = vst.msk [vmem:[#allocation3 + $0x80] sm:$0xff] %vm279, %v416
      %449 = vst.msk [vmem:[#allocation3 + $0x88] sm:$0xff] %vm279, %v417
      %450 = vst.msk [vmem:[#allocation3 + $0x90] sm:$0xff] %vm279, %v418
      %451 = vst.msk [vmem:[#allocation3 + $0x98] sm:$0xff] %vm279, %v419
      %452 = vst.msk [vmem:[#allocation3 + $0xa0] sm:$0xff] %vm279, %v420
      %453 = vst.msk [vmem:[#allocation3 + $0xa8] sm:$0xff] %vm279, %v421
      %454 = vst.msk [vmem:[#allocation3 + $0xb0] sm:$0xff] %vm279, %v422
      %455 = vst.msk [vmem:[#allocation3 + $0xb8] sm:$0xff] %vm279, %v423
      %456 = vst.msk [vmem:[#allocation3 + $0xc0] sm:$0xff] %vm279, %v424
      %457 = vst.msk [vmem:[#allocation3 + $0xc8] sm:$0xff] %vm279, %v425
      %458 = vst.msk [vmem:[#allocation3 + $0xd0] sm:$0xff] %vm279, %v426
      %459 = vst.msk [vmem:[#allocation3 + $0xd8] sm:$0xff] %vm279, %v427
      %460 = vst.msk [vmem:[#allocation3 + $0xe0] sm:$0xff] %vm279, %v428
      %461 = vst.msk [vmem:[#allocation3 + $0xe8] sm:$0xff] %vm279, %v429
      %462 = vst.msk [vmem:[#allocation3 + $0xf0] sm:$0xff] %vm279, %v430
      %463 = vst.msk [vmem:[#allocation3 + $0xf8] sm:$0xff] %vm279, %v431
      %v464 = vld [vmem:[#allocation2 + $0x1] sm:$0xff]
      %v465 = vld [vmem:[#allocation2 + $0x9] sm:$0xff]
      %v466 = vld [vmem:[#allocation2 + $0x19] sm:$0xff]
      %v467 = vld [vmem:[#allocation2 + $0x21] sm:$0xff]
      %v468 = vld [vmem:[#allocation2 + $0x31] sm:$0xff]
      %v469 = vld [vmem:[#allocation2 + $0x39] sm:$0xff]
      %v470 = vld [vmem:[#allocation2 + $0x49] sm:$0xff]
      %v471 = vld [vmem:[#allocation2 + $0x51] sm:$0xff]
      %v472 = vld [vmem:[#allocation2 + $0x61] sm:$0xff]
      %v473 = vld [vmem:[#allocation2 + $0x69] sm:$0xff]
      %v474 = vld [vmem:[#allocation2 + $0x79] sm:$0xff]
      %v475 = vld [vmem:[#allocation2 + $0x81] sm:$0xff]
      %v476 = vld [vmem:[#allocation2 + $0x91] sm:$0xff]
      %v477 = vld [vmem:[#allocation2 + $0x99] sm:$0xff]
      %v478 = vld [vmem:[#allocation2 + $0xa9] sm:$0xff]
      %v479 = vld [vmem:[#allocation2 + $0xb1] sm:$0xff]
      %v480 = vld [vmem:[#allocation2 + $0xc1] sm:$0xff]
      %v481 = vld [vmem:[#allocation2 + $0xc9] sm:$0xff]
      %v482 = vld [vmem:[#allocation2 + $0xd9] sm:$0xff]
      %v483 = vld [vmem:[#allocation2 + $0xe1] sm:$0xff]
      %v484 = vld [vmem:[#allocation2 + $0xf1] sm:$0xff]
      %v485 = vld [vmem:[#allocation2 + $0xf9] sm:$0xff]
      %v486 = vld [vmem:[#allocation2 + $0x109] sm:$0xff]
      %v487 = vld [vmem:[#allocation2 + $0x111] sm:$0xff]
      %v488 = vld [vmem:[#allocation2 + $0x121] sm:$0xff]
      %v489 = vld [vmem:[#allocation2 + $0x129] sm:$0xff]
      %v490 = vld [vmem:[#allocation2 + $0x139] sm:$0xff]
      %v491 = vld [vmem:[#allocation2 + $0x141] sm:$0xff]
      %v492 = vld [vmem:[#allocation2 + $0x151] sm:$0xff]
      %v493 = vld [vmem:[#allocation2 + $0x159] sm:$0xff]
      %v494 = vld [vmem:[#allocation2 + $0x169] sm:$0xff]
      %v495 = vld [vmem:[#allocation2 + $0x171] sm:$0xff]
      %528 = vrot.lane.b32.xlu0 %v464, 3
      %v529 = vpop.permute.xlu0 %528
      %530 = vrot.lane.b32.xlu0 %v465, 3
      %v531 = vpop.permute.xlu0 %530
      %532 = vrot.lane.b32.xlu0 %v466, 3
      %v533 = vpop.permute.xlu0 %532
      %534 = vrot.lane.b32.xlu0 %v467, 3
      %v535 = vpop.permute.xlu0 %534
      %536 = vrot.lane.b32.xlu0 %v468, 3
      %v537 = vpop.permute.xlu0 %536
      %538 = vrot.lane.b32.xlu0 %v469, 3
      %v539 = vpop.permute.xlu0 %538
      %540 = vrot.lane.b32.xlu0 %v470, 3
      %v541 = vpop.permute.xlu0 %540
      %542 = vrot.lane.b32.xlu0 %v471, 3
      %v543 = vpop.permute.xlu0 %542
      %544 = vrot.lane.b32.xlu0 %v472, 3
      %v545 = vpop.permute.xlu0 %544
      %546 = vrot.lane.b32.xlu0 %v473, 3
      %v547 = vpop.permute.xlu0 %546
      %548 = vrot.lane.b32.xlu0 %v474, 3
      %v549 = vpop.permute.xlu0 %548
      %550 = vrot.lane.b32.xlu0 %v475, 3
      %v551 = vpop.permute.xlu0 %550
      %552 = vrot.lane.b32.xlu0 %v476, 3
      %v553 = vpop.permute.xlu0 %552
      %554 = vrot.lane.b32.xlu0 %v477, 3
      %v555 = vpop.permute.xlu0 %554
      %556 = vrot.lane.b32.xlu0 %v478, 3
      %v557 = vpop.permute.xlu0 %556
      %558 = vrot.lane.b32.xlu0 %v479, 3
      %v559 = vpop.permute.xlu0 %558
      %560 = vrot.lane.b32.xlu0 %v480, 3
      %v561 = vpop.permute.xlu0 %560
      %562 = vrot.lane.b32.xlu0 %v481, 3
      %v563 = vpop.permute.xlu0 %562
      %564 = vrot.lane.b32.xlu0 %v482, 3
      %v565 = vpop.permute.xlu0 %564
      %566 = vrot.lane.b32.xlu0 %v483, 3
      %v567 = vpop.permute.xlu0 %566
      %568 = vrot.lane.b32.xlu0 %v484, 3
      %v569 = vpop.permute.xlu0 %568
      %570 = vrot.lane.b32.xlu0 %v485, 3
      %v571 = vpop.permute.xlu0 %570
      %572 = vrot.lane.b32.xlu0 %v486, 3
      %v573 = vpop.permute.xlu0 %572
      %574 = vrot.lane.b32.xlu0 %v487, 3
      %v575 = vpop.permute.xlu0 %574
      %576 = vrot.lane.b32.xlu0 %v488, 3
      %v577 = vpop.permute.xlu0 %576
      %578 = vrot.lane.b32.xlu0 %v489, 3
      %v579 = vpop.permute.xlu0 %578
      %580 = vrot.lane.b32.xlu0 %v490, 3
      %v581 = vpop.permute.xlu0 %580
      %582 = vrot.lane.b32.xlu0 %v491, 3
      %v583 = vpop.permute.xlu0 %582
      %584 = vrot.lane.b32.xlu0 %v492, 3
      %v585 = vpop.permute.xlu0 %584
      %586 = vrot.lane.b32.xlu0 %v493, 3
      %v587 = vpop.permute.xlu0 %586
      %588 = vrot.lane.b32.xlu0 %v494, 3
      %v589 = vpop.permute.xlu0 %588
      %590 = vrot.lane.b32.xlu0 %v495, 3
      %v591 = vpop.permute.xlu0 %590
      %vm624 = vcmask 48152
      %625 = vst.msk [vmem:[#allocation3] sm:$0xff] %vm624, %v529
      %626 = vst.msk [vmem:[#allocation3 + $0x8] sm:$0xff] %vm624, %v531
      %627 = vst.msk [vmem:[#allocation3 + $0x10] sm:$0xff] %vm624, %v533
      %628 = vst.msk [vmem:[#allocation3 + $0x18] sm:$0xff] %vm624, %v535
      %629 = vst.msk [vmem:[#allocation3 + $0x20] sm:$0xff] %vm624, %v537
      %630 = vst.msk [vmem:[#allocation3 + $0x28] sm:$0xff] %vm624, %v539
      %631 = vst.msk [vmem:[#allocation3 + $0x30] sm:$0xff] %vm624, %v541
      %632 = vst.msk [vmem:[#allocation3 + $0x38] sm:$0xff] %vm624, %v543
      %633 = vst.msk [vmem:[#allocation3 + $0x40] sm:$0xff] %vm624, %v545
      %634 = vst.msk [vmem:[#allocation3 + $0x48] sm:$0xff] %vm624, %v547
      %635 = vst.msk [vmem:[#allocation3 + $0x50] sm:$0xff] %vm624, %v549
      %636 = vst.msk [vmem:[#allocation3 + $0x58] sm:$0xff] %vm624, %v551
      %637 = vst.msk [vmem:[#allocation3 + $0x60] sm:$0xff] %vm624, %v553
      %638 = vst.msk [vmem:[#allocation3 + $0x68] sm:$0xff] %vm624, %v555
      %639 = vst.msk [vmem:[#allocation3 + $0x70] sm:$0xff] %vm624, %v557
      %640 = vst.msk [vmem:[#allocation3 + $0x78] sm:$0xff] %vm624, %v559
      %641 = vst.msk [vmem:[#allocation3 + $0x80] sm:$0xff] %vm624, %v561
      %642 = vst.msk [vmem:[#allocation3 + $0x88] sm:$0xff] %vm624, %v563
      %643 = vst.msk [vmem:[#allocation3 + $0x90] sm:$0xff] %vm624, %v565
      %644 = vst.msk [vmem:[#allocation3 + $0x98] sm:$0xff] %vm624, %v567
      %645 = vst.msk [vmem:[#allocation3 + $0xa0] sm:$0xff] %vm624, %v569
      %646 = vst.msk [vmem:[#allocation3 + $0xa8] sm:$0xff] %vm624, %v571
      %647 = vst.msk [vmem:[#allocation3 + $0xb0] sm:$0xff] %vm624, %v573
      %648 = vst.msk [vmem:[#allocation3 + $0xb8] sm:$0xff] %vm624, %v575
      %649 = vst.msk [vmem:[#allocation3 + $0xc0] sm:$0xff] %vm624, %v577
      %650 = vst.msk [vmem:[#allocation3 + $0xc8] sm:$0xff] %vm624, %v579
      %651 = vst.msk [vmem:[#allocation3 + $0xd0] sm:$0xff] %vm624, %v581
      %652 = vst.msk [vmem:[#allocation3 + $0xd8] sm:$0xff] %vm624, %v583
      %653 = vst.msk [vmem:[#allocation3 + $0xe0] sm:$0xff] %vm624, %v585
      %654 = vst.msk [vmem:[#allocation3 + $0xe8] sm:$0xff] %vm624, %v587
      %655 = vst.msk [vmem:[#allocation3 + $0xf0] sm:$0xff] %vm624, %v589
      %656 = vst.msk [vmem:[#allocation3 + $0xf8] sm:$0xff] %vm624, %v591
      %v657 = vld [vmem:[#allocation2 + $0x2] sm:$0xff]
      %v658 = vld [vmem:[#allocation2 + $0xa] sm:$0xff]
      %v659 = vld [vmem:[#allocation2 + $0x1a] sm:$0xff]
      %v660 = vld [vmem:[#allocation2 + $0x22] sm:$0xff]
      %v661 = vld [vmem:[#allocation2 + $0x32] sm:$0xff]
      %v662 = vld [vmem:[#allocation2 + $0x3a] sm:$0xff]
      %v663 = vld [vmem:[#allocation2 + $0x4a] sm:$0xff]
      %v664 = vld [vmem:[#allocation2 + $0x52] sm:$0xff]
      %v665 = vld [vmem:[#allocation2 + $0x62] sm:$0xff]
      %v666 = vld [vmem:[#allocation2 + $0x6a] sm:$0xff]
      %v667 = vld [vmem:[#allocation2 + $0x7a] sm:$0xff]
      %v668 = vld [vmem:[#allocation2 + $0x82] sm:$0xff]
      %v669 = vld [vmem:[#allocation2 + $0x92] sm:$0xff]
      %v670 = vld [vmem:[#allocation2 + $0x9a] sm:$0xff]
      %v671 = vld [vmem:[#allocation2 + $0xaa] sm:$0xff]
      %v672 = vld [vmem:[#allocation2 + $0xb2] sm:$0xff]
      %v673 = vld [vmem:[#allocation2 + $0xc2] sm:$0xff]
      %v674 = vld [vmem:[#allocation2 + $0xca] sm:$0xff]
      %v675 = vld [vmem:[#allocation2 + $0xda] sm:$0xff]
      %v676 = vld [vmem:[#allocation2 + $0xe2] sm:$0xff]
      %v677 = vld [vmem:[#allocation2 + $0xf2] sm:$0xff]
      %v678 = vld [vmem:[#allocation2 + $0xfa] sm:$0xff]
      %v679 = vld [vmem:[#allocation2 + $0x10a] sm:$0xff]
      %v680 = vld [vmem:[#allocation2 + $0x112] sm:$0xff]
      %v681 = vld [vmem:[#allocation2 + $0x122] sm:$0xff]
      %v682 = vld [vmem:[#allocation2 + $0x12a] sm:$0xff]
      %v683 = vld [vmem:[#allocation2 + $0x13a] sm:$0xff]
      %v684 = vld [vmem:[#allocation2 + $0x142] sm:$0xff]
      %v685 = vld [vmem:[#allocation2 + $0x152] sm:$0xff]
      %v686 = vld [vmem:[#allocation2 + $0x15a] sm:$0xff]
      %v687 = vld [vmem:[#allocation2 + $0x16a] sm:$0xff]
      %v688 = vld [vmem:[#allocation2 + $0x172] sm:$0xff]
      %721 = vrot.lane.b32.xlu0 %v657, 6
      %v722 = vpop.permute.xlu0 %721
      %723 = vrot.lane.b32.xlu0 %v658, 6
      %v724 = vpop.permute.xlu0 %723
      %725 = vrot.lane.b32.xlu0 %v659, 6
      %v726 = vpop.permute.xlu0 %725
      %727 = vrot.lane.b32.xlu0 %v660, 6
      %v728 = vpop.permute.xlu0 %727
      %729 = vrot.lane.b32.xlu0 %v661, 6
      %v730 = vpop.permute.xlu0 %729
      %731 = vrot.lane.b32.xlu0 %v662, 6
      %v732 = vpop.permute.xlu0 %731
      %733 = vrot.lane.b32.xlu0 %v663, 6
      %v734 = vpop.permute.xlu0 %733
      %735 = vrot.lane.b32.xlu0 %v664, 6
      %v736 = vpop.permute.xlu0 %735
      %737 = vrot.lane.b32.xlu0 %v665, 6
      %v738 = vpop.permute.xlu0 %737
      %739 = vrot.lane.b32.xlu0 %v666, 6
      %v740 = vpop.permute.xlu0 %739
      %741 = vrot.lane.b32.xlu0 %v667, 6
      %v742 = vpop.permute.xlu0 %741
      %743 = vrot.lane.b32.xlu0 %v668, 6
      %v744 = vpop.permute.xlu0 %743
      %745 = vrot.lane.b32.xlu0 %v669, 6
      %v746 = vpop.permute.xlu0 %745
      %747 = vrot.lane.b32.xlu0 %v670, 6
      %v748 = vpop.permute.xlu0 %747
      %749 = vrot.lane.b32.xlu0 %v671, 6
      %v750 = vpop.permute.xlu0 %749
      %751 = vrot.lane.b32.xlu0 %v672, 6
      %v752 = vpop.permute.xlu0 %751
      %753 = vrot.lane.b32.xlu0 %v673, 6
      %v754 = vpop.permute.xlu0 %753
      %755 = vrot.lane.b32.xlu0 %v674, 6
      %v756 = vpop.permute.xlu0 %755
      %757 = vrot.lane.b32.xlu0 %v675, 6
      %v758 = vpop.permute.xlu0 %757
      %759 = vrot.lane.b32.xlu0 %v676, 6
      %v760 = vpop.permute.xlu0 %759
      %761 = vrot.lane.b32.xlu0 %v677, 6
      %v762 = vpop.permute.xlu0 %761
      %763 = vrot.lane.b32.xlu0 %v678, 6
      %v764 = vpop.permute.xlu0 %763
      %765 = vrot.lane.b32.xlu0 %v679, 6
      %v766 = vpop.permute.xlu0 %765
      %767 = vrot.lane.b32.xlu0 %v680, 6
      %v768 = vpop.permute.xlu0 %767
      %769 = vrot.lane.b32.xlu0 %v681, 6
      %v770 = vpop.permute.xlu0 %769
      %771 = vrot.lane.b32.xlu0 %v682, 6
      %v772 = vpop.permute.xlu0 %771
      %773 = vrot.lane.b32.xlu0 %v683, 6
      %v774 = vpop.permute.xlu0 %773
      %775 = vrot.lane.b32.xlu0 %v684, 6
      %v776 = vpop.permute.xlu0 %775
      %777 = vrot.lane.b32.xlu0 %v685, 6
      %v778 = vpop.permute.xlu0 %777
      %779 = vrot.lane.b32.xlu0 %v686, 6
      %v780 = vpop.permute.xlu0 %779
      %781 = vrot.lane.b32.xlu0 %v687, 6
      %v782 = vpop.permute.xlu0 %781
      %783 = vrot.lane.b32.xlu0 %v688, 6
      %v784 = vpop.permute.xlu0 %783
      %vm817 = vcmask 72752
      %818 = vst.msk [vmem:[#allocation3] sm:$0xff] %vm817, %v722
      %819 = vst.msk [vmem:[#allocation3 + $0x8] sm:$0xff] %vm817, %v724
      %820 = vst.msk [vmem:[#allocation3 + $0x10] sm:$0xff] %vm817, %v726
      %821 = vst.msk [vmem:[#allocation3 + $0x18] sm:$0xff] %vm817, %v728
      %822 = vst.msk [vmem:[#allocation3 + $0x20] sm:$0xff] %vm817, %v730
      %823 = vst.msk [vmem:[#allocation3 + $0x28] sm:$0xff] %vm817, %v732
      %824 = vst.msk [vmem:[#allocation3 + $0x30] sm:$0xff] %vm817, %v734
      %825 = vst.msk [vmem:[#allocation3 + $0x38] sm:$0xff] %vm817, %v736
      %826 = vst.msk [vmem:[#allocation3 + $0x40] sm:$0xff] %vm817, %v738
      %827 = vst.msk [vmem:[#allocation3 + $0x48] sm:$0xff] %vm817, %v740
      %828 = vst.msk [vmem:[#allocation3 + $0x50] sm:$0xff] %vm817, %v742
      %829 = vst.msk [vmem:[#allocation3 + $0x58] sm:$0xff] %vm817, %v744
      %830 = vst.msk [vmem:[#allocation3 + $0x60] sm:$0xff] %vm817, %v746
      %831 = vst.msk [vmem:[#allocation3 + $0x68] sm:$0xff] %vm817, %v748
      %832 = vst.msk [vmem:[#allocation3 + $0x70] sm:$0xff] %vm817, %v750
      %833 = vst.msk [vmem:[#allocation3 + $0x78] sm:$0xff] %vm817, %v752
      %834 = vst.msk [vmem:[#allocation3 + $0x80] sm:$0xff] %vm817, %v754
      %835 = vst.msk [vmem:[#allocation3 + $0x88] sm:$0xff] %vm817, %v756
      %836 = vst.msk [vmem:[#allocation3 + $0x90] sm:$0xff] %vm817, %v758
      %837 = vst.msk [vmem:[#allocation3 + $0x98] sm:$0xff] %vm817, %v760
      %838 = vst.msk [vmem:[#allocation3 + $0xa0] sm:$0xff] %vm817, %v762
      %839 = vst.msk [vmem:[#allocation3 + $0xa8] sm:$0xff] %vm817, %v764
      %840 = vst.msk [vmem:[#allocation3 + $0xb0] sm:$0xff] %vm817, %v766
      %841 = vst.msk [vmem:[#allocation3 + $0xb8] sm:$0xff] %vm817, %v768
      %842 = vst.msk [vmem:[#allocation3 + $0xc0] sm:$0xff] %vm817, %v770
      %843 = vst.msk [vmem:[#allocation3 + $0xc8] sm:$0xff] %vm817, %v772
      %844 = vst.msk [vmem:[#allocation3 + $0xd0] sm:$0xff] %vm817, %v774
      %845 = vst.msk [vmem:[#allocation3 + $0xd8] sm:$0xff] %vm817, %v776
      %846 = vst.msk [vmem:[#allocation3 + $0xe0] sm:$0xff] %vm817, %v778
      %847 = vst.msk [vmem:[#allocation3 + $0xe8] sm:$0xff] %vm817, %v780
      %848 = vst.msk [vmem:[#allocation3 + $0xf0] sm:$0xff] %vm817, %v782
      %849 = vst.msk [vmem:[#allocation3 + $0xf8] sm:$0xff] %vm817, %v784
      %v850 = vld [vmem:[%s367] sm:$0xff]
      %v851 = vld [vmem:[%s367 + $0x8] sm:$0xff]
      %v852 = vld [vmem:[%s367 + $0x18] sm:$0xff]
      %v853 = vld [vmem:[%s367 + $0x20] sm:$0xff]
      %v854 = vld [vmem:[%s367 + $0x30] sm:$0xff]
      %v855 = vld [vmem:[%s367 + $0x38] sm:$0xff]
      %v856 = vld [vmem:[%s367 + $0x48] sm:$0xff]
      %v857 = vld [vmem:[%s367 + $0x50] sm:$0xff]
      %v858 = vld [vmem:[%s367 + $0x60] sm:$0xff]
      %v859 = vld [vmem:[%s367 + $0x68] sm:$0xff]
      %v860 = vld [vmem:[%s367 + $0x78] sm:$0xff]
      %v861 = vld [vmem:[%s367 + $0x80] sm:$0xff]
      %v862 = vld [vmem:[%s367 + $0x90] sm:$0xff]
      %v863 = vld [vmem:[%s367 + $0x98] sm:$0xff]
      %v864 = vld [vmem:[%s367 + $0xa8] sm:$0xff]
      %v865 = vld [vmem:[%s367 + $0xb0] sm:$0xff]
      %v866 = vld [vmem:[%s367 + $0xc0] sm:$0xff]
      %v867 = vld [vmem:[%s367 + $0xc8] sm:$0xff]
      %v868 = vld [vmem:[%s367 + $0xd8] sm:$0xff]
      %v869 = vld [vmem:[%s367 + $0xe0] sm:$0xff]
      %v870 = vld [vmem:[%s367 + $0xf0] sm:$0xff]
      %v871 = vld [vmem:[%s367 + $0xf8] sm:$0xff]
      %v872 = vld [vmem:[%s367 + $0x108] sm:$0xff]
      %v873 = vld [vmem:[%s367 + $0x110] sm:$0xff]
      %v874 = vld [vmem:[%s367 + $0x120] sm:$0xff]
      %v875 = vld [vmem:[%s367 + $0x128] sm:$0xff]
      %v876 = vld [vmem:[%s367 + $0x138] sm:$0xff]
      %v877 = vld [vmem:[%s367 + $0x140] sm:$0xff]
      %v878 = vld [vmem:[%s367 + $0x150] sm:$0xff]
      %v879 = vld [vmem:[%s367 + $0x158] sm:$0xff]
      %v880 = vld [vmem:[%s367 + $0x168] sm:$0xff]
      %v881 = vld [vmem:[%s367 + $0x170] sm:$0xff]
      %914 = vrot.lane.b32.xlu0 %v850, 9
      %v915 = vpop.permute.xlu0 %914
      %916 = vrot.lane.b32.xlu0 %v851, 9
      %v917 = vpop.permute.xlu0 %916
      %918 = vrot.lane.b32.xlu0 %v852, 9
      %v919 = vpop.permute.xlu0 %918
      %920 = vrot.lane.b32.xlu0 %v853, 9
      %v921 = vpop.permute.xlu0 %920
      %922 = vrot.lane.b32.xlu0 %v854, 9
      %v923 = vpop.permute.xlu0 %922
      %924 = vrot.lane.b32.xlu0 %v855, 9
      %v925 = vpop.permute.xlu0 %924
      %926 = vrot.lane.b32.xlu0 %v856, 9
      %v927 = vpop.permute.xlu0 %926
      %928 = vrot.lane.b32.xlu0 %v857, 9
      %v929 = vpop.permute.xlu0 %928
      %930 = vrot.lane.b32.xlu0 %v858, 9
      %v931 = vpop.permute.xlu0 %930
      %932 = vrot.lane.b32.xlu0 %v859, 9
      %v933 = vpop.permute.xlu0 %932
      %934 = vrot.lane.b32.xlu0 %v860, 9
      %v935 = vpop.permute.xlu0 %934
      %936 = vrot.lane.b32.xlu0 %v861, 9
      %v937 = vpop.permute.xlu0 %936
      %938 = vrot.lane.b32.xlu0 %v862, 9
      %v939 = vpop.permute.xlu0 %938
      %940 = vrot.lane.b32.xlu0 %v863, 9
      %v941 = vpop.permute.xlu0 %940
      %942 = vrot.lane.b32.xlu0 %v864, 9
      %v943 = vpop.permute.xlu0 %942
      %944 = vrot.lane.b32.xlu0 %v865, 9
      %v945 = vpop.permute.xlu0 %944
      %946 = vrot.lane.b32.xlu0 %v866, 9
      %v947 = vpop.permute.xlu0 %946
      %948 = vrot.lane.b32.xlu0 %v867, 9
      %v949 = vpop.permute.xlu0 %948
      %950 = vrot.lane.b32.xlu0 %v868, 9
      %v951 = vpop.permute.xlu0 %950
      %952 = vrot.lane.b32.xlu0 %v869, 9
      %v953 = vpop.permute.xlu0 %952
      %954 = vrot.lane.b32.xlu0 %v870, 9
      %v955 = vpop.permute.xlu0 %954
      %956 = vrot.lane.b32.xlu0 %v871, 9
      %v957 = vpop.permute.xlu0 %956
      %958 = vrot.lane.b32.xlu0 %v872, 9
      %v959 = vpop.permute.xlu0 %958
      %960 = vrot.lane.b32.xlu0 %v873, 9
      %v961 = vpop.permute.xlu0 %960
      %962 = vrot.lane.b32.xlu0 %v874, 9
      %v963 = vpop.permute.xlu0 %962
      %964 = vrot.lane.b32.xlu0 %v875, 9
      %v965 = vpop.permute.xlu0 %964
      %966 = vrot.lane.b32.xlu0 %v876, 9
      %v967 = vpop.permute.xlu0 %966
      %968 = vrot.lane.b32.xlu0 %v877, 9
      %v969 = vpop.permute.xlu0 %968
      %970 = vrot.lane.b32.xlu0 %v878, 9
      %v971 = vpop.permute.xlu0 %970
      %972 = vrot.lane.b32.xlu0 %v879, 9
      %v973 = vpop.permute.xlu0 %972
      %974 = vrot.lane.b32.xlu0 %v880, 9
      %v975 = vpop.permute.xlu0 %974
      %976 = vrot.lane.b32.xlu0 %v881, 9
      %v977 = vpop.permute.xlu0 %976
      %vm1010 = vcmask 97352
      %1011 = vst.msk [vmem:[#allocation3] sm:$0xff] %vm1010, %v915
      %1012 = vst.msk [vmem:[#allocation3 + $0x8] sm:$0xff] %vm1010, %v917
      %1013 = vst.msk [vmem:[#allocation3 + $0x10] sm:$0xff] %vm1010, %v919
      %1014 = vst.msk [vmem:[#allocation3 + $0x18] sm:$0xff] %vm1010, %v921
      %1015 = vst.msk [vmem:[#allocation3 + $0x20] sm:$0xff] %vm1010, %v923
      %1016 = vst.msk [vmem:[#allocation3 + $0x28] sm:$0xff] %vm1010, %v925
      %1017 = vst.msk [vmem:[#allocation3 + $0x30] sm:$0xff] %vm1010, %v927
      %1018 = vst.msk [vmem:[#allocation3 + $0x38] sm:$0xff] %vm1010, %v929
      %1019 = vst.msk [vmem:[#allocation3 + $0x40] sm:$0xff] %vm1010, %v931
      %1020 = vst.msk [vmem:[#allocation3 + $0x48] sm:$0xff] %vm1010, %v933
      %1021 = vst.msk [vmem:[#allocation3 + $0x50] sm:$0xff] %vm1010, %v935
      %1022 = vst.msk [vmem:[#allocation3 + $0x58] sm:$0xff] %vm1010, %v937
      %1023 = vst.msk [vmem:[#allocation3 + $0x60] sm:$0xff] %vm1010, %v939
      %1024 = vst.msk [vmem:[#allocation3 + $0x68] sm:$0xff] %vm1010, %v941
      %1025 = vst.msk [vmem:[#allocation3 + $0x70] sm:$0xff] %vm1010, %v943
      %1026 = vst.msk [vmem:[#allocation3 + $0x78] sm:$0xff] %vm1010, %v945
      %1027 = vst.msk [vmem:[#allocation3 + $0x80] sm:$0xff] %vm1010, %v947
      %1028 = vst.msk [vmem:[#allocation3 + $0x88] sm:$0xff] %vm1010, %v949
      %1029 = vst.msk [vmem:[#allocation3 + $0x90] sm:$0xff] %vm1010, %v951
      %1030 = vst.msk [vmem:[#allocation3 + $0x98] sm:$0xff] %vm1010, %v953
      %1031 = vst.msk [vmem:[#allocation3 + $0xa0] sm:$0xff] %vm1010, %v955
      %1032 = vst.msk [vmem:[#allocation3 + $0xa8] sm:$0xff] %vm1010, %v957
      %1033 = vst.msk [vmem:[#allocation3 + $0xb0] sm:$0xff] %vm1010, %v959
      %1034 = vst.msk [vmem:[#allocation3 + $0xb8] sm:$0xff] %vm1010, %v961
      %1035 = vst.msk [vmem:[#allocation3 + $0xc0] sm:$0xff] %vm1010, %v963
      %1036 = vst.msk [vmem:[#allocation3 + $0xc8] sm:$0xff] %vm1010, %v965
      %1037 = vst.msk [vmem:[#allocation3 + $0xd0] sm:$0xff] %vm1010, %v967
      %1038 = vst.msk [vmem:[#allocation3 + $0xd8] sm:$0xff] %vm1010, %v969
      %1039 = vst.msk [vmem:[#allocation3 + $0xe0] sm:$0xff] %vm1010, %v971
      %1040 = vst.msk [vmem:[#allocation3 + $0xe8] sm:$0xff] %vm1010, %v973
      %1041 = vst.msk [vmem:[#allocation3 + $0xf0] sm:$0xff] %vm1010, %v975
      %1042 = vst.msk [vmem:[#allocation3 + $0xf8] sm:$0xff] %vm1010, %v977
      %v1043 = vld [vmem:[%s367 + $0x1] sm:$0xff]
      %v1044 = vld [vmem:[%s367 + $0x9] sm:$0xff]
      %v1045 = vld [vmem:[%s367 + $0x19] sm:$0xff]
      %v1046 = vld [vmem:[%s367 + $0x21] sm:$0xff]
      %v1047 = vld [vmem:[%s367 + $0x31] sm:$0xff]
      %v1048 = vld [vmem:[%s367 + $0x39] sm:$0xff]
      %v1049 = vld [vmem:[%s367 + $0x49] sm:$0xff]
      %v1050 = vld [vmem:[%s367 + $0x51] sm:$0xff]
      %v1051 = vld [vmem:[%s367 + $0x61] sm:$0xff]
      %v1052 = vld [vmem:[%s367 + $0x69] sm:$0xff]
      %v1053 = vld [vmem:[%s367 + $0x79] sm:$0xff]
      %v1054 = vld [vmem:[%s367 + $0x81] sm:$0xff]
      %v1055 = vld [vmem:[%s367 + $0x91] sm:$0xff]
      %v1056 = vld [vmem:[%s367 + $0x99] sm:$0xff]
      %v1057 = vld [vmem:[%s367 + $0xa9] sm:$0xff]
      %v1058 = vld [vmem:[%s367 + $0xb1] sm:$0xff]
      %v1059 = vld [vmem:[%s367 + $0xc1] sm:$0xff]
      %v1060 = vld [vmem:[%s367 + $0xc9] sm:$0xff]
      %v1061 = vld [vmem:[%s367 + $0xd9] sm:$0xff]
      %v1062 = vld [vmem:[%s367 + $0xe1] sm:$0xff]
      %v1063 = vld [vmem:[%s367 + $0xf1] sm:$0xff]
      %v1064 = vld [vmem:[%s367 + $0xf9] sm:$0xff]
      %v1065 = vld [vmem:[%s367 + $0x109] sm:$0xff]
      %v1066 = vld [vmem:[%s367 + $0x111] sm:$0xff]
      %v1067 = vld [vmem:[%s367 + $0x121] sm:$0xff]
      %v1068 = vld [vmem:[%s367 + $0x129] sm:$0xff]
      %v1069 = vld [vmem:[%s367 + $0x139] sm:$0xff]
      %v1070 = vld [vmem:[%s367 + $0x141] sm:$0xff]
      %v1071 = vld [vmem:[%s367 + $0x151] sm:$0xff]
      %v1072 = vld [vmem:[%s367 + $0x159] sm:$0xff]
      %v1073 = vld [vmem:[%s367 + $0x169] sm:$0xff]
      %v1074 = vld [vmem:[%s367 + $0x171] sm:$0xff]
      %1107 = vrot.lane.b32.xlu0 %v1043, 12
      %v1108 = vpop.permute.xlu0 %1107
      %1109 = vrot.lane.b32.xlu0 %v1044, 12
      %v1110 = vpop.permute.xlu0 %1109
      %1111 = vrot.lane.b32.xlu0 %v1045, 12
      %v1112 = vpop.permute.xlu0 %1111
      %1113 = vrot.lane.b32.xlu0 %v1046, 12
      %v1114 = vpop.permute.xlu0 %1113
      %1115 = vrot.lane.b32.xlu0 %v1047, 12
      %v1116 = vpop.permute.xlu0 %1115
      %1117 = vrot.lane.b32.xlu0 %v1048, 12
      %v1118 = vpop.permute.xlu0 %1117
      %1119 = vrot.lane.b32.xlu0 %v1049, 12
      %v1120 = vpop.permute.xlu0 %1119
      %1121 = vrot.lane.b32.xlu0 %v1050, 12
      %v1122 = vpop.permute.xlu0 %1121
      %1123 = vrot.lane.b32.xlu0 %v1051, 12
      %v1124 = vpop.permute.xlu0 %1123
      %1125 = vrot.lane.b32.xlu0 %v1052, 12
      %v1126 = vpop.permute.xlu0 %1125
      %1127 = vrot.lane.b32.xlu0 %v1053, 12
      %v1128 = vpop.permute.xlu0 %1127
      %1129 = vrot.lane.b32.xlu0 %v1054, 12
      %v1130 = vpop.permute.xlu0 %1129
      %1131 = vrot.lane.b32.xlu0 %v1055, 12
      %v1132 = vpop.permute.xlu0 %1131
      %1133 = vrot.lane.b32.xlu0 %v1056, 12
      %v1134 = vpop.permute.xlu0 %1133
      %1135 = vrot.lane.b32.xlu0 %v1057, 12
      %v1136 = vpop.permute.xlu0 %1135
      %1137 = vrot.lane.b32.xlu0 %v1058, 12
      %v1138 = vpop.permute.xlu0 %1137
      %1139 = vrot.lane.b32.xlu0 %v1059, 12
      %v1140 = vpop.permute.xlu0 %1139
      %1141 = vrot.lane.b32.xlu0 %v1060, 12
      %v1142 = vpop.permute.xlu0 %1141
      %1143 = vrot.lane.b32.xlu0 %v1061, 12
      %v1144 = vpop.permute.xlu0 %1143
      %1145 = vrot.lane.b32.xlu0 %v1062, 12
      %v1146 = vpop.permute.xlu0 %1145
      %1147 = vrot.lane.b32.xlu0 %v1063, 12
      %v1148 = vpop.permute.xlu0 %1147
      %1149 = vrot.lane.b32.xlu0 %v1064, 12
      %v1150 = vpop.permute.xlu0 %1149
      %1151 = vrot.lane.b32.xlu0 %v1065, 12
      %v1152 = vpop.permute.xlu0 %1151
      %1153 = vrot.lane.b32.xlu0 %v1066, 12
      %v1154 = vpop.permute.xlu0 %1153
      %1155 = vrot.lane.b32.xlu0 %v1067, 12
      %v1156 = vpop.permute.xlu0 %1155
      %1157 = vrot.lane.b32.xlu0 %v1068, 12
      %v1158 = vpop.permute.xlu0 %1157
      %1159 = vrot.lane.b32.xlu0 %v1069, 12
      %v1160 = vpop.permute.xlu0 %1159
      %1161 = vrot.lane.b32.xlu0 %v1070, 12
      %v1162 = vpop.permute.xlu0 %1161
      %1163 = vrot.lane.b32.xlu0 %v1071, 12
      %v1164 = vpop.permute.xlu0 %1163
      %1165 = vrot.lane.b32.xlu0 %v1072, 12
      %v1166 = vpop.permute.xlu0 %1165
      %1167 = vrot.lane.b32.xlu0 %v1073, 12
      %v1168 = vpop.permute.xlu0 %1167
      %1169 = vrot.lane.b32.xlu0 %v1074, 12
      %v1170 = vpop.permute.xlu0 %1169
      %vm1203 = vcmask 121952
      %1204 = vst.msk [vmem:[#allocation3] sm:$0xff] %vm1203, %v1108
      %1205 = vst.msk [vmem:[#allocation3 + $0x8] sm:$0xff] %vm1203, %v1110
      %1206 = vst.msk [vmem:[#allocation3 + $0x10] sm:$0xff] %vm1203, %v1112
      %1207 = vst.msk [vmem:[#allocation3 + $0x18] sm:$0xff] %vm1203, %v1114
      %1208 = vst.msk [vmem:[#allocation3 + $0x20] sm:$0xff] %vm1203, %v1116
      %1209 = vst.msk [vmem:[#allocation3 + $0x28] sm:$0xff] %vm1203, %v1118
      %1210 = vst.msk [vmem:[#allocation3 + $0x30] sm:$0xff] %vm1203, %v1120
      %1211 = vst.msk [vmem:[#allocation3 + $0x38] sm:$0xff] %vm1203, %v1122
      %1212 = vst.msk [vmem:[#allocation3 + $0x40] sm:$0xff] %vm1203, %v1124
      %1213 = vst.msk [vmem:[#allocation3 + $0x48] sm:$0xff] %vm1203, %v1126
      %1214 = vst.msk [vmem:[#allocation3 + $0x50] sm:$0xff] %vm1203, %v1128
      %1215 = vst.msk [vmem:[#allocation3 + $0x58] sm:$0xff] %vm1203, %v1130
      %1216 = vst.msk [vmem:[#allocation3 + $0x60] sm:$0xff] %vm1203, %v1132
      %1217 = vst.msk [vmem:[#allocation3 + $0x68] sm:$0xff] %vm1203, %v1134
      %1218 = vst.msk [vmem:[#allocation3 + $0x70] sm:$0xff] %vm1203, %v1136
      %1219 = vst.msk [vmem:[#allocation3 + $0x78] sm:$0xff] %vm1203, %v1138
      %1220 = vst.msk [vmem:[#allocation3 + $0x80] sm:$0xff] %vm1203, %v1140
      %1221 = vst.msk [vmem:[#allocation3 + $0x88] sm:$0xff] %vm1203, %v1142
      %1222 = vst.msk [vmem:[#allocation3 + $0x90] sm:$0xff] %vm1203, %v1144
      %1223 = vst.msk [vmem:[#allocation3 + $0x98] sm:$0xff] %vm1203, %v1146
      %1224 = vst.msk [vmem:[#allocation3 + $0xa0] sm:$0xff] %vm1203, %v1148
      %1225 = vst.msk [vmem:[#allocation3 + $0xa8] sm:$0xff] %vm1203, %v1150
      %1226 = vst.msk [vmem:[#allocation3 + $0xb0] sm:$0xff] %vm1203, %v1152
      %1227 = vst.msk [vmem:[#allocation3 + $0xb8] sm:$0xff] %vm1203, %v1154
      %1228 = vst.msk [vmem:[#allocation3 + $0xc0] sm:$0xff] %vm1203, %v1156
      %1229 = vst.msk [vmem:[#allocation3 + $0xc8] sm:$0xff] %vm1203, %v1158
      %1230 = vst.msk [vmem:[#allocation3 + $0xd0] sm:$0xff] %vm1203, %v1160
      %1231 = vst.msk [vmem:[#allocation3 + $0xd8] sm:$0xff] %vm1203, %v1162
      %1232 = vst.msk [vmem:[#allocation3 + $0xe0] sm:$0xff] %vm1203, %v1164
      %1233 = vst.msk [vmem:[#allocation3 + $0xe8] sm:$0xff] %vm1203, %v1166
      %1234 = vst.msk [vmem:[#allocation3 + $0xf0] sm:$0xff] %vm1203, %v1168
      %1235 = vst.msk [vmem:[#allocation3 + $0xf8] sm:$0xff] %vm1203, %v1170
      %v1236 = vld [vmem:[%s367 + $0x2] sm:$0xff]
      %v1237 = vld [vmem:[%s367 + $0xa] sm:$0xff]
      %v1238 = vld [vmem:[%s367 + $0x1a] sm:$0xff]
      %v1239 = vld [vmem:[%s367 + $0x22] sm:$0xff]
      %v1240 = vld [vmem:[%s367 + $0x32] sm:$0xff]
      %v1241 = vld [vmem:[%s367 + $0x3a] sm:$0xff]
      %v1242 = vld [vmem:[%s367 + $0x4a] sm:$0xff]
      %v1243 = vld [vmem:[%s367 + $0x52] sm:$0xff]
      %v1244 = vld [vmem:[%s367 + $0x62] sm:$0xff]
      %v1245 = vld [vmem:[%s367 + $0x6a] sm:$0xff]
      %v1246 = vld [vmem:[%s367 + $0x7a] sm:$0xff]
      %v1247 = vld [vmem:[%s367 + $0x82] sm:$0xff]
      %v1248 = vld [vmem:[%s367 + $0x92] sm:$0xff]
      %v1249 = vld [vmem:[%s367 + $0x9a] sm:$0xff]
      %v1250 = vld [vmem:[%s367 + $0xaa] sm:$0xff]
      %v1251 = vld [vmem:[%s367 + $0xb2] sm:$0xff]
      %v1252 = vld [vmem:[%s367 + $0xc2] sm:$0xff]
      %v1253 = vld [vmem:[%s367 + $0xca] sm:$0xff]
      %v1254 = vld [vmem:[%s367 + $0xda] sm:$0xff]
      %v1255 = vld [vmem:[%s367 + $0xe2] sm:$0xff]
      %v1256 = vld [vmem:[%s367 + $0xf2] sm:$0xff]
      %v1257 = vld [vmem:[%s367 + $0xfa] sm:$0xff]
      %v1258 = vld [vmem:[%s367 + $0x10a] sm:$0xff]
      %v1259 = vld [vmem:[%s367 + $0x112] sm:$0xff]
      %v1260 = vld [vmem:[%s367 + $0x122] sm:$0xff]
      %v1261 = vld [vmem:[%s367 + $0x12a] sm:$0xff]
      %v1262 = vld [vmem:[%s367 + $0x13a] sm:$0xff]
      %v1263 = vld [vmem:[%s367 + $0x142] sm:$0xff]
      %v1264 = vld [vmem:[%s367 + $0x152] sm:$0xff]
      %v1265 = vld [vmem:[%s367 + $0x15a] sm:$0xff]
      %v1266 = vld [vmem:[%s367 + $0x16a] sm:$0xff]
      %v1267 = vld [vmem:[%s367 + $0x172] sm:$0xff]
      %1300 = vrot.lane.b32.xlu0 %v1236, 15
      %v1301 = vpop.permute.xlu0 %1300
      %1302 = vrot.lane.b32.xlu0 %v1237, 15
      %v1303 = vpop.permute.xlu0 %1302
      %1304 = vrot.lane.b32.xlu0 %v1238, 15
      %v1305 = vpop.permute.xlu0 %1304
      %1306 = vrot.lane.b32.xlu0 %v1239, 15
      %v1307 = vpop.permute.xlu0 %1306
      %1308 = vrot.lane.b32.xlu0 %v1240, 15
      %v1309 = vpop.permute.xlu0 %1308
      %1310 = vrot.lane.b32.xlu0 %v1241, 15
      %v1311 = vpop.permute.xlu0 %1310
      %1312 = vrot.lane.b32.xlu0 %v1242, 15
      %v1313 = vpop.permute.xlu0 %1312
      %1314 = vrot.lane.b32.xlu0 %v1243, 15
      %v1315 = vpop.permute.xlu0 %1314
      %1316 = vrot.lane.b32.xlu0 %v1244, 15
      %v1317 = vpop.permute.xlu0 %1316
      %1318 = vrot.lane.b32.xlu0 %v1245, 15
      %v1319 = vpop.permute.xlu0 %1318
      %1320 = vrot.lane.b32.xlu0 %v1246, 15
      %v1321 = vpop.permute.xlu0 %1320
      %1322 = vrot.lane.b32.xlu0 %v1247, 15
      %v1323 = vpop.permute.xlu0 %1322
      %1324 = vrot.lane.b32.xlu0 %v1248, 15
      %v1325 = vpop.permute.xlu0 %1324
      %1326 = vrot.lane.b32.xlu0 %v1249, 15
      %v1327 = vpop.permute.xlu0 %1326
      %1328 = vrot.lane.b32.xlu0 %v1250, 15
      %v1329 = vpop.permute.xlu0 %1328
      %1330 = vrot.lane.b32.xlu0 %v1251, 15
      %v1331 = vpop.permute.xlu0 %1330
      %1332 = vrot.lane.b32.xlu0 %v1252, 15
      %v1333 = vpop.permute.xlu0 %1332
      %1334 = vrot.lane.b32.xlu0 %v1253, 15
      %v1335 = vpop.permute.xlu0 %1334
      %1336 = vrot.lane.b32.xlu0 %v1254, 15
      %v1337 = vpop.permute.xlu0 %1336
      %1338 = vrot.lane.b32.xlu0 %v1255, 15
      %v1339 = vpop.permute.xlu0 %1338
      %1340 = vrot.lane.b32.xlu0 %v1256, 15
      %v1341 = vpop.permute.xlu0 %1340
      %1342 = vrot.lane.b32.xlu0 %v1257, 15
      %v1343 = vpop.permute.xlu0 %1342
      %1344 = vrot.lane.b32.xlu0 %v1258, 15
      %v1345 = vpop.permute.xlu0 %1344
      %1346 = vrot.lane.b32.xlu0 %v1259, 15
      %v1347 = vpop.permute.xlu0 %1346
      %1348 = vrot.lane.b32.xlu0 %v1260, 15
      %v1349 = vpop.permute.xlu0 %1348
      %1350 = vrot.lane.b32.xlu0 %v1261, 15
      %v1351 = vpop.permute.xlu0 %1350
      %1352 = vrot.lane.b32.xlu0 %v1262, 15
      %v1353 = vpop.permute.xlu0 %1352
      %1354 = vrot.lane.b32.xlu0 %v1263, 15
      %v1355 = vpop.permute.xlu0 %1354
      %1356 = vrot.lane.b32.xlu0 %v1264, 15
      %v1357 = vpop.permute.xlu0 %1356
      %1358 = vrot.lane.b32.xlu0 %v1265, 15
      %v1359 = vpop.permute.xlu0 %1358
      %1360 = vrot.lane.b32.xlu0 %v1266, 15
      %v1361 = vpop.permute.xlu0 %1360
      %1362 = vrot.lane.b32.xlu0 %v1267, 15
      %v1363 = vpop.permute.xlu0 %1362
      %vm1396 = vcmask 146552
      %1397 = vst.msk [vmem:[#allocation3] sm:$0xff] %vm1396, %v1301
      %1398 = vst.msk [vmem:[#allocation3 + $0x8] sm:$0xff] %vm1396, %v1303
      %1399 = vst.msk [vmem:[#allocation3 + $0x10] sm:$0xff] %vm1396, %v1305
      %1400 = vst.msk [vmem:[#allocation3 + $0x18] sm:$0xff] %vm1396, %v1307
      %1401 = vst.msk [vmem:[#allocation3 + $0x20] sm:$0xff] %vm1396, %v1309
      %1402 = vst.msk [vmem:[#allocation3 + $0x28] sm:$0xff] %vm1396, %v1311
      %1403 = vst.msk [vmem:[#allocation3 + $0x30] sm:$0xff] %vm1396, %v1313
      %1404 = vst.msk [vmem:[#allocation3 + $0x38] sm:$0xff] %vm1396, %v1315
      %1405 = vst.msk [vmem:[#allocation3 + $0x40] sm:$0xff] %vm1396, %v1317
      %1406 = vst.msk [vmem:[#allocation3 + $0x48] sm:$0xff] %vm1396, %v1319
      %1407 = vst.msk [vmem:[#allocation3 + $0x50] sm:$0xff] %vm1396, %v1321
      %1408 = vst.msk [vmem:[#allocation3 + $0x58] sm:$0xff] %vm1396, %v1323
      %1409 = vst.msk [vmem:[#allocation3 + $0x60] sm:$0xff] %vm1396, %v1325
      %1410 = vst.msk [vmem:[#allocation3 + $0x68] sm:$0xff] %vm1396, %v1327
      %1411 = vst.msk [vmem:[#allocation3 + $0x70] sm:$0xff] %vm1396, %v1329
      %1412 = vst.msk [vmem:[#allocation3 + $0x78] sm:$0xff] %vm1396, %v1331
      %1413 = vst.msk [vmem:[#allocation3 + $0x80] sm:$0xff] %vm1396, %v1333
      %1414 = vst.msk [vmem:[#allocation3 + $0x88] sm:$0xff] %vm1396, %v1335
      %1415 = vst.msk [vmem:[#allocation3 + $0x90] sm:$0xff] %vm1396, %v1337
      %1416 = vst.msk [vmem:[#allocation3 + $0x98] sm:$0xff] %vm1396, %v1339
      %1417 = vst.msk [vmem:[#allocation3 + $0xa0] sm:$0xff] %vm1396, %v1341
      %1418 = vst.msk [vmem:[#allocation3 + $0xa8] sm:$0xff] %vm1396, %v1343
      %1419 = vst.msk [vmem:[#allocation3 + $0xb0] sm:$0xff] %vm1396, %v1345
      %1420 = vst.msk [vmem:[#allocation3 + $0xb8] sm:$0xff] %vm1396, %v1347
      %1421 = vst.msk [vmem:[#allocation3 + $0xc0] sm:$0xff] %vm1396, %v1349
      %1422 = vst.msk [vmem:[#allocation3 + $0xc8] sm:$0xff] %vm1396, %v1351
      %1423 = vst.msk [vmem:[#allocation3 + $0xd0] sm:$0xff] %vm1396, %v1353
      %1424 = vst.msk [vmem:[#allocation3 + $0xd8] sm:$0xff] %vm1396, %v1355
      %1425 = vst.msk [vmem:[#allocation3 + $0xe0] sm:$0xff] %vm1396, %v1357
      %1426 = vst.msk [vmem:[#allocation3 + $0xe8] sm:$0xff] %vm1396, %v1359
      %1427 = vst.msk [vmem:[#allocation3 + $0xf0] sm:$0xff] %vm1396, %v1361
      %1428 = vst.msk [vmem:[#allocation3 + $0xf8] sm:$0xff] %vm1396, %v1363
      %s1429 = scalar_lea.vmem [#allocation2], 48
      %v1430 = vld [vmem:[%s1429] sm:$0xff]
      %v1431 = vld [vmem:[%s1429 + $0x8] sm:$0xff]
      %v1432 = vld [vmem:[%s1429 + $0x18] sm:$0xff]
      %v1433 = vld [vmem:[%s1429 + $0x20] sm:$0xff]
      %v1434 = vld [vmem:[%s1429 + $0x30] sm:$0xff]
      %v1435 = vld [vmem:[%s1429 + $0x38] sm:$0xff]
      %v1436 = vld [vmem:[%s1429 + $0x48] sm:$0xff]
      %v1437 = vld [vmem:[%s1429 + $0x50] sm:$0xff]
      %v1438 = vld [vmem:[%s1429 + $0x60] sm:$0xff]
      %v1439 = vld [vmem:[%s1429 + $0x68] sm:$0xff]
      %v1440 = vld [vmem:[%s1429 + $0x78] sm:$0xff]
      %v1441 = vld [vmem:[%s1429 + $0x80] sm:$0xff]
      %v1442 = vld [vmem:[%s1429 + $0x90] sm:$0xff]
      %v1443 = vld [vmem:[%s1429 + $0x98] sm:$0xff]
      %v1444 = vld [vmem:[%s1429 + $0xa8] sm:$0xff]
      %v1445 = vld [vmem:[%s1429 + $0xb0] sm:$0xff]
      %v1446 = vld [vmem:[%s1429 + $0xc0] sm:$0xff]
      %v1447 = vld [vmem:[%s1429 + $0xc8] sm:$0xff]
      %v1448 = vld [vmem:[%s1429 + $0xd8] sm:$0xff]
      %v1449 = vld [vmem:[%s1429 + $0xe0] sm:$0xff]
      %v1450 = vld [vmem:[%s1429 + $0xf0] sm:$0xff]
      %v1451 = vld [vmem:[%s1429 + $0xf8] sm:$0xff]
      %v1452 = vld [vmem:[%s1429 + $0x108] sm:$0xff]
      %v1453 = vld [vmem:[%s1429 + $0x110] sm:$0xff]
      %v1454 = vld [vmem:[%s1429 + $0x120] sm:$0xff]
      %v1455 = vld [vmem:[%s1429 + $0x128] sm:$0xff]
      %v1456 = vld [vmem:[%s1429 + $0x138] sm:$0xff]
      %v1457 = vld [vmem:[%s1429 + $0x140] sm:$0xff]
      %v1458 = vld [vmem:[%s1429 + $0x150] sm:$0xff]
      %v1459 = vld [vmem:[%s1429 + $0x158] sm:$0xff]
      %v1460 = vld [vmem:[%s1429 + $0x168] sm:$0xff]
      %v1461 = vld [vmem:[%s1429 + $0x170] sm:$0xff]
      %1494 = vrot.lane.b32.xlu0 %v1430, 18
      %v1495 = vpop.permute.xlu0 %1494
      %1496 = vrot.lane.b32.xlu0 %v1431, 18
      %v1497 = vpop.permute.xlu0 %1496
      %1498 = vrot.lane.b32.xlu0 %v1432, 18
      %v1499 = vpop.permute.xlu0 %1498
      %1500 = vrot.lane.b32.xlu0 %v1433, 18
      %v1501 = vpop.permute.xlu0 %1500
      %1502 = vrot.lane.b32.xlu0 %v1434, 18
      %v1503 = vpop.permute.xlu0 %1502
      %1504 = vrot.lane.b32.xlu0 %v1435, 18
      %v1505 = vpop.permute.xlu0 %1504
      %1506 = vrot.lane.b32.xlu0 %v1436, 18
      %v1507 = vpop.permute.xlu0 %1506
      %1508 = vrot.lane.b32.xlu0 %v1437, 18
      %v1509 = vpop.permute.xlu0 %1508
      %1510 = vrot.lane.b32.xlu0 %v1438, 18
      %v1511 = vpop.permute.xlu0 %1510
      %1512 = vrot.lane.b32.xlu0 %v1439, 18
      %v1513 = vpop.permute.xlu0 %1512
      %1514 = vrot.lane.b32.xlu0 %v1440, 18
      %v1515 = vpop.permute.xlu0 %1514
      %1516 = vrot.lane.b32.xlu0 %v1441, 18
      %v1517 = vpop.permute.xlu0 %1516
      %1518 = vrot.lane.b32.xlu0 %v1442, 18
      %v1519 = vpop.permute.xlu0 %1518
      %1520 = vrot.lane.b32.xlu0 %v1443, 18
      %v1521 = vpop.permute.xlu0 %1520
      %1522 = vrot.lane.b32.xlu0 %v1444, 18
      %v1523 = vpop.permute.xlu0 %1522
      %1524 = vrot.lane.b32.xlu0 %v1445, 18
      %v1525 = vpop.permute.xlu0 %1524
      %1526 = vrot.lane.b32.xlu0 %v1446, 18
      %v1527 = vpop.permute.xlu0 %1526
      %1528 = vrot.lane.b32.xlu0 %v1447, 18
      %v1529 = vpop.permute.xlu0 %1528
      %1530 = vrot.lane.b32.xlu0 %v1448, 18
      %v1531 = vpop.permute.xlu0 %1530
      %1532 = vrot.lane.b32.xlu0 %v1449, 18
      %v1533 = vpop.permute.xlu0 %1532
      %1534 = vrot.lane.b32.xlu0 %v1450, 18
      %v1535 = vpop.permute.xlu0 %1534
      %1536 = vrot.lane.b32.xlu0 %v1451, 18
      %v1537 = vpop.permute.xlu0 %1536
      %1538 = vrot.lane.b32.xlu0 %v1452, 18
      %v1539 = vpop.permute.xlu0 %1538
      %1540 = vrot.lane.b32.xlu0 %v1453, 18
      %v1541 = vpop.permute.xlu0 %1540
      %1542 = vrot.lane.b32.xlu0 %v1454, 18
      %v1543 = vpop.permute.xlu0 %1542
      %1544 = vrot.lane.b32.xlu0 %v1455, 18
      %v1545 = vpop.permute.xlu0 %1544
      %1546 = vrot.lane.b32.xlu0 %v1456, 18
      %v1547 = vpop.permute.xlu0 %1546
      %1548 = vrot.lane.b32.xlu0 %v1457, 18
      %v1549 = vpop.permute.xlu0 %1548
      %1550 = vrot.lane.b32.xlu0 %v1458, 18
      %v1551 = vpop.permute.xlu0 %1550
      %1552 = vrot.lane.b32.xlu0 %v1459, 18
      %v1553 = vpop.permute.xlu0 %1552
      %1554 = vrot.lane.b32.xlu0 %v1460, 18
      %v1555 = vpop.permute.xlu0 %1554
      %1556 = vrot.lane.b32.xlu0 %v1461, 18
      %v1557 = vpop.permute.xlu0 %1556
      %vm1590 = vcmask 171152
      %1591 = vst.msk [vmem:[#allocation3] sm:$0xff] %vm1590, %v1495
      %1592 = vst.msk [vmem:[#allocation3 + $0x8] sm:$0xff] %vm1590, %v1497
      %1593 = vst.msk [vmem:[#allocation3 + $0x10] sm:$0xff] %vm1590, %v1499
      %1594 = vst.msk [vmem:[#allocation3 + $0x18] sm:$0xff] %vm1590, %v1501
      %1595 = vst.msk [vmem:[#allocation3 + $0x20] sm:$0xff] %vm1590, %v1503
      %1596 = vst.msk [vmem:[#allocation3 + $0x28] sm:$0xff] %vm1590, %v1505
      %1597 = vst.msk [vmem:[#allocation3 + $0x30] sm:$0xff] %vm1590, %v1507
      %1598 = vst.msk [vmem:[#allocation3 + $0x38] sm:$0xff] %vm1590, %v1509
      %1599 = vst.msk [vmem:[#allocation3 + $0x40] sm:$0xff] %vm1590, %v1511
      %1600 = vst.msk [vmem:[#allocation3 + $0x48] sm:$0xff] %vm1590, %v1513
      %1601 = vst.msk [vmem:[#allocation3 + $0x50] sm:$0xff] %vm1590, %v1515
      %1602 = vst.msk [vmem:[#allocation3 + $0x58] sm:$0xff] %vm1590, %v1517
      %1603 = vst.msk [vmem:[#allocation3 + $0x60] sm:$0xff] %vm1590, %v1519
      %1604 = vst.msk [vmem:[#allocation3 + $0x68] sm:$0xff] %vm1590, %v1521
      %1605 = vst.msk [vmem:[#allocation3 + $0x70] sm:$0xff] %vm1590, %v1523
      %1606 = vst.msk [vmem:[#allocation3 + $0x78] sm:$0xff] %vm1590, %v1525
      %1607 = vst.msk [vmem:[#allocation3 + $0x80] sm:$0xff] %vm1590, %v1527
      %1608 = vst.msk [vmem:[#allocation3 + $0x88] sm:$0xff] %vm1590, %v1529
      %1609 = vst.msk [vmem:[#allocation3 + $0x90] sm:$0xff] %vm1590, %v1531
      %1610 = vst.msk [vmem:[#allocation3 + $0x98] sm:$0xff] %vm1590, %v1533
      %1611 = vst.msk [vmem:[#allocation3 + $0xa0] sm:$0xff] %vm1590, %v1535
      %1612 = vst.msk [vmem:[#allocation3 + $0xa8] sm:$0xff] %vm1590, %v1537
      %1613 = vst.msk [vmem:[#allocation3 + $0xb0] sm:$0xff] %vm1590, %v1539
      %1614 = vst.msk [vmem:[#allocation3 + $0xb8] sm:$0xff] %vm1590, %v1541
      %1615 = vst.msk [vmem:[#allocation3 + $0xc0] sm:$0xff] %vm1590, %v1543
      %1616 = vst.msk [vmem:[#allocation3 + $0xc8] sm:$0xff] %vm1590, %v1545
      %1617 = vst.msk [vmem:[#allocation3 + $0xd0] sm:$0xff] %vm1590, %v1547
      %1618 = vst.msk [vmem:[#allocation3 + $0xd8] sm:$0xff] %vm1590, %v1549
      %1619 = vst.msk [vmem:[#allocation3 + $0xe0] sm:$0xff] %vm1590, %v1551
      %1620 = vst.msk [vmem:[#allocation3 + $0xe8] sm:$0xff] %vm1590, %v1553
      %1621 = vst.msk [vmem:[#allocation3 + $0xf0] sm:$0xff] %vm1590, %v1555
      %1622 = vst.msk [vmem:[#allocation3 + $0xf8] sm:$0xff] %vm1590, %v1557
      %v1623 = vld [vmem:[%s1429 + $0x1] sm:$0xff]
      %v1624 = vld [vmem:[%s1429 + $0x9] sm:$0xff]
      %v1625 = vld [vmem:[%s1429 + $0x19] sm:$0xff]
      %v1626 = vld [vmem:[%s1429 + $0x21] sm:$0xff]
      %v1627 = vld [vmem:[%s1429 + $0x31] sm:$0xff]
      %v1628 = vld [vmem:[%s1429 + $0x39] sm:$0xff]
      %v1629 = vld [vmem:[%s1429 + $0x49] sm:$0xff]
      %v1630 = vld [vmem:[%s1429 + $0x51] sm:$0xff]
      %v1631 = vld [vmem:[%s1429 + $0x61] sm:$0xff]
      %v1632 = vld [vmem:[%s1429 + $0x69] sm:$0xff]
      %v1633 = vld [vmem:[%s1429 + $0x79] sm:$0xff]
      %v1634 = vld [vmem:[%s1429 + $0x81] sm:$0xff]
      %v1635 = vld [vmem:[%s1429 + $0x91] sm:$0xff]
      %v1636 = vld [vmem:[%s1429 + $0x99] sm:$0xff]
      %v1637 = vld [vmem:[%s1429 + $0xa9] sm:$0xff]
      %v1638 = vld [vmem:[%s1429 + $0xb1] sm:$0xff]
      %v1639 = vld [vmem:[%s1429 + $0xc1] sm:$0xff]
      %v1640 = vld [vmem:[%s1429 + $0xc9] sm:$0xff]
      %v1641 = vld [vmem:[%s1429 + $0xd9] sm:$0xff]
      %v1642 = vld [vmem:[%s1429 + $0xe1] sm:$0xff]
      %v1643 = vld [vmem:[%s1429 + $0xf1] sm:$0xff]
      %v1644 = vld [vmem:[%s1429 + $0xf9] sm:$0xff]
      %v1645 = vld [vmem:[%s1429 + $0x109] sm:$0xff]
      %v1646 = vld [vmem:[%s1429 + $0x111] sm:$0xff]
      %v1647 = vld [vmem:[%s1429 + $0x121] sm:$0xff]
      %v1648 = vld [vmem:[%s1429 + $0x129] sm:$0xff]
      %v1649 = vld [vmem:[%s1429 + $0x139] sm:$0xff]
      %v1650 = vld [vmem:[%s1429 + $0x141] sm:$0xff]
      %v1651 = vld [vmem:[%s1429 + $0x151] sm:$0xff]
      %v1652 = vld [vmem:[%s1429 + $0x159] sm:$0xff]
      %v1653 = vld [vmem:[%s1429 + $0x169] sm:$0xff]
      %v1654 = vld [vmem:[%s1429 + $0x171] sm:$0xff]
      %1687 = vrot.lane.b32.xlu0 %v1623, 21
      %v1688 = vpop.permute.xlu0 %1687
      %1689 = vrot.lane.b32.xlu0 %v1624, 21
      %v1690 = vpop.permute.xlu0 %1689
      %1691 = vrot.lane.b32.xlu0 %v1625, 21
      %v1692 = vpop.permute.xlu0 %1691
      %1693 = vrot.lane.b32.xlu0 %v1626, 21
      %v1694 = vpop.permute.xlu0 %1693
      %1695 = vrot.lane.b32.xlu0 %v1627, 21
      %v1696 = vpop.permute.xlu0 %1695
      %1697 = vrot.lane.b32.xlu0 %v1628, 21
      %v1698 = vpop.permute.xlu0 %1697
      %1699 = vrot.lane.b32.xlu0 %v1629, 21
      %v1700 = vpop.permute.xlu0 %1699
      %1701 = vrot.lane.b32.xlu0 %v1630, 21
      %v1702 = vpop.permute.xlu0 %1701
      %1703 = vrot.lane.b32.xlu0 %v1631, 21
      %v1704 = vpop.permute.xlu0 %1703
      %1705 = vrot.lane.b32.xlu0 %v1632, 21
      %v1706 = vpop.permute.xlu0 %1705
      %1707 = vrot.lane.b32.xlu0 %v1633, 21
      %v1708 = vpop.permute.xlu0 %1707
      %1709 = vrot.lane.b32.xlu0 %v1634, 21
      %v1710 = vpop.permute.xlu0 %1709
      %1711 = vrot.lane.b32.xlu0 %v1635, 21
      %v1712 = vpop.permute.xlu0 %1711
      %1713 = vrot.lane.b32.xlu0 %v1636, 21
      %v1714 = vpop.permute.xlu0 %1713
      %1715 = vrot.lane.b32.xlu0 %v1637, 21
      %v1716 = vpop.permute.xlu0 %1715
      %1717 = vrot.lane.b32.xlu0 %v1638, 21
      %v1718 = vpop.permute.xlu0 %1717
      %1719 = vrot.lane.b32.xlu0 %v1639, 21
      %v1720 = vpop.permute.xlu0 %1719
      %1721 = vrot.lane.b32.xlu0 %v1640, 21
      %v1722 = vpop.permute.xlu0 %1721
      %1723 = vrot.lane.b32.xlu0 %v1641, 21
      %v1724 = vpop.permute.xlu0 %1723
      %1725 = vrot.lane.b32.xlu0 %v1642, 21
      %v1726 = vpop.permute.xlu0 %1725
      %1727 = vrot.lane.b32.xlu0 %v1643, 21
      %v1728 = vpop.permute.xlu0 %1727
      %1729 = vrot.lane.b32.xlu0 %v1644, 21
      %v1730 = vpop.permute.xlu0 %1729
      %1731 = vrot.lane.b32.xlu0 %v1645, 21
      %v1732 = vpop.permute.xlu0 %1731
      %1733 = vrot.lane.b32.xlu0 %v1646, 21
      %v1734 = vpop.permute.xlu0 %1733
      %1735 = vrot.lane.b32.xlu0 %v1647, 21
      %v1736 = vpop.permute.xlu0 %1735
      %1737 = vrot.lane.b32.xlu0 %v1648, 21
      %v1738 = vpop.permute.xlu0 %1737
      %1739 = vrot.lane.b32.xlu0 %v1649, 21
      %v1740 = vpop.permute.xlu0 %1739
      %1741 = vrot.lane.b32.xlu0 %v1650, 21
      %v1742 = vpop.permute.xlu0 %1741
      %1743 = vrot.lane.b32.xlu0 %v1651, 21
      %v1744 = vpop.permute.xlu0 %1743
      %1745 = vrot.lane.b32.xlu0 %v1652, 21
      %v1746 = vpop.permute.xlu0 %1745
      %1747 = vrot.lane.b32.xlu0 %v1653, 21
      %v1748 = vpop.permute.xlu0 %1747
      %1749 = vrot.lane.b32.xlu0 %v1654, 21
      %v1750 = vpop.permute.xlu0 %1749
      %vm1783 = vcmask 195752
      %1784 = vst.msk [vmem:[#allocation3] sm:$0xff] %vm1783, %v1688
      %1785 = vst.msk [vmem:[#allocation3 + $0x8] sm:$0xff] %vm1783, %v1690
      %1786 = vst.msk [vmem:[#allocation3 + $0x10] sm:$0xff] %vm1783, %v1692
      %1787 = vst.msk [vmem:[#allocation3 + $0x18] sm:$0xff] %vm1783, %v1694
      %1788 = vst.msk [vmem:[#allocation3 + $0x20] sm:$0xff] %vm1783, %v1696
      %1789 = vst.msk [vmem:[#allocation3 + $0x28] sm:$0xff] %vm1783, %v1698
      %1790 = vst.msk [vmem:[#allocation3 + $0x30] sm:$0xff] %vm1783, %v1700
      %1791 = vst.msk [vmem:[#allocation3 + $0x38] sm:$0xff] %vm1783, %v1702
      %1792 = vst.msk [vmem:[#allocation3 + $0x40] sm:$0xff] %vm1783, %v1704
      %1793 = vst.msk [vmem:[#allocation3 + $0x48] sm:$0xff] %vm1783, %v1706
      %1794 = vst.msk [vmem:[#allocation3 + $0x50] sm:$0xff] %vm1783, %v1708
      %1795 = vst.msk [vmem:[#allocation3 + $0x58] sm:$0xff] %vm1783, %v1710
      %1796 = vst.msk [vmem:[#allocation3 + $0x60] sm:$0xff] %vm1783, %v1712
      %1797 = vst.msk [vmem:[#allocation3 + $0x68] sm:$0xff] %vm1783, %v1714
      %1798 = vst.msk [vmem:[#allocation3 + $0x70] sm:$0xff] %vm1783, %v1716
      %1799 = vst.msk [vmem:[#allocation3 + $0x78] sm:$0xff] %vm1783, %v1718
      %1800 = vst.msk [vmem:[#allocation3 + $0x80] sm:$0xff] %vm1783, %v1720
      %1801 = vst.msk [vmem:[#allocation3 + $0x88] sm:$0xff] %vm1783, %v1722
      %1802 = vst.msk [vmem:[#allocation3 + $0x90] sm:$0xff] %vm1783, %v1724
      %1803 = vst.msk [vmem:[#allocation3 + $0x98] sm:$0xff] %vm1783, %v1726
      %1804 = vst.msk [vmem:[#allocation3 + $0xa0] sm:$0xff] %vm1783, %v1728
      %1805 = vst.msk [vmem:[#allocation3 + $0xa8] sm:$0xff] %vm1783, %v1730
      %1806 = vst.msk [vmem:[#allocation3 + $0xb0] sm:$0xff] %vm1783, %v1732
      %1807 = vst.msk [vmem:[#allocation3 + $0xb8] sm:$0xff] %vm1783, %v1734
      %1808 = vst.msk [vmem:[#allocation3 + $0xc0] sm:$0xff] %vm1783, %v1736
      %1809 = vst.msk [vmem:[#allocation3 + $0xc8] sm:$0xff] %vm1783, %v1738
      %1810 = vst.msk [vmem:[#allocation3 + $0xd0] sm:$0xff] %vm1783, %v1740
      %1811 = vst.msk [vmem:[#allocation3 + $0xd8] sm:$0xff] %vm1783, %v1742
      %1812 = vst.msk [vmem:[#allocation3 + $0xe0] sm:$0xff] %vm1783, %v1744
      %1813 = vst.msk [vmem:[#allocation3 + $0xe8] sm:$0xff] %vm1783, %v1746
      %1814 = vst.msk [vmem:[#allocation3 + $0xf0] sm:$0xff] %vm1783, %v1748
      %1815 = vst.msk [vmem:[#allocation3 + $0xf8] sm:$0xff] %vm1783, %v1750
      %v1816 = vld [vmem:[%s1429 + $0x2] sm:$0xff]
      %v1817 = vld [vmem:[%s1429 + $0xa] sm:$0xff]
      %v1818 = vld [vmem:[%s1429 + $0x1a] sm:$0xff]
      %v1819 = vld [vmem:[%s1429 + $0x22] sm:$0xff]
      %v1820 = vld [vmem:[%s1429 + $0x32] sm:$0xff]
      %v1821 = vld [vmem:[%s1429 + $0x3a] sm:$0xff]
      %v1822 = vld [vmem:[%s1429 + $0x4a] sm:$0xff]
      %v1823 = vld [vmem:[%s1429 + $0x52] sm:$0xff]
      %v1824 = vld [vmem:[%s1429 + $0x62] sm:$0xff]
      %v1825 = vld [vmem:[%s1429 + $0x6a] sm:$0xff]
      %v1826 = vld [vmem:[%s1429 + $0x7a] sm:$0xff]
      %v1827 = vld [vmem:[%s1429 + $0x82] sm:$0xff]
      %v1828 = vld [vmem:[%s1429 + $0x92] sm:$0xff]
      %v1829 = vld [vmem:[%s1429 + $0x9a] sm:$0xff]
      %v1830 = vld [vmem:[%s1429 + $0xaa] sm:$0xff]
      %v1831 = vld [vmem:[%s1429 + $0xb2] sm:$0xff]
      %v1832 = vld [vmem:[%s1429 + $0xc2] sm:$0xff]
      %v1833 = vld [vmem:[%s1429 + $0xca] sm:$0xff]
      %v1834 = vld [vmem:[%s1429 + $0xda] sm:$0xff]
      %v1835 = vld [vmem:[%s1429 + $0xe2] sm:$0xff]
      %v1836 = vld [vmem:[%s1429 + $0xf2] sm:$0xff]
      %v1837 = vld [vmem:[%s1429 + $0xfa] sm:$0xff]
      %v1838 = vld [vmem:[%s1429 + $0x10a] sm:$0xff]
      %v1839 = vld [vmem:[%s1429 + $0x112] sm:$0xff]
      %v1840 = vld [vmem:[%s1429 + $0x122] sm:$0xff]
      %v1841 = vld [vmem:[%s1429 + $0x12a] sm:$0xff]
      %v1842 = vld [vmem:[%s1429 + $0x13a] sm:$0xff]
      %v1843 = vld [vmem:[%s1429 + $0x142] sm:$0xff]
      %v1844 = vld [vmem:[%s1429 + $0x152] sm:$0xff]
      %v1845 = vld [vmem:[%s1429 + $0x15a] sm:$0xff]
      %v1846 = vld [vmem:[%s1429 + $0x16a] sm:$0xff]
      %v1847 = vld [vmem:[%s1429 + $0x172] sm:$0xff]
      %1880 = vrot.lane.b32.xlu0 %v1816, 24
      %v1881 = vpop.permute.xlu0 %1880
      %1882 = vrot.lane.b32.xlu0 %v1817, 24
      %v1883 = vpop.permute.xlu0 %1882
      %1884 = vrot.lane.b32.xlu0 %v1818, 24
      %v1885 = vpop.permute.xlu0 %1884
      %1886 = vrot.lane.b32.xlu0 %v1819, 24
      %v1887 = vpop.permute.xlu0 %1886
      %1888 = vrot.lane.b32.xlu0 %v1820, 24
      %v1889 = vpop.permute.xlu0 %1888
      %1890 = vrot.lane.b32.xlu0 %v1821, 24
      %v1891 = vpop.permute.xlu0 %1890
      %1892 = vrot.lane.b32.xlu0 %v1822, 24
      %v1893 = vpop.permute.xlu0 %1892
      %1894 = vrot.lane.b32.xlu0 %v1823, 24
      %v1895 = vpop.permute.xlu0 %1894
      %1896 = vrot.lane.b32.xlu0 %v1824, 24
      %v1897 = vpop.permute.xlu0 %1896
      %1898 = vrot.lane.b32.xlu0 %v1825, 24
      %v1899 = vpop.permute.xlu0 %1898
      %1900 = vrot.lane.b32.xlu0 %v1826, 24
      %v1901 = vpop.permute.xlu0 %1900
      %1902 = vrot.lane.b32.xlu0 %v1827, 24
      %v1903 = vpop.permute.xlu0 %1902
      %1904 = vrot.lane.b32.xlu0 %v1828, 24
      %v1905 = vpop.permute.xlu0 %1904
      %1906 = vrot.lane.b32.xlu0 %v1829, 24
      %v1907 = vpop.permute.xlu0 %1906
      %1908 = vrot.lane.b32.xlu0 %v1830, 24
      %v1909 = vpop.permute.xlu0 %1908
      %1910 = vrot.lane.b32.xlu0 %v1831, 24
      %v1911 = vpop.permute.xlu0 %1910
      %1912 = vrot.lane.b32.xlu0 %v1832, 24
      %v1913 = vpop.permute.xlu0 %1912
      %1914 = vrot.lane.b32.xlu0 %v1833, 24
      %v1915 = vpop.permute.xlu0 %1914
      %1916 = vrot.lane.b32.xlu0 %v1834, 24
      %v1917 = vpop.permute.xlu0 %1916
      %1918 = vrot.lane.b32.xlu0 %v1835, 24
      %v1919 = vpop.permute.xlu0 %1918
      %1920 = vrot.lane.b32.xlu0 %v1836, 24
      %v1921 = vpop.permute.xlu0 %1920
      %1922 = vrot.lane.b32.xlu0 %v1837, 24
      %v1923 = vpop.permute.xlu0 %1922
      %1924 = vrot.lane.b32.xlu0 %v1838, 24
      %v1925 = vpop.permute.xlu0 %1924
      %1926 = vrot.lane.b32.xlu0 %v1839, 24
      %v1927 = vpop.permute.xlu0 %1926
      %1928 = vrot.lane.b32.xlu0 %v1840, 24
      %v1929 = vpop.permute.xlu0 %1928
      %1930 = vrot.lane.b32.xlu0 %v1841, 24
      %v1931 = vpop.permute.xlu0 %1930
      %1932 = vrot.lane.b32.xlu0 %v1842, 24
      %v1933 = vpop.permute.xlu0 %1932
      %1934 = vrot.lane.b32.xlu0 %v1843, 24
      %v1935 = vpop.permute.xlu0 %1934
      %1936 = vrot.lane.b32.xlu0 %v1844, 24
      %v1937 = vpop.permute.xlu0 %1936
      %1938 = vrot.lane.b32.xlu0 %v1845, 24
      %v1939 = vpop.permute.xlu0 %1938
      %1940 = vrot.lane.b32.xlu0 %v1846, 24
      %v1941 = vpop.permute.xlu0 %1940
      %1942 = vrot.lane.b32.xlu0 %v1847, 24
      %v1943 = vpop.permute.xlu0 %1942
      %vm1976 = vcmask 220352
      %1977 = vst.msk [vmem:[#allocation3] sm:$0xff] %vm1976, %v1881
      %1978 = vst.msk [vmem:[#allocation3 + $0x8] sm:$0xff] %vm1976, %v1883
      %1979 = vst.msk [vmem:[#allocation3 + $0x10] sm:$0xff] %vm1976, %v1885
      %1980 = vst.msk [vmem:[#allocation3 + $0x18] sm:$0xff] %vm1976, %v1887
      %1981 = vst.msk [vmem:[#allocation3 + $0x20] sm:$0xff] %vm1976, %v1889
      %1982 = vst.msk [vmem:[#allocation3 + $0x28] sm:$0xff] %vm1976, %v1891
      %1983 = vst.msk [vmem:[#allocation3 + $0x30] sm:$0xff] %vm1976, %v1893
      %1984 = vst.msk [vmem:[#allocation3 + $0x38] sm:$0xff] %vm1976, %v1895
      %1985 = vst.msk [vmem:[#allocation3 + $0x40] sm:$0xff] %vm1976, %v1897
      %1986 = vst.msk [vmem:[#allocation3 + $0x48] sm:$0xff] %vm1976, %v1899
      %1987 = vst.msk [vmem:[#allocation3 + $0x50] sm:$0xff] %vm1976, %v1901
      %1988 = vst.msk [vmem:[#allocation3 + $0x58] sm:$0xff] %vm1976, %v1903
      %1989 = vst.msk [vmem:[#allocation3 + $0x60] sm:$0xff] %vm1976, %v1905
      %1990 = vst.msk [vmem:[#allocation3 + $0x68] sm:$0xff] %vm1976, %v1907
      %1991 = vst.msk [vmem:[#allocation3 + $0x70] sm:$0xff] %vm1976, %v1909
      %1992 = vst.msk [vmem:[#allocation3 + $0x78] sm:$0xff] %vm1976, %v1911
      %1993 = vst.msk [vmem:[#allocation3 + $0x80] sm:$0xff] %vm1976, %v1913
      %1994 = vst.msk [vmem:[#allocation3 + $0x88] sm:$0xff] %vm1976, %v1915
      %1995 = vst.msk [vmem:[#allocation3 + $0x90] sm:$0xff] %vm1976, %v1917
      %1996 = vst.msk [vmem:[#allocation3 + $0x98] sm:$0xff] %vm1976, %v1919
      %1997 = vst.msk [vmem:[#allocation3 + $0xa0] sm:$0xff] %vm1976, %v1921
      %1998 = vst.msk [vmem:[#allocation3 + $0xa8] sm:$0xff] %vm1976, %v1923
      %1999 = vst.msk [vmem:[#allocation3 + $0xb0] sm:$0xff] %vm1976, %v1925
      %2000 = vst.msk [vmem:[#allocation3 + $0xb8] sm:$0xff] %vm1976, %v1927
      %2001 = vst.msk [vmem:[#allocation3 + $0xc0] sm:$0xff] %vm1976, %v1929
      %2002 = vst.msk [vmem:[#allocation3 + $0xc8] sm:$0xff] %vm1976, %v1931
      %2003 = vst.msk [vmem:[#allocation3 + $0xd0] sm:$0xff] %vm1976, %v1933
      %2004 = vst.msk [vmem:[#allocation3 + $0xd8] sm:$0xff] %vm1976, %v1935
      %2005 = vst.msk [vmem:[#allocation3 + $0xe0] sm:$0xff] %vm1976, %v1937
      %2006 = vst.msk [vmem:[#allocation3 + $0xe8] sm:$0xff] %vm1976, %v1939
      %2007 = vst.msk [vmem:[#allocation3 + $0xf0] sm:$0xff] %vm1976, %v1941
      %2008 = vst.msk [vmem:[#allocation3 + $0xf8] sm:$0xff] %vm1976, %v1943
      %v2009 = vld [vmem:[#allocation3] sm:$0xff]
      %v2010 = vld [vmem:[#allocation3 + $0x8] sm:$0xff]
      %v2011 = vld [vmem:[#allocation3 + $0x10] sm:$0xff]
      %v2012 = vld [vmem:[#allocation3 + $0x18] sm:$0xff]
      %v2013 = vld [vmem:[#allocation3 + $0x20] sm:$0xff]
      %v2014 = vld [vmem:[#allocation3 + $0x28] sm:$0xff]
      %v2015 = vld [vmem:[#allocation3 + $0x30] sm:$0xff]
      %v2016 = vld [vmem:[#allocation3 + $0x38] sm:$0xff]
      %v2017 = vld [vmem:[#allocation3 + $0x40] sm:$0xff]
      %v2018 = vld [vmem:[#allocation3 + $0x48] sm:$0xff]
      %v2019 = vld [vmem:[#allocation3 + $0x50] sm:$0xff]
      %v2020 = vld [vmem:[#allocation3 + $0x58] sm:$0xff]
      %v2021 = vld [vmem:[#allocation3 + $0x60] sm:$0xff]
      %v2022 = vld [vmem:[#allocation3 + $0x68] sm:$0xff]
      %v2023 = vld [vmem:[#allocation3 + $0x70] sm:$0xff]
      %v2024 = vld [vmem:[#allocation3 + $0x78] sm:$0xff]
      %v2025 = vld [vmem:[#allocation3 + $0x80] sm:$0xff]
      %v2026 = vld [vmem:[#allocation3 + $0x88] sm:$0xff]
      %v2027 = vld [vmem:[#allocation3 + $0x90] sm:$0xff]
      %v2028 = vld [vmem:[#allocation3 + $0x98] sm:$0xff]
      %v2029 = vld [vmem:[#allocation3 + $0xa0] sm:$0xff]
      %v2030 = vld [vmem:[#allocation3 + $0xa8] sm:$0xff]
      %v2031 = vld [vmem:[#allocation3 + $0xb0] sm:$0xff]
      %v2032 = vld [vmem:[#allocation3 + $0xb8] sm:$0xff]
      %v2033 = vld [vmem:[#allocation3 + $0xc0] sm:$0xff]
      %v2034 = vld [vmem:[#allocation3 + $0xc8] sm:$0xff]
      %v2035 = vld [vmem:[#allocation3 + $0xd0] sm:$0xff]
      %v2036 = vld [vmem:[#allocation3 + $0xd8] sm:$0xff]
      %v2037 = vld [vmem:[#allocation3 + $0xe0] sm:$0xff]
      %v2038 = vld [vmem:[#allocation3 + $0xe8] sm:$0xff]
      %v2039 = vld [vmem:[#allocation3 + $0xf0] sm:$0xff]
      %v2040 = vld [vmem:[#allocation3 + $0xf8] sm:$0xff]
      %v2041 = vld [vmem:[%s1] sm:$0xff]
      %v2042 = vld [vmem:[%s1 + $0x8] sm:$0xff]
      %v2043 = vld [vmem:[%s1 + $0x10] sm:$0xff]
      %v2044 = vld [vmem:[%s1 + $0x18] sm:$0x7]
      %v2045 = vld [vmem:[%s2] sm:$0x1]
      %v2047 = vlaneseq
      %v2048 = vshrl.u32 %v2047, 7
      %v2049 = vsub.s32 0, %v2048
      %v2050 = vrot.slane %v2045, %v2049
      %vm2052 = vcmask 220160
      %v2054 = vsel %vm2052, %v2009, 0
      %v2057 = vsel %vm2052, %v2010, 0
      %v2060 = vsel %vm2052, %v2011, 0
      %v2063 = vsel %vm2052, %v2012, 0
      %v2066 = vsel %vm2052, %v2013, 0
      %v2069 = vsel %vm2052, %v2014, 0
      %v2072 = vsel %vm2052, %v2015, 0
      %v2075 = vsel %vm2052, %v2016, 0
      %v2078 = vsel %vm2052, %v2017, 0
      %v2081 = vsel %vm2052, %v2018, 0
      %v2084 = vsel %vm2052, %v2019, 0
      %v2087 = vsel %vm2052, %v2020, 0
      %v2090 = vsel %vm2052, %v2021, 0
      %v2093 = vsel %vm2052, %v2022, 0
      %v2096 = vsel %vm2052, %v2023, 0
      %v2099 = vsel %vm2052, %v2024, 0
      %v2102 = vsel %vm2052, %v2025, 0
      %v2105 = vsel %vm2052, %v2026, 0
      %v2108 = vsel %vm2052, %v2027, 0
      %v2111 = vsel %vm2052, %v2028, 0
      %v2114 = vsel %vm2052, %v2029, 0
      %v2117 = vsel %vm2052, %v2030, 0
      %v2120 = vsel %vm2052, %v2031, 0
      %v2123 = vsel %vm2052, %v2032, 0
      %v2126 = vsel %vm2052, %v2033, 0
      %v2129 = vsel %vm2052, %v2034, 0
      %v2132 = vsel %vm2052, %v2035, 0
      %v2135 = vsel %vm2052, %v2036, 0
      %v2138 = vsel %vm2052, %v2037, 0
      %v2141 = vsel %vm2052, %v2038, 0
      %v2144 = vsel %vm2052, %v2039, 0
      %v2147 = vsel %vm2052, %v2040, 0
      %vm2149 = vcmask 1042432
      %v2151 = vsel %vm2149, %v2044, 0
      %2153 = vmatprep.subr.mxu0 0.0
      %2154 = vmatpush1.msra.mxu0 %v2041
      %2155 = vmatprep.subr.mxu0 0.0
      %2156 = vmatpush1.msra.mxu0 %v2042
      %2157 = vmatprep.subr.mxu0 0.0
      %2158 = vmatpush1.msra.mxu0 %v2043
      %2159 = vmatprep.subr.mxu0 0.0
      %2160 = vmatpush1.msra.mxu0 %v2151
      %2161 = vmatprep.subr.mxu0 0.0
      %2162 = vmatpush1.msra.mxu0 0.0
      %2163 = vmatprep.subr.mxu0 0.0
      %2164 = vmatpush1.msra.mxu0 0.0
      %2165 = vmatprep.subr.mxu0 0.0
      %2166 = vmatpush1.msra.mxu0 0.0
      %2167 = vmatprep.subr.mxu0 0.0
      %2168 = vmatpush1.msra.mxu0 0.0
      %2169 = vmatprep.subr.mxu0 0.0
      %2170 = vmatpush1.msra.mxu0 0.0
      %2171 = vmatprep.subr.mxu0 0.0
      %2172 = vmatpush1.msra.mxu0 0.0
      %2173 = vmatprep.subr.mxu0 0.0
      %2174 = vmatpush1.msra.mxu0 0.0
      %2175 = vmatprep.subr.mxu0 0.0
      %2176 = vmatpush1.msra.mxu0 0.0
      %2177 = vmatprep.subr.mxu0 0.0
      %2178 = vmatpush1.msra.mxu0 0.0
      %2179 = vmatprep.subr.mxu0 0.0
      %2180 = vmatpush1.msra.mxu0 0.0
      %2181 = vmatprep.subr.mxu0 0.0
      %2182 = vmatpush1.msra.mxu0 0.0
      %2183 = vmatprep.subr.mxu0 0.0
      %2184 = vmatpush1.msra.mxu0 0.0
      %2185 = vmatprep.subr.mxu0 0.0
      %2186 = vmatpush1.msra.mxu0 0.0
      %2187 = vmatprep.subr.mxu0 0.0
      %2188 = vmatpush1.msra.mxu0 0.0
      %2189 = vmatprep.subr.mxu0 0.0
      %2190 = vmatpush1.msra.mxu0 0.0
      %2191 = vmatprep.subr.mxu0 0.0
      %2192 = vmatpush1.msra.mxu0 0.0
      %2193 = vmatprep.subr.mxu0 0.0
      %2194 = vmatpush1.msra.mxu0 0.0
      %2195 = vmatprep.subr.mxu0 0.0
      %2196 = vmatpush1.msra.mxu0 0.0
      %2197 = vmatprep.subr.mxu0 0.0
      %2198 = vmatpush1.msra.mxu0 0.0
      %2199 = vmatprep.subr.mxu0 0.0
      %2200 = vmatpush1.msra.mxu0 0.0
      %2201 = vmatprep.subr.mxu0 0.0
      %2202 = vmatpush1.msra.mxu0 0.0
      %2203 = vmatprep.subr.mxu0 0.0
      %2204 = vmatpush1.msra.mxu0 0.0
      %2205 = vmatprep.subr.mxu0 0.0
      %2206 = vmatpush1.msra.mxu0 0.0
      %2207 = vmatprep.subr.mxu0 0.0
      %2208 = vmatpush1.msra.mxu0 0.0
      %2209 = vmatprep.subr.mxu0 0.0
      %2210 = vmatpush1.msra.mxu0 0.0
      %2211 = vmatprep.subr.mxu0 0.0
      %2212 = vmatpush1.msra.mxu0 0.0
      %2213 = vmatprep.subr.mxu0 0.0
      %2214 = vmatpush1.msra.mxu0 0.0
      %2215 = vmatprep.subr.mxu0 0.0
      %2216 = vmatpush1.msra.mxu0 0.0
      %2217 = vmatprep.mubr.f32.mxu0 0.0
      %2218 = vmatmul.mubr.f32.gmra.mrb[0].mxu0 %v2054
      %v2219 = vpop.f32.mrb[0].mxu0
      %v2220 = vadd.f32 %v2050, %v2219
      %v2221 = vpop.f32.mrb[0].mxu0
      %2222 = vmatprep.mubr.f32.mxu0 0.0
      %2223 = vmatmul.mubr.f32.gmra.mrb[0].mxu0 %v2057
      %v2224 = vpop.f32.mrb[0].mxu0
      %v2225 = vadd.f32 %v2050, %v2224
      %v2226 = vpop.f32.mrb[0].mxu0
      %2227 = vmatprep.mubr.f32.mxu0 0.0
      %2228 = vmatmul.mubr.f32.gmra.mrb[0].mxu0 %v2060
      %v2229 = vpop.f32.mrb[0].mxu0
      %v2230 = vadd.f32 %v2050, %v2229
      %v2231 = vpop.f32.mrb[0].mxu0
      %2232 = vmatprep.mubr.f32.mxu0 0.0
      %2233 = vmatmul.mubr.f32.gmra.mrb[0].mxu0 %v2063
      %v2234 = vpop.f32.mrb[0].mxu0
      %v2235 = vadd.f32 %v2050, %v2234
      %v2236 = vpop.f32.mrb[0].mxu0
      %2237 = vmatprep.mubr.f32.mxu0 0.0
      %2238 = vmatmul.mubr.f32.gmra.mrb[0].mxu0 %v2066
      %v2239 = vpop.f32.mrb[0].mxu0
      %v2240 = vadd.f32 %v2050, %v2239
      %v2241 = vpop.f32.mrb[0].mxu0
      %2242 = vmatprep.mubr.f32.mxu0 0.0
      %2243 = vmatmul.mubr.f32.gmra.mrb[0].mxu0 %v2069
      %v2244 = vpop.f32.mrb[0].mxu0
      %v2245 = vadd.f32 %v2050, %v2244
      %v2246 = vpop.f32.mrb[0].mxu0
      %2247 = vmatprep.mubr.f32.mxu0 0.0
      %2248 = vmatmul.mubr.f32.gmra.mrb[0].mxu0 %v2072
      %v2249 = vpop.f32.mrb[0].mxu0
      %v2250 = vadd.f32 %v2050, %v2249
      %v2251 = vpop.f32.mrb[0].mxu0
      %2252 = vmatprep.mubr.f32.mxu0 0.0
      %2253 = vmatmul.mubr.f32.gmra.mrb[0].mxu0 %v2075
      %v2254 = vpop.f32.mrb[0].mxu0
      %v2255 = vadd.f32 %v2050, %v2254
      %v2256 = vpop.f32.mrb[0].mxu0
      %2257 = vmatprep.mubr.f32.mxu0 0.0
      %2258 = vmatmul.mubr.f32.gmra.mrb[0].mxu0 %v2078
      %v2259 = vpop.f32.mrb[0].mxu0
      %v2260 = vadd.f32 %v2050, %v2259
      %v2261 = vpop.f32.mrb[0].mxu0
      %2262 = vmatprep.mubr.f32.mxu0 0.0
      %2263 = vmatmul.mubr.f32.gmra.mrb[0].mxu0 %v2081
      %v2264 = vpop.f32.mrb[0].mxu0
      %v2265 = vadd.f32 %v2050, %v2264
      %v2266 = vpop.f32.mrb[0].mxu0
      %2267 = vmatprep.mubr.f32.mxu0 0.0
      %2268 = vmatmul.mubr.f32.gmra.mrb[0].mxu0 %v2084
      %v2269 = vpop.f32.mrb[0].mxu0
      %v2270 = vadd.f32 %v2050, %v2269
      %v2271 = vpop.f32.mrb[0].mxu0
      %2272 = vmatprep.mubr.f32.mxu0 0.0
      %2273 = vmatmul.mubr.f32.gmra.mrb[0].mxu0 %v2087
      %v2274 = vpop.f32.mrb[0].mxu0
      %v2275 = vadd.f32 %v2050, %v2274
      %v2276 = vpop.f32.mrb[0].mxu0
      %2277 = vmatprep.mubr.f32.mxu0 0.0
      %2278 = vmatmul.mubr.f32.gmra.mrb[0].mxu0 %v2090
      %v2279 = vpop.f32.mrb[0].mxu0
      %v2280 = vadd.f32 %v2050, %v2279
      %v2281 = vpop.f32.mrb[0].mxu0
      %2282 = vmatprep.mubr.f32.mxu0 0.0
      %2283 = vmatmul.mubr.f32.gmra.mrb[0].mxu0 %v2093
      %v2284 = vpop.f32.mrb[0].mxu0
      %v2285 = vadd.f32 %v2050, %v2284
      %v2286 = vpop.f32.mrb[0].mxu0
      %2287 = vmatprep.mubr.f32.mxu0 0.0
      %2288 = vmatmul.mubr.f32.gmra.mrb[0].mxu0 %v2096
      %v2289 = vpop.f32.mrb[0].mxu0
      %v2290 = vadd.f32 %v2050, %v2289
      %v2291 = vpop.f32.mrb[0].mxu0
      %2292 = vmatprep.mubr.f32.mxu0 0.0
      %2293 = vmatmul.mubr.f32.gmra.mrb[0].mxu0 %v2099
      %v2294 = vpop.f32.mrb[0].mxu0
      %v2295 = vadd.f32 %v2050, %v2294
      %v2296 = vpop.f32.mrb[0].mxu0
      %2297 = vmatprep.mubr.f32.mxu0 0.0
      %2298 = vmatmul.mubr.f32.gmra.mrb[0].mxu0 %v2102
      %v2299 = vpop.f32.mrb[0].mxu0
      %v2300 = vadd.f32 %v2050, %v2299
      %v2301 = vpop.f32.mrb[0].mxu0
      %2302 = vmatprep.mubr.f32.mxu0 0.0
      %2303 = vmatmul.mubr.f32.gmra.mrb[0].mxu0 %v2105
      %v2304 = vpop.f32.mrb[0].mxu0
      %v2305 = vadd.f32 %v2050, %v2304
      %v2306 = vpop.f32.mrb[0].mxu0
      %2307 = vmatprep.mubr.f32.mxu0 0.0
      %2308 = vmatmul.mubr.f32.gmra.mrb[0].mxu0 %v2108
      %v2309 = vpop.f32.mrb[0].mxu0
      %v2310 = vadd.f32 %v2050, %v2309
      %v2311 = vpop.f32.mrb[0].mxu0
      %2312 = vmatprep.mubr.f32.mxu0 0.0
      %2313 = vmatmul.mubr.f32.gmra.mrb[0].mxu0 %v2111
      %v2314 = vpop.f32.mrb[0].mxu0
      %v2315 = vadd.f32 %v2050, %v2314
      %v2316 = vpop.f32.mrb[0].mxu0
      %2317 = vmatprep.mubr.f32.mxu0 0.0
      %2318 = vmatmul.mubr.f32.gmra.mrb[0].mxu0 %v2114
      %v2319 = vpop.f32.mrb[0].mxu0
      %v2320 = vadd.f32 %v2050, %v2319
      %v2321 = vpop.f32.mrb[0].mxu0
      %2322 = vmatprep.mubr.f32.mxu0 0.0
      %2323 = vmatmul.mubr.f32.gmra.mrb[0].mxu0 %v2117
      %v2324 = vpop.f32.mrb[0].mxu0
      %v2325 = vadd.f32 %v2050, %v2324
      %v2326 = vpop.f32.mrb[0].mxu0
      %2327 = vmatprep.mubr.f32.mxu0 0.0
      %2328 = vmatmul.mubr.f32.gmra.mrb[0].mxu0 %v2120
      %v2329 = vpop.f32.mrb[0].mxu0
      %v2330 = vadd.f32 %v2050, %v2329
      %v2331 = vpop.f32.mrb[0].mxu0
      %2332 = vmatprep.mubr.f32.mxu0 0.0
      %2333 = vmatmul.mubr.f32.gmra.mrb[0].mxu0 %v2123
      %v2334 = vpop.f32.mrb[0].mxu0
      %v2335 = vadd.f32 %v2050, %v2334
      %v2336 = vpop.f32.mrb[0].mxu0
      %2337 = vmatprep.mubr.f32.mxu0 0.0
      %2338 = vmatmul.mubr.f32.gmra.mrb[0].mxu0 %v2126
      %v2339 = vpop.f32.mrb[0].mxu0
      %v2340 = vadd.f32 %v2050, %v2339
      %v2341 = vpop.f32.mrb[0].mxu0
      %2342 = vmatprep.mubr.f32.mxu0 0.0
      %2343 = vmatmul.mubr.f32.gmra.mrb[0].mxu0 %v2129
      %v2344 = vpop.f32.mrb[0].mxu0
      %v2345 = vadd.f32 %v2050, %v2344
      %v2346 = vpop.f32.mrb[0].mxu0
      %2347 = vmatprep.mubr.f32.mxu0 0.0
      %2348 = vmatmul.mubr.f32.gmra.mrb[0].mxu0 %v2132
      %v2349 = vpop.f32.mrb[0].mxu0
      %v2350 = vadd.f32 %v2050, %v2349
      %v2351 = vpop.f32.mrb[0].mxu0
      %2352 = vmatprep.mubr.f32.mxu0 0.0
      %2353 = vmatmul.mubr.f32.gmra.mrb[0].mxu0 %v2135
      %v2354 = vpop.f32.mrb[0].mxu0
      %v2355 = vadd.f32 %v2050, %v2354
      %v2356 = vpop.f32.mrb[0].mxu0
      %2357 = vmatprep.mubr.f32.mxu0 0.0
      %2358 = vmatmul.mubr.f32.gmra.mrb[0].mxu0 %v2138
      %v2359 = vpop.f32.mrb[0].mxu0
      %v2360 = vadd.f32 %v2050, %v2359
      %v2361 = vpop.f32.mrb[0].mxu0
      %2362 = vmatprep.mubr.f32.mxu0 0.0
      %2363 = vmatmul.mubr.f32.gmra.mrb[0].mxu0 %v2141
      %v2364 = vpop.f32.mrb[0].mxu0
      %v2365 = vadd.f32 %v2050, %v2364
      %v2366 = vpop.f32.mrb[0].mxu0
      %2367 = vmatprep.mubr.f32.mxu0 0.0
      %2368 = vmatmul.mubr.f32.gmra.mrb[0].mxu0 %v2144
      %v2369 = vpop.f32.mrb[0].mxu0
      %v2370 = vadd.f32 %v2050, %v2369
      %v2371 = vpop.f32.mrb[0].mxu0
      %2372 = vmatprep.mubr.f32.mxu0 0.0
      %2373 = vmatmul.mubr.f32.gmra.mrb[0].mxu0 %v2147
      %v2374 = vpop.f32.mrb[0].mxu0
      %v2375 = vadd.f32 %v2050, %v2374
      %v2376 = vpop.f32.mrb[0].mxu0
      %2377 = vdwg.mxu0
      %v2378 = vmax.f32 %v2220, 0.0
      %v2379 = vmax.f32 %v2225, 0.0
      %v2380 = vmax.f32 %v2230, 0.0
      %v2381 = vmax.f32 %v2235, 0.0
      %v2382 = vmax.f32 %v2240, 0.0
      %v2383 = vmax.f32 %v2245, 0.0
      %v2384 = vmax.f32 %v2250, 0.0
      %v2385 = vmax.f32 %v2255, 0.0
      %v2386 = vmax.f32 %v2260, 0.0
      %v2387 = vmax.f32 %v2265, 0.0
      %v2388 = vmax.f32 %v2270, 0.0
      %v2389 = vmax.f32 %v2275, 0.0
      %v2390 = vmax.f32 %v2280, 0.0
      %v2391 = vmax.f32 %v2285, 0.0
      %v2392 = vmax.f32 %v2290, 0.0
      %v2393 = vmax.f32 %v2295, 0.0
      %v2394 = vmax.f32 %v2300, 0.0
      %v2395 = vmax.f32 %v2305, 0.0
      %v2396 = vmax.f32 %v2310, 0.0
      %v2397 = vmax.f32 %v2315, 0.0
      %v2398 = vmax.f32 %v2320, 0.0
      %v2399 = vmax.f32 %v2325, 0.0
      %v2400 = vmax.f32 %v2330, 0.0
      %v2401 = vmax.f32 %v2335, 0.0
      %v2402 = vmax.f32 %v2340, 0.0
      %v2403 = vmax.f32 %v2345, 0.0
      %v2404 = vmax.f32 %v2350, 0.0
      %v2405 = vmax.f32 %v2355, 0.0
      %v2406 = vmax.f32 %v2360, 0.0
      %v2407 = vmax.f32 %v2365, 0.0
      %v2408 = vmax.f32 %v2370, 0.0
      %v2409 = vmax.f32 %v2375, 0.0
      %vm2410 = vcmask 261120
      %2411 = vst.msk [vmem:[#allocation4] sm:$0xff] %vm2410, 0.0
      %2412 = vst.msk [vmem:[#allocation4 + $0x8] sm:$0xff] %vm2410, 0.0
      %vm2413 = vcmask 254976
      %2414 = vst.msk [vmem:[#allocation4 + $0x10] sm:$0x3] %vm2413, 0.0
      %2415 = vst.msk [vmem:[#allocation4 + $0x18] sm:$0xff] %vm2410, 0.0
      %2416 = vst.msk [vmem:[#allocation4 + $0x20] sm:$0xff] %vm2410, 0.0
      %2417 = vst.msk [vmem:[#allocation4 + $0x28] sm:$0x3] %vm2413, 0.0
      %2418 = vst.msk [vmem:[#allocation4 + $0x30] sm:$0xff] %vm2410, 0.0
      %2419 = vst.msk [vmem:[#allocation4 + $0x38] sm:$0xff] %vm2410, 0.0
      %2420 = vst.msk [vmem:[#allocation4 + $0x40] sm:$0x3] %vm2413, 0.0
      %2421 = vst.msk [vmem:[#allocation4 + $0x48] sm:$0xff] %vm2410, 0.0
      %2422 = vst.msk [vmem:[#allocation4 + $0x50] sm:$0xff] %vm2410, 0.0
      %2423 = vst.msk [vmem:[#allocation4 + $0x58] sm:$0x3] %vm2413, 0.0
      %2424 = vst.msk [vmem:[#allocation4 + $0x60] sm:$0xff] %vm2410, 0.0
      %2425 = vst.msk [vmem:[#allocation4 + $0x68] sm:$0xff] %vm2410, 0.0
      %2426 = vst.msk [vmem:[#allocation4 + $0x70] sm:$0x3] %vm2413, 0.0
      %2427 = vst.msk [vmem:[#allocation4 + $0x78] sm:$0xff] %vm2410, 0.0
      %2428 = vst.msk [vmem:[#allocation4 + $0x80] sm:$0xff] %vm2410, 0.0
      %2429 = vst.msk [vmem:[#allocation4 + $0x88] sm:$0x3] %vm2413, 0.0
      %2430 = vst.msk [vmem:[#allocation4 + $0x90] sm:$0xff] %vm2410, 0.0
      %2431 = vst.msk [vmem:[#allocation4 + $0x98] sm:$0xff] %vm2410, 0.0
      %2432 = vst.msk [vmem:[#allocation4 + $0xa0] sm:$0x3] %vm2413, 0.0
      %2433 = vst.msk [vmem:[#allocation4 + $0xa8] sm:$0xff] %vm2410, 0.0
      %2434 = vst.msk [vmem:[#allocation4 + $0xb0] sm:$0xff] %vm2410, 0.0
      %2435 = vst.msk [vmem:[#allocation4 + $0xb8] sm:$0x3] %vm2413, 0.0
      %2436 = vst.msk [vmem:[#allocation4 + $0xc0] sm:$0xff] %vm2410, 0.0
      %2437 = vst.msk [vmem:[#allocation4 + $0xc8] sm:$0xff] %vm2410, 0.0
      %2438 = vst.msk [vmem:[#allocation4 + $0xd0] sm:$0x3] %vm2413, 0.0
      %2439 = vst.msk [vmem:[#allocation4 + $0xd8] sm:$0xff] %vm2410, 0.0
      %2440 = vst.msk [vmem:[#allocation4 + $0xe0] sm:$0xff] %vm2410, 0.0
      %2441 = vst.msk [vmem:[#allocation4 + $0xe8] sm:$0x3] %vm2413, 0.0
      %2442 = vst.msk [vmem:[#allocation4 + $0xf0] sm:$0xff] %vm2410, 0.0
      %2443 = vst.msk [vmem:[#allocation4 + $0xf8] sm:$0xff] %vm2410, 0.0
      %2444 = vst.msk [vmem:[#allocation4 + $0x100] sm:$0x3] %vm2413, 0.0
      %2445 = vst.msk [vmem:[#allocation4 + $0x108] sm:$0xff] %vm2410, 0.0
      %2446 = vst.msk [vmem:[#allocation4 + $0x110] sm:$0xff] %vm2410, 0.0
      %2447 = vst.msk [vmem:[#allocation4 + $0x118] sm:$0x3] %vm2413, 0.0
      %2448 = vst.msk [vmem:[#allocation4 + $0x120] sm:$0xff] %vm2410, 0.0
      %2449 = vst.msk [vmem:[#allocation4 + $0x128] sm:$0xff] %vm2410, 0.0
      %2450 = vst.msk [vmem:[#allocation4 + $0x130] sm:$0x3] %vm2413, 0.0
      %2451 = vst.msk [vmem:[#allocation4 + $0x138] sm:$0xff] %vm2410, 0.0
      %2452 = vst.msk [vmem:[#allocation4 + $0x140] sm:$0xff] %vm2410, 0.0
      %2453 = vst.msk [vmem:[#allocation4 + $0x148] sm:$0x3] %vm2413, 0.0
      %2454 = vst.msk [vmem:[#allocation4 + $0x150] sm:$0xff] %vm2410, 0.0
      %2455 = vst.msk [vmem:[#allocation4 + $0x158] sm:$0xff] %vm2410, 0.0
      %2456 = vst.msk [vmem:[#allocation4 + $0x160] sm:$0x3] %vm2413, 0.0
      %2457 = vst.msk [vmem:[#allocation4 + $0x168] sm:$0xff] %vm2410, 0.0
      %2458 = vst.msk [vmem:[#allocation4 + $0x170] sm:$0xff] %vm2410, 0.0
      %2459 = vst.msk [vmem:[#allocation4 + $0x178] sm:$0x3] %vm2413, 0.0
      %2460 = vst.msk [vmem:[#allocation4 + $0x180] sm:$0xff] %vm2410, 0.0
      %2461 = vst.msk [vmem:[#allocation4 + $0x188] sm:$0xff] %vm2410, 0.0
      %2462 = vst.msk [vmem:[#allocation4 + $0x190] sm:$0x3] %vm2413, 0.0
      %2463 = vst.msk [vmem:[#allocation4 + $0x198] sm:$0xff] %vm2410, 0.0
      %2464 = vst.msk [vmem:[#allocation4 + $0x1a0] sm:$0xff] %vm2410, 0.0
      %2465 = vst.msk [vmem:[#allocation4 + $0x1a8] sm:$0x3] %vm2413, 0.0
      %s2466 = scalar_lea.vmem [#allocation4], 24
      %2467 = vst.msk [vmem:[%s2466 + $0x1] sm:$0xff] %vm2410, %v2378
      %2468 = vst.msk [vmem:[%s2466 + $0x9] sm:$0xff] %vm2410, %v2379
      %2469 = vst.msk [vmem:[%s2466 + $0x19] sm:$0xff] %vm2410, %v2380
      %2470 = vst.msk [vmem:[%s2466 + $0x21] sm:$0xff] %vm2410, %v2381
      %2471 = vst.msk [vmem:[%s2466 + $0x31] sm:$0xff] %vm2410, %v2382
      %2472 = vst.msk [vmem:[%s2466 + $0x39] sm:$0xff] %vm2410, %v2383
      %2473 = vst.msk [vmem:[%s2466 + $0x49] sm:$0xff] %vm2410, %v2384
      %2474 = vst.msk [vmem:[%s2466 + $0x51] sm:$0xff] %vm2410, %v2385
      %2475 = vst.msk [vmem:[%s2466 + $0x61] sm:$0xff] %vm2410, %v2386
      %2476 = vst.msk [vmem:[%s2466 + $0x69] sm:$0xff] %vm2410, %v2387
      %2477 = vst.msk [vmem:[%s2466 + $0x79] sm:$0xff] %vm2410, %v2388
      %2478 = vst.msk [vmem:[%s2466 + $0x81] sm:$0xff] %vm2410, %v2389
      %2479 = vst.msk [vmem:[%s2466 + $0x91] sm:$0xff] %vm2410, %v2390
      %2480 = vst.msk [vmem:[%s2466 + $0x99] sm:$0xff] %vm2410, %v2391
      %2481 = vst.msk [vmem:[%s2466 + $0xa9] sm:$0xff] %vm2410, %v2392
      %2482 = vst.msk [vmem:[%s2466 + $0xb1] sm:$0xff] %vm2410, %v2393
      %2483 = vst.msk [vmem:[%s2466 + $0xc1] sm:$0xff] %vm2410, %v2394
      %2484 = vst.msk [vmem:[%s2466 + $0xc9] sm:$0xff] %vm2410, %v2395
      %2485 = vst.msk [vmem:[%s2466 + $0xd9] sm:$0xff] %vm2410, %v2396
      %2486 = vst.msk [vmem:[%s2466 + $0xe1] sm:$0xff] %vm2410, %v2397
      %2487 = vst.msk [vmem:[%s2466 + $0xf1] sm:$0xff] %vm2410, %v2398
      %2488 = vst.msk [vmem:[%s2466 + $0xf9] sm:$0xff] %vm2410, %v2399
      %2489 = vst.msk [vmem:[%s2466 + $0x109] sm:$0xff] %vm2410, %v2400
      %2490 = vst.msk [vmem:[%s2466 + $0x111] sm:$0xff] %vm2410, %v2401
      %2491 = vst.msk [vmem:[%s2466 + $0x121] sm:$0xff] %vm2410, %v2402
      %2492 = vst.msk [vmem:[%s2466 + $0x129] sm:$0xff] %vm2410, %v2403
      %2493 = vst.msk [vmem:[%s2466 + $0x139] sm:$0xff] %vm2410, %v2404
      %2494 = vst.msk [vmem:[%s2466 + $0x141] sm:$0xff] %vm2410, %v2405
      %2495 = vst.msk [vmem:[%s2466 + $0x151] sm:$0xff] %vm2410, %v2406
      %2496 = vst.msk [vmem:[%s2466 + $0x159] sm:$0xff] %vm2410, %v2407
      %2497 = vst.msk [vmem:[%s2466 + $0x169] sm:$0xff] %vm2410, %v2408
      %2498 = vst.msk [vmem:[%s2466 + $0x171] sm:$0xff] %vm2410, %v2409
      %v2499 = vld [vmem:[#allocation4] sm:$0xff]
      %v2500 = vld [vmem:[#allocation4 + $0x8] sm:$0xff]
      %v2501 = vld [vmem:[#allocation4 + $0x18] sm:$0xff]
      %v2502 = vld [vmem:[#allocation4 + $0x20] sm:$0xff]
      %v2503 = vld [vmem:[#allocation4 + $0x30] sm:$0xff]
      %v2504 = vld [vmem:[#allocation4 + $0x38] sm:$0xff]
      %v2505 = vld [vmem:[#allocation4 + $0x48] sm:$0xff]
      %v2506 = vld [vmem:[#allocation4 + $0x50] sm:$0xff]
      %v2507 = vld [vmem:[#allocation4 + $0x60] sm:$0xff]
      %v2508 = vld [vmem:[#allocation4 + $0x68] sm:$0xff]
      %v2509 = vld [vmem:[#allocation4 + $0x78] sm:$0xff]
      %v2510 = vld [vmem:[#allocation4 + $0x80] sm:$0xff]
      %v2511 = vld [vmem:[#allocation4 + $0x90] sm:$0xff]
      %v2512 = vld [vmem:[#allocation4 + $0x98] sm:$0xff]
      %v2513 = vld [vmem:[#allocation4 + $0xa8] sm:$0xff]
      %v2514 = vld [vmem:[#allocation4 + $0xb0] sm:$0xff]
      %v2515 = vld [vmem:[#allocation4 + $0xc0] sm:$0xff]
      %v2516 = vld [vmem:[#allocation4 + $0xc8] sm:$0xff]
      %v2517 = vld [vmem:[#allocation4 + $0xd8] sm:$0xff]
      %v2518 = vld [vmem:[#allocation4 + $0xe0] sm:$0xff]
      %v2519 = vld [vmem:[#allocation4 + $0xf0] sm:$0xff]
      %v2520 = vld [vmem:[#allocation4 + $0xf8] sm:$0xff]
      %v2521 = vld [vmem:[#allocation4 + $0x108] sm:$0xff]
      %v2522 = vld [vmem:[#allocation4 + $0x110] sm:$0xff]
      %v2523 = vld [vmem:[#allocation4 + $0x120] sm:$0xff]
      %v2524 = vld [vmem:[#allocation4 + $0x128] sm:$0xff]
      %v2525 = vld [vmem:[#allocation4 + $0x138] sm:$0xff]
      %v2526 = vld [vmem:[#allocation4 + $0x140] sm:$0xff]
      %v2527 = vld [vmem:[#allocation4 + $0x150] sm:$0xff]
      %v2528 = vld [vmem:[#allocation4 + $0x158] sm:$0xff]
      %v2529 = vld [vmem:[#allocation4 + $0x168] sm:$0xff]
      %v2530 = vld [vmem:[#allocation4 + $0x170] sm:$0xff]
      %2531 = vst.msk [vmem:[#allocation5] sm:$0xff] %vm2410, %v2499
      %2532 = vst.msk [vmem:[#allocation5 + $0x18] sm:$0xff] %vm2410, %v2500
      %2533 = vst.msk [vmem:[#allocation5 + $0x30] sm:$0xff] %vm2410, %v2501
      %2534 = vst.msk [vmem:[#allocation5 + $0x48] sm:$0xff] %vm2410, %v2502
      %2535 = vst.msk [vmem:[#allocation5 + $0x60] sm:$0xff] %vm2410, %v2503
      %2536 = vst.msk [vmem:[#allocation5 + $0x78] sm:$0xff] %vm2410, %v2504
      %2537 = vst.msk [vmem:[#allocation5 + $0x90] sm:$0xff] %vm2410, %v2505
      %2538 = vst.msk [vmem:[#allocation5 + $0xa8] sm:$0xff] %vm2410, %v2506
      %2539 = vst.msk [vmem:[#allocation5 + $0xc0] sm:$0xff] %vm2410, %v2507
      %2540 = vst.msk [vmem:[#allocation5 + $0xd8] sm:$0xff] %vm2410, %v2508
      %2541 = vst.msk [vmem:[#allocation5 + $0xf0] sm:$0xff] %vm2410, %v2509
      %2542 = vst.msk [vmem:[#allocation5 + $0x108] sm:$0xff] %vm2410, %v2510
      %2543 = vst.msk [vmem:[#allocation5 + $0x120] sm:$0xff] %vm2410, %v2511
      %2544 = vst.msk [vmem:[#allocation5 + $0x138] sm:$0xff] %vm2410, %v2512
      %2545 = vst.msk [vmem:[#allocation5 + $0x150] sm:$0xff] %vm2410, %v2513
      %2546 = vst.msk [vmem:[#allocation5 + $0x168] sm:$0xff] %vm2410, %v2514
      %2547 = vst.msk [vmem:[#allocation5 + $0x180] sm:$0xff] %vm2410, %v2515
      %2548 = vst.msk [vmem:[#allocation5 + $0x198] sm:$0xff] %vm2410, %v2516
      %2549 = vst.msk [vmem:[#allocation5 + $0x1b0] sm:$0xff] %vm2410, %v2517
      %2550 = vst.msk [vmem:[#allocation5 + $0x1c8] sm:$0xff] %vm2410, %v2518
      %2551 = vst.msk [vmem:[#allocation5 + $0x1e0] sm:$0xff] %vm2410, %v2519
      %2552 = vst.msk [vmem:[#allocation5 + $0x1f8] sm:$0xff] %vm2410, %v2520
      %2553 = vst.msk [vmem:[#allocation5 + $0x210] sm:$0xff] %vm2410, %v2521
      %2554 = vst.msk [vmem:[#allocation5 + $0x228] sm:$0xff] %vm2410, %v2522
      %2555 = vst.msk [vmem:[#allocation5 + $0x240] sm:$0xff] %vm2410, %v2523
      %2556 = vst.msk [vmem:[#allocation5 + $0x258] sm:$0xff] %vm2410, %v2524
      %2557 = vst.msk [vmem:[#allocation5 + $0x270] sm:$0xff] %vm2410, %v2525
      %2558 = vst.msk [vmem:[#allocation5 + $0x288] sm:$0xff] %vm2410, %v2526
      %2559 = vst.msk [vmem:[#allocation5 + $0x2a0] sm:$0xff] %vm2410, %v2527
      %2560 = vst.msk [vmem:[#allocation5 + $0x2b8] sm:$0xff] %vm2410, %v2528
      %2561 = vst.msk [vmem:[#allocation5 + $0x2d0] sm:$0xff] %vm2410, %v2529
      %2562 = vst.msk [vmem:[#allocation5 + $0x2e8] sm:$0xff] %vm2410, %v2530
      %v2563 = vld [vmem:[#allocation4 + $0x1] sm:$0xff]
      %v2564 = vld [vmem:[#allocation4 + $0x9] sm:$0xff]
      %v2565 = vld [vmem:[#allocation4 + $0x19] sm:$0xff]
      %v2566 = vld [vmem:[#allocation4 + $0x21] sm:$0xff]
      %v2567 = vld [vmem:[#allocation4 + $0x31] sm:$0xff]
      %v2568 = vld [vmem:[#allocation4 + $0x39] sm:$0xff]
      %v2569 = vld [vmem:[#allocation4 + $0x49] sm:$0xff]
      %v2570 = vld [vmem:[#allocation4 + $0x51] sm:$0xff]
      %v2571 = vld [vmem:[#allocation4 + $0x61] sm:$0xff]
      %v2572 = vld [vmem:[#allocation4 + $0x69] sm:$0xff]
      %v2573 = vld [vmem:[#allocation4 + $0x79] sm:$0xff]
      %v2574 = vld [vmem:[#allocation4 + $0x81] sm:$0xff]
      %v2575 = vld [vmem:[#allocation4 + $0x91] sm:$0xff]
      %v2576 = vld [vmem:[#allocation4 + $0x99] sm:$0xff]
      %v2577 = vld [vmem:[#allocation4 + $0xa9] sm:$0xff]
      %v2578 = vld [vmem:[#allocation4 + $0xb1] sm:$0xff]
      %v2579 = vld [vmem:[#allocation4 + $0xc1] sm:$0xff]
      %v2580 = vld [vmem:[#allocation4 + $0xc9] sm:$0xff]
      %v2581 = vld [vmem:[#allocation4 + $0xd9] sm:$0xff]
      %v2582 = vld [vmem:[#allocation4 + $0xe1] sm:$0xff]
      %v2583 = vld [vmem:[#allocation4 + $0xf1] sm:$0xff]
      %v2584 = vld [vmem:[#allocation4 + $0xf9] sm:$0xff]
      %v2585 = vld [vmem:[#allocation4 + $0x109] sm:$0xff]
      %v2586 = vld [vmem:[#allocation4 + $0x111] sm:$0xff]
      %v2587 = vld [vmem:[#allocation4 + $0x121] sm:$0xff]
      %v2588 = vld [vmem:[#allocation4 + $0x129] sm:$0xff]
      %v2589 = vld [vmem:[#allocation4 + $0x139] sm:$0xff]
      %v2590 = vld [vmem:[#allocation4 + $0x141] sm:$0xff]
      %v2591 = vld [vmem:[#allocation4 + $0x151] sm:$0xff]
      %v2592 = vld [vmem:[#allocation4 + $0x159] sm:$0xff]
      %v2593 = vld [vmem:[#allocation4 + $0x169] sm:$0xff]
      %v2594 = vld [vmem:[#allocation4 + $0x171] sm:$0xff]
      %2627 = vrot.lane.b32.xlu0 %v2563, 32
      %v2628 = vpop.permute.xlu0 %2627
      %2629 = vrot.lane.b32.xlu0 %v2564, 32
      %v2630 = vpop.permute.xlu0 %2629
      %2631 = vrot.lane.b32.xlu0 %v2565, 32
      %v2632 = vpop.permute.xlu0 %2631
      %2633 = vrot.lane.b32.xlu0 %v2566, 32
      %v2634 = vpop.permute.xlu0 %2633
      %2635 = vrot.lane.b32.xlu0 %v2567, 32
      %v2636 = vpop.permute.xlu0 %2635
      %2637 = vrot.lane.b32.xlu0 %v2568, 32
      %v2638 = vpop.permute.xlu0 %2637
      %2639 = vrot.lane.b32.xlu0 %v2569, 32
      %v2640 = vpop.permute.xlu0 %2639
      %2641 = vrot.lane.b32.xlu0 %v2570, 32
      %v2642 = vpop.permute.xlu0 %2641
      %2643 = vrot.lane.b32.xlu0 %v2571, 32
      %v2644 = vpop.permute.xlu0 %2643
      %2645 = vrot.lane.b32.xlu0 %v2572, 32
      %v2646 = vpop.permute.xlu0 %2645
      %2647 = vrot.lane.b32.xlu0 %v2573, 32
      %v2648 = vpop.permute.xlu0 %2647
      %2649 = vrot.lane.b32.xlu0 %v2574, 32
      %v2650 = vpop.permute.xlu0 %2649
      %2651 = vrot.lane.b32.xlu0 %v2575, 32
      %v2652 = vpop.permute.xlu0 %2651
      %2653 = vrot.lane.b32.xlu0 %v2576, 32
      %v2654 = vpop.permute.xlu0 %2653
      %2655 = vrot.lane.b32.xlu0 %v2577, 32
      %v2656 = vpop.permute.xlu0 %2655
      %2657 = vrot.lane.b32.xlu0 %v2578, 32
      %v2658 = vpop.permute.xlu0 %2657
      %2659 = vrot.lane.b32.xlu0 %v2579, 32
      %v2660 = vpop.permute.xlu0 %2659
      %2661 = vrot.lane.b32.xlu0 %v2580, 32
      %v2662 = vpop.permute.xlu0 %2661
      %2663 = vrot.lane.b32.xlu0 %v2581, 32
      %v2664 = vpop.permute.xlu0 %2663
      %2665 = vrot.lane.b32.xlu0 %v2582, 32
      %v2666 = vpop.permute.xlu0 %2665
      %2667 = vrot.lane.b32.xlu0 %v2583, 32
      %v2668 = vpop.permute.xlu0 %2667
      %2669 = vrot.lane.b32.xlu0 %v2584, 32
      %v2670 = vpop.permute.xlu0 %2669
      %2671 = vrot.lane.b32.xlu0 %v2585, 32
      %v2672 = vpop.permute.xlu0 %2671
      %2673 = vrot.lane.b32.xlu0 %v2586, 32
      %v2674 = vpop.permute.xlu0 %2673
      %2675 = vrot.lane.b32.xlu0 %v2587, 32
      %v2676 = vpop.permute.xlu0 %2675
      %2677 = vrot.lane.b32.xlu0 %v2588, 32
      %v2678 = vpop.permute.xlu0 %2677
      %2679 = vrot.lane.b32.xlu0 %v2589, 32
      %v2680 = vpop.permute.xlu0 %2679
      %2681 = vrot.lane.b32.xlu0 %v2590, 32
      %v2682 = vpop.permute.xlu0 %2681
      %2683 = vrot.lane.b32.xlu0 %v2591, 32
      %v2684 = vpop.permute.xlu0 %2683
      %2685 = vrot.lane.b32.xlu0 %v2592, 32
      %v2686 = vpop.permute.xlu0 %2685
      %2687 = vrot.lane.b32.xlu0 %v2593, 32
      %v2688 = vpop.permute.xlu0 %2687
      %2689 = vrot.lane.b32.xlu0 %v2594, 32
      %v2690 = vpop.permute.xlu0 %2689
      %vm2723 = vcmask 523520
      %2724 = vst.msk [vmem:[#allocation5] sm:$0xff] %vm2723, %v2628
      %2725 = vst.msk [vmem:[#allocation5 + $0x18] sm:$0xff] %vm2723, %v2630
      %2726 = vst.msk [vmem:[#allocation5 + $0x30] sm:$0xff] %vm2723, %v2632
      %2727 = vst.msk [vmem:[#allocation5 + $0x48] sm:$0xff] %vm2723, %v2634
      %2728 = vst.msk [vmem:[#allocation5 + $0x60] sm:$0xff] %vm2723, %v2636
      %2729 = vst.msk [vmem:[#allocation5 + $0x78] sm:$0xff] %vm2723, %v2638
      %2730 = vst.msk [vmem:[#allocation5 + $0x90] sm:$0xff] %vm2723, %v2640
      %2731 = vst.msk [vmem:[#allocation5 + $0xa8] sm:$0xff] %vm2723, %v2642
      %2732 = vst.msk [vmem:[#allocation5 + $0xc0] sm:$0xff] %vm2723, %v2644
      %2733 = vst.msk [vmem:[#allocation5 + $0xd8] sm:$0xff] %vm2723, %v2646
      %2734 = vst.msk [vmem:[#allocation5 + $0xf0] sm:$0xff] %vm2723, %v2648
      %2735 = vst.msk [vmem:[#allocation5 + $0x108] sm:$0xff] %vm2723, %v2650
      %2736 = vst.msk [vmem:[#allocation5 + $0x120] sm:$0xff] %vm2723, %v2652
      %2737 = vst.msk [vmem:[#allocation5 + $0x138] sm:$0xff] %vm2723, %v2654
      %2738 = vst.msk [vmem:[#allocation5 + $0x150] sm:$0xff] %vm2723, %v2656
      %2739 = vst.msk [vmem:[#allocation5 + $0x168] sm:$0xff] %vm2723, %v2658
      %2740 = vst.msk [vmem:[#allocation5 + $0x180] sm:$0xff] %vm2723, %v2660
      %2741 = vst.msk [vmem:[#allocation5 + $0x198] sm:$0xff] %vm2723, %v2662
      %2742 = vst.msk [vmem:[#allocation5 + $0x1b0] sm:$0xff] %vm2723, %v2664
      %2743 = vst.msk [vmem:[#allocation5 + $0x1c8] sm:$0xff] %vm2723, %v2666
      %2744 = vst.msk [vmem:[#allocation5 + $0x1e0] sm:$0xff] %vm2723, %v2668
      %2745 = vst.msk [vmem:[#allocation5 + $0x1f8] sm:$0xff] %vm2723, %v2670
      %2746 = vst.msk [vmem:[#allocation5 + $0x210] sm:$0xff] %vm2723, %v2672
      %2747 = vst.msk [vmem:[#allocation5 + $0x228] sm:$0xff] %vm2723, %v2674
      %2748 = vst.msk [vmem:[#allocation5 + $0x240] sm:$0xff] %vm2723, %v2676
      %2749 = vst.msk [vmem:[#allocation5 + $0x258] sm:$0xff] %vm2723, %v2678
      %2750 = vst.msk [vmem:[#allocation5 + $0x270] sm:$0xff] %vm2723, %v2680
      %2751 = vst.msk [vmem:[#allocation5 + $0x288] sm:$0xff] %vm2723, %v2682
      %2752 = vst.msk [vmem:[#allocation5 + $0x2a0] sm:$0xff] %vm2723, %v2684
      %2753 = vst.msk [vmem:[#allocation5 + $0x2b8] sm:$0xff] %vm2723, %v2686
      %2754 = vst.msk [vmem:[#allocation5 + $0x2d0] sm:$0xff] %vm2723, %v2688
      %2755 = vst.msk [vmem:[#allocation5 + $0x2e8] sm:$0xff] %vm2723, %v2690
      %v2756 = vld [vmem:[#allocation4 + $0x2] sm:$0xff]
      %v2757 = vld [vmem:[#allocation4 + $0xa] sm:$0xff]
      %v2758 = vld [vmem:[#allocation4 + $0x1a] sm:$0xff]
      %v2759 = vld [vmem:[#allocation4 + $0x22] sm:$0xff]
      %v2760 = vld [vmem:[#allocation4 + $0x32] sm:$0xff]
      %v2761 = vld [vmem:[#allocation4 + $0x3a] sm:$0xff]
      %v2762 = vld [vmem:[#allocation4 + $0x4a] sm:$0xff]
      %v2763 = vld [vmem:[#allocation4 + $0x52] sm:$0xff]
      %v2764 = vld [vmem:[#allocation4 + $0x62] sm:$0xff]
      %v2765 = vld [vmem:[#allocation4 + $0x6a] sm:$0xff]
      %v2766 = vld [vmem:[#allocation4 + $0x7a] sm:$0xff]
      %v2767 = vld [vmem:[#allocation4 + $0x82] sm:$0xff]
      %v2768 = vld [vmem:[#allocation4 + $0x92] sm:$0xff]
      %v2769 = vld [vmem:[#allocation4 + $0x9a] sm:$0xff]
      %v2770 = vld [vmem:[#allocation4 + $0xaa] sm:$0xff]
      %v2771 = vld [vmem:[#allocation4 + $0xb2] sm:$0xff]
      %v2772 = vld [vmem:[#allocation4 + $0xc2] sm:$0xff]
      %v2773 = vld [vmem:[#allocation4 + $0xca] sm:$0xff]
      %v2774 = vld [vmem:[#allocation4 + $0xda] sm:$0xff]
      %v2775 = vld [vmem:[#allocation4 + $0xe2] sm:$0xff]
      %v2776 = vld [vmem:[#allocation4 + $0xf2] sm:$0xff]
      %v2777 = vld [vmem:[#allocation4 + $0xfa] sm:$0xff]
      %v2778 = vld [vmem:[#allocation4 + $0x10a] sm:$0xff]
      %v2779 = vld [vmem:[#allocation4 + $0x112] sm:$0xff]
      %v2780 = vld [vmem:[#allocation4 + $0x122] sm:$0xff]
      %v2781 = vld [vmem:[#allocation4 + $0x12a] sm:$0xff]
      %v2782 = vld [vmem:[#allocation4 + $0x13a] sm:$0xff]
      %v2783 = vld [vmem:[#allocation4 + $0x142] sm:$0xff]
      %v2784 = vld [vmem:[#allocation4 + $0x152] sm:$0xff]
      %v2785 = vld [vmem:[#allocation4 + $0x15a] sm:$0xff]
      %v2786 = vld [vmem:[#allocation4 + $0x16a] sm:$0xff]
      %v2787 = vld [vmem:[#allocation4 + $0x172] sm:$0xff]
      %2820 = vrot.lane.b32.xlu0 %v2756, 64
      %v2821 = vpop.permute.xlu0 %2820
      %2822 = vrot.lane.b32.xlu0 %v2757, 64
      %v2823 = vpop.permute.xlu0 %2822
      %2824 = vrot.lane.b32.xlu0 %v2758, 64
      %v2825 = vpop.permute.xlu0 %2824
      %2826 = vrot.lane.b32.xlu0 %v2759, 64
      %v2827 = vpop.permute.xlu0 %2826
      %2828 = vrot.lane.b32.xlu0 %v2760, 64
      %v2829 = vpop.permute.xlu0 %2828
      %2830 = vrot.lane.b32.xlu0 %v2761, 64
      %v2831 = vpop.permute.xlu0 %2830
      %2832 = vrot.lane.b32.xlu0 %v2762, 64
      %v2833 = vpop.permute.xlu0 %2832
      %2834 = vrot.lane.b32.xlu0 %v2763, 64
      %v2835 = vpop.permute.xlu0 %2834
      %2836 = vrot.lane.b32.xlu0 %v2764, 64
      %v2837 = vpop.permute.xlu0 %2836
      %2838 = vrot.lane.b32.xlu0 %v2765, 64
      %v2839 = vpop.permute.xlu0 %2838
      %2840 = vrot.lane.b32.xlu0 %v2766, 64
      %v2841 = vpop.permute.xlu0 %2840
      %2842 = vrot.lane.b32.xlu0 %v2767, 64
      %v2843 = vpop.permute.xlu0 %2842
      %2844 = vrot.lane.b32.xlu0 %v2768, 64
      %v2845 = vpop.permute.xlu0 %2844
      %2846 = vrot.lane.b32.xlu0 %v2769, 64
      %v2847 = vpop.permute.xlu0 %2846
      %2848 = vrot.lane.b32.xlu0 %v2770, 64
      %v2849 = vpop.permute.xlu0 %2848
      %2850 = vrot.lane.b32.xlu0 %v2771, 64
      %v2851 = vpop.permute.xlu0 %2850
      %2852 = vrot.lane.b32.xlu0 %v2772, 64
      %v2853 = vpop.permute.xlu0 %2852
      %2854 = vrot.lane.b32.xlu0 %v2773, 64
      %v2855 = vpop.permute.xlu0 %2854
      %2856 = vrot.lane.b32.xlu0 %v2774, 64
      %v2857 = vpop.permute.xlu0 %2856
      %2858 = vrot.lane.b32.xlu0 %v2775, 64
      %v2859 = vpop.permute.xlu0 %2858
      %2860 = vrot.lane.b32.xlu0 %v2776, 64
      %v2861 = vpop.permute.xlu0 %2860
      %2862 = vrot.lane.b32.xlu0 %v2777, 64
      %v2863 = vpop.permute.xlu0 %2862
      %2864 = vrot.lane.b32.xlu0 %v2778, 64
      %v2865 = vpop.permute.xlu0 %2864
      %2866 = vrot.lane.b32.xlu0 %v2779, 64
      %v2867 = vpop.permute.xlu0 %2866
      %2868 = vrot.lane.b32.xlu0 %v2780, 64
      %v2869 = vpop.permute.xlu0 %2868
      %2870 = vrot.lane.b32.xlu0 %v2781, 64
      %v2871 = vpop.permute.xlu0 %2870
      %2872 = vrot.lane.b32.xlu0 %v2782, 64
      %v2873 = vpop.permute.xlu0 %2872
      %2874 = vrot.lane.b32.xlu0 %v2783, 64
      %v2875 = vpop.permute.xlu0 %2874
      %2876 = vrot.lane.b32.xlu0 %v2784, 64
      %v2877 = vpop.permute.xlu0 %2876
      %2878 = vrot.lane.b32.xlu0 %v2785, 64
      %v2879 = vpop.permute.xlu0 %2878
      %2880 = vrot.lane.b32.xlu0 %v2786, 64
      %v2881 = vpop.permute.xlu0 %2880
      %2882 = vrot.lane.b32.xlu0 %v2787, 64
      %v2883 = vpop.permute.xlu0 %2882
      %vm2916 = vcmask 785920
      %2917 = vst.msk [vmem:[#allocation5] sm:$0xff] %vm2916, %v2821
      %2918 = vst.msk [vmem:[#allocation5 + $0x18] sm:$0xff] %vm2916, %v2823
      %2919 = vst.msk [vmem:[#allocation5 + $0x30] sm:$0xff] %vm2916, %v2825
      %2920 = vst.msk [vmem:[#allocation5 + $0x48] sm:$0xff] %vm2916, %v2827
      %2921 = vst.msk [vmem:[#allocation5 + $0x60] sm:$0xff] %vm2916, %v2829
      %2922 = vst.msk [vmem:[#allocation5 + $0x78] sm:$0xff] %vm2916, %v2831
      %2923 = vst.msk [vmem:[#allocation5 + $0x90] sm:$0xff] %vm2916, %v2833
      %2924 = vst.msk [vmem:[#allocation5 + $0xa8] sm:$0xff] %vm2916, %v2835
      %2925 = vst.msk [vmem:[#allocation5 + $0xc0] sm:$0xff] %vm2916, %v2837
      %2926 = vst.msk [vmem:[#allocation5 + $0xd8] sm:$0xff] %vm2916, %v2839
      %2927 = vst.msk [vmem:[#allocation5 + $0xf0] sm:$0xff] %vm2916, %v2841
      %2928 = vst.msk [vmem:[#allocation5 + $0x108] sm:$0xff] %vm2916, %v2843
      %2929 = vst.msk [vmem:[#allocation5 + $0x120] sm:$0xff] %vm2916, %v2845
      %2930 = vst.msk [vmem:[#allocation5 + $0x138] sm:$0xff] %vm2916, %v2847
      %2931 = vst.msk [vmem:[#allocation5 + $0x150] sm:$0xff] %vm2916, %v2849
      %2932 = vst.msk [vmem:[#allocation5 + $0x168] sm:$0xff] %vm2916, %v2851
      %2933 = vst.msk [vmem:[#allocation5 + $0x180] sm:$0xff] %vm2916, %v2853
      %2934 = vst.msk [vmem:[#allocation5 + $0x198] sm:$0xff] %vm2916, %v2855
      %2935 = vst.msk [vmem:[#allocation5 + $0x1b0] sm:$0xff] %vm2916, %v2857
      %2936 = vst.msk [vmem:[#allocation5 + $0x1c8] sm:$0xff] %vm2916, %v2859
      %2937 = vst.msk [vmem:[#allocation5 + $0x1e0] sm:$0xff] %vm2916, %v2861
      %2938 = vst.msk [vmem:[#allocation5 + $0x1f8] sm:$0xff] %vm2916, %v2863
      %2939 = vst.msk [vmem:[#allocation5 + $0x210] sm:$0xff] %vm2916, %v2865
      %2940 = vst.msk [vmem:[#allocation5 + $0x228] sm:$0xff] %vm2916, %v2867
      %2941 = vst.msk [vmem:[#allocation5 + $0x240] sm:$0xff] %vm2916, %v2869
      %2942 = vst.msk [vmem:[#allocation5 + $0x258] sm:$0xff] %vm2916, %v2871
      %2943 = vst.msk [vmem:[#allocation5 + $0x270] sm:$0xff] %vm2916, %v2873
      %2944 = vst.msk [vmem:[#allocation5 + $0x288] sm:$0xff] %vm2916, %v2875
      %2945 = vst.msk [vmem:[#allocation5 + $0x2a0] sm:$0xff] %vm2916, %v2877
      %2946 = vst.msk [vmem:[#allocation5 + $0x2b8] sm:$0xff] %vm2916, %v2879
      %2947 = vst.msk [vmem:[#allocation5 + $0x2d0] sm:$0xff] %vm2916, %v2881
      %2948 = vst.msk [vmem:[#allocation5 + $0x2e8] sm:$0xff] %vm2916, %v2883
      %v2949 = vld [vmem:[%s2466] sm:$0xff]
      %v2950 = vld [vmem:[%s2466 + $0x8] sm:$0xff]
      %v2951 = vld [vmem:[%s2466 + $0x18] sm:$0xff]
      %v2952 = vld [vmem:[%s2466 + $0x20] sm:$0xff]
      %v2953 = vld [vmem:[%s2466 + $0x30] sm:$0xff]
      %v2954 = vld [vmem:[%s2466 + $0x38] sm:$0xff]
      %v2955 = vld [vmem:[%s2466 + $0x48] sm:$0xff]
      %v2956 = vld [vmem:[%s2466 + $0x50] sm:$0xff]
      %v2957 = vld [vmem:[%s2466 + $0x60] sm:$0xff]
      %v2958 = vld [vmem:[%s2466 + $0x68] sm:$0xff]
      %v2959 = vld [vmem:[%s2466 + $0x78] sm:$0xff]
      %v2960 = vld [vmem:[%s2466 + $0x80] sm:$0xff]
      %v2961 = vld [vmem:[%s2466 + $0x90] sm:$0xff]
      %v2962 = vld [vmem:[%s2466 + $0x98] sm:$0xff]
      %v2963 = vld [vmem:[%s2466 + $0xa8] sm:$0xff]
      %v2964 = vld [vmem:[%s2466 + $0xb0] sm:$0xff]
      %v2965 = vld [vmem:[%s2466 + $0xc0] sm:$0xff]
      %v2966 = vld [vmem:[%s2466 + $0xc8] sm:$0xff]
      %v2967 = vld [vmem:[%s2466 + $0xd8] sm:$0xff]
      %v2968 = vld [vmem:[%s2466 + $0xe0] sm:$0xff]
      %v2969 = vld [vmem:[%s2466 + $0xf0] sm:$0xff]
      %v2970 = vld [vmem:[%s2466 + $0xf8] sm:$0xff]
      %v2971 = vld [vmem:[%s2466 + $0x108] sm:$0xff]
      %v2972 = vld [vmem:[%s2466 + $0x110] sm:$0xff]
      %v2973 = vld [vmem:[%s2466 + $0x120] sm:$0xff]
      %v2974 = vld [vmem:[%s2466 + $0x128] sm:$0xff]
      %v2975 = vld [vmem:[%s2466 + $0x138] sm:$0xff]
      %v2976 = vld [vmem:[%s2466 + $0x140] sm:$0xff]
      %v2977 = vld [vmem:[%s2466 + $0x150] sm:$0xff]
      %v2978 = vld [vmem:[%s2466 + $0x158] sm:$0xff]
      %v2979 = vld [vmem:[%s2466 + $0x168] sm:$0xff]
      %v2980 = vld [vmem:[%s2466 + $0x170] sm:$0xff]
      %3013 = vrot.lane.b32.xlu0 %v2949, 96
      %v3014 = vpop.permute.xlu0 %3013
      %3015 = vrot.lane.b32.xlu0 %v2950, 96
      %v3016 = vpop.permute.xlu0 %3015
      %3017 = vrot.lane.b32.xlu0 %v2951, 96
      %v3018 = vpop.permute.xlu0 %3017
      %3019 = vrot.lane.b32.xlu0 %v2952, 96
      %v3020 = vpop.permute.xlu0 %3019
      %3021 = vrot.lane.b32.xlu0 %v2953, 96
      %v3022 = vpop.permute.xlu0 %3021
      %3023 = vrot.lane.b32.xlu0 %v2954, 96
      %v3024 = vpop.permute.xlu0 %3023
      %3025 = vrot.lane.b32.xlu0 %v2955, 96
      %v3026 = vpop.permute.xlu0 %3025
      %3027 = vrot.lane.b32.xlu0 %v2956, 96
      %v3028 = vpop.permute.xlu0 %3027
      %3029 = vrot.lane.b32.xlu0 %v2957, 96
      %v3030 = vpop.permute.xlu0 %3029
      %3031 = vrot.lane.b32.xlu0 %v2958, 96
      %v3032 = vpop.permute.xlu0 %3031
      %3033 = vrot.lane.b32.xlu0 %v2959, 96
      %v3034 = vpop.permute.xlu0 %3033
      %3035 = vrot.lane.b32.xlu0 %v2960, 96
      %v3036 = vpop.permute.xlu0 %3035
      %3037 = vrot.lane.b32.xlu0 %v2961, 96
      %v3038 = vpop.permute.xlu0 %3037
      %3039 = vrot.lane.b32.xlu0 %v2962, 96
      %v3040 = vpop.permute.xlu0 %3039
      %3041 = vrot.lane.b32.xlu0 %v2963, 96
      %v3042 = vpop.permute.xlu0 %3041
      %3043 = vrot.lane.b32.xlu0 %v2964, 96
      %v3044 = vpop.permute.xlu0 %3043
      %3045 = vrot.lane.b32.xlu0 %v2965, 96
      %v3046 = vpop.permute.xlu0 %3045
      %3047 = vrot.lane.b32.xlu0 %v2966, 96
      %v3048 = vpop.permute.xlu0 %3047
      %3049 = vrot.lane.b32.xlu0 %v2967, 96
      %v3050 = vpop.permute.xlu0 %3049
      %3051 = vrot.lane.b32.xlu0 %v2968, 96
      %v3052 = vpop.permute.xlu0 %3051
      %3053 = vrot.lane.b32.xlu0 %v2969, 96
      %v3054 = vpop.permute.xlu0 %3053
      %3055 = vrot.lane.b32.xlu0 %v2970, 96
      %v3056 = vpop.permute.xlu0 %3055
      %3057 = vrot.lane.b32.xlu0 %v2971, 96
      %v3058 = vpop.permute.xlu0 %3057
      %3059 = vrot.lane.b32.xlu0 %v2972, 96
      %v3060 = vpop.permute.xlu0 %3059
      %3061 = vrot.lane.b32.xlu0 %v2973, 96
      %v3062 = vpop.permute.xlu0 %3061
      %3063 = vrot.lane.b32.xlu0 %v2974, 96
      %v3064 = vpop.permute.xlu0 %3063
      %3065 = vrot.lane.b32.xlu0 %v2975, 96
      %v3066 = vpop.permute.xlu0 %3065
      %3067 = vrot.lane.b32.xlu0 %v2976, 96
      %v3068 = vpop.permute.xlu0 %3067
      %3069 = vrot.lane.b32.xlu0 %v2977, 96
      %v3070 = vpop.permute.xlu0 %3069
      %3071 = vrot.lane.b32.xlu0 %v2978, 96
      %v3072 = vpop.permute.xlu0 %3071
      %3073 = vrot.lane.b32.xlu0 %v2979, 96
      %v3074 = vpop.permute.xlu0 %3073
      %3075 = vrot.lane.b32.xlu0 %v2980, 96
      %v3076 = vpop.permute.xlu0 %3075
      %vm3109 = vcmask 1048320
      %3110 = vst.msk [vmem:[#allocation5] sm:$0xff] %vm3109, %v3014
      %3111 = vst.msk [vmem:[#allocation5 + $0x18] sm:$0xff] %vm3109, %v3016
      %3112 = vst.msk [vmem:[#allocation5 + $0x30] sm:$0xff] %vm3109, %v3018
      %3113 = vst.msk [vmem:[#allocation5 + $0x48] sm:$0xff] %vm3109, %v3020
      %3114 = vst.msk [vmem:[#allocation5 + $0x60] sm:$0xff] %vm3109, %v3022
      %3115 = vst.msk [vmem:[#allocation5 + $0x78] sm:$0xff] %vm3109, %v3024
      %3116 = vst.msk [vmem:[#allocation5 + $0x90] sm:$0xff] %vm3109, %v3026
      %3117 = vst.msk [vmem:[#allocation5 + $0xa8] sm:$0xff] %vm3109, %v3028
      %3118 = vst.msk [vmem:[#allocation5 + $0xc0] sm:$0xff] %vm3109, %v3030
      %3119 = vst.msk [vmem:[#allocation5 + $0xd8] sm:$0xff] %vm3109, %v3032
      %3120 = vst.msk [vmem:[#allocation5 + $0xf0] sm:$0xff] %vm3109, %v3034
      %3121 = vst.msk [vmem:[#allocation5 + $0x108] sm:$0xff] %vm3109, %v3036
      %3122 = vst.msk [vmem:[#allocation5 + $0x120] sm:$0xff] %vm3109, %v3038
      %3123 = vst.msk [vmem:[#allocation5 + $0x138] sm:$0xff] %vm3109, %v3040
      %3124 = vst.msk [vmem:[#allocation5 + $0x150] sm:$0xff] %vm3109, %v3042
      %3125 = vst.msk [vmem:[#allocation5 + $0x168] sm:$0xff] %vm3109, %v3044
      %3126 = vst.msk [vmem:[#allocation5 + $0x180] sm:$0xff] %vm3109, %v3046
      %3127 = vst.msk [vmem:[#allocation5 + $0x198] sm:$0xff] %vm3109, %v3048
      %3128 = vst.msk [vmem:[#allocation5 + $0x1b0] sm:$0xff] %vm3109, %v3050
      %3129 = vst.msk [vmem:[#allocation5 + $0x1c8] sm:$0xff] %vm3109, %v3052
      %3130 = vst.msk [vmem:[#allocation5 + $0x1e0] sm:$0xff] %vm3109, %v3054
      %3131 = vst.msk [vmem:[#allocation5 + $0x1f8] sm:$0xff] %vm3109, %v3056
      %3132 = vst.msk [vmem:[#allocation5 + $0x210] sm:$0xff] %vm3109, %v3058
      %3133 = vst.msk [vmem:[#allocation5 + $0x228] sm:$0xff] %vm3109, %v3060
      %3134 = vst.msk [vmem:[#allocation5 + $0x240] sm:$0xff] %vm3109, %v3062
      %3135 = vst.msk [vmem:[#allocation5 + $0x258] sm:$0xff] %vm3109, %v3064
      %3136 = vst.msk [vmem:[#allocation5 + $0x270] sm:$0xff] %vm3109, %v3066
      %3137 = vst.msk [vmem:[#allocation5 + $0x288] sm:$0xff] %vm3109, %v3068
      %3138 = vst.msk [vmem:[#allocation5 + $0x2a0] sm:$0xff] %vm3109, %v3070
      %3139 = vst.msk [vmem:[#allocation5 + $0x2b8] sm:$0xff] %vm3109, %v3072
      %3140 = vst.msk [vmem:[#allocation5 + $0x2d0] sm:$0xff] %vm3109, %v3074
      %3141 = vst.msk [vmem:[#allocation5 + $0x2e8] sm:$0xff] %vm3109, %v3076
      %v3142 = vld [vmem:[%s2466 + $0x1] sm:$0xff]
      %v3143 = vld [vmem:[%s2466 + $0x9] sm:$0xff]
      %v3144 = vld [vmem:[%s2466 + $0x19] sm:$0xff]
      %v3145 = vld [vmem:[%s2466 + $0x21] sm:$0xff]
      %v3146 = vld [vmem:[%s2466 + $0x31] sm:$0xff]
      %v3147 = vld [vmem:[%s2466 + $0x39] sm:$0xff]
      %v3148 = vld [vmem:[%s2466 + $0x49] sm:$0xff]
      %v3149 = vld [vmem:[%s2466 + $0x51] sm:$0xff]
      %v3150 = vld [vmem:[%s2466 + $0x61] sm:$0xff]
      %v3151 = vld [vmem:[%s2466 + $0x69] sm:$0xff]
      %v3152 = vld [vmem:[%s2466 + $0x79] sm:$0xff]
      %v3153 = vld [vmem:[%s2466 + $0x81] sm:$0xff]
      %v3154 = vld [vmem:[%s2466 + $0x91] sm:$0xff]
      %v3155 = vld [vmem:[%s2466 + $0x99] sm:$0xff]
      %v3156 = vld [vmem:[%s2466 + $0xa9] sm:$0xff]
      %v3157 = vld [vmem:[%s2466 + $0xb1] sm:$0xff]
      %v3158 = vld [vmem:[%s2466 + $0xc1] sm:$0xff]
      %v3159 = vld [vmem:[%s2466 + $0xc9] sm:$0xff]
      %v3160 = vld [vmem:[%s2466 + $0xd9] sm:$0xff]
      %v3161 = vld [vmem:[%s2466 + $0xe1] sm:$0xff]
      %v3162 = vld [vmem:[%s2466 + $0xf1] sm:$0xff]
      %v3163 = vld [vmem:[%s2466 + $0xf9] sm:$0xff]
      %v3164 = vld [vmem:[%s2466 + $0x109] sm:$0xff]
      %v3165 = vld [vmem:[%s2466 + $0x111] sm:$0xff]
      %v3166 = vld [vmem:[%s2466 + $0x121] sm:$0xff]
      %v3167 = vld [vmem:[%s2466 + $0x129] sm:$0xff]
      %v3168 = vld [vmem:[%s2466 + $0x139] sm:$0xff]
      %v3169 = vld [vmem:[%s2466 + $0x141] sm:$0xff]
      %v3170 = vld [vmem:[%s2466 + $0x151] sm:$0xff]
      %v3171 = vld [vmem:[%s2466 + $0x159] sm:$0xff]
      %v3172 = vld [vmem:[%s2466 + $0x169] sm:$0xff]
      %v3173 = vld [vmem:[%s2466 + $0x171] sm:$0xff]
      %3174 = vst.msk [vmem:[#allocation5 + $0x8] sm:$0xff] %vm2410, %v3142
      %3175 = vst.msk [vmem:[#allocation5 + $0x20] sm:$0xff] %vm2410, %v3143
      %3176 = vst.msk [vmem:[#allocation5 + $0x38] sm:$0xff] %vm2410, %v3144
      %3177 = vst.msk [vmem:[#allocation5 + $0x50] sm:$0xff] %vm2410, %v3145
      %3178 = vst.msk [vmem:[#allocation5 + $0x68] sm:$0xff] %vm2410, %v3146
      %3179 = vst.msk [vmem:[#allocation5 + $0x80] sm:$0xff] %vm2410, %v3147
      %3180 = vst.msk [vmem:[#allocation5 + $0x98] sm:$0xff] %vm2410, %v3148
      %3181 = vst.msk [vmem:[#allocation5 + $0xb0] sm:$0xff] %vm2410, %v3149
      %3182 = vst.msk [vmem:[#allocation5 + $0xc8] sm:$0xff] %vm2410, %v3150
      %3183 = vst.msk [vmem:[#allocation5 + $0xe0] sm:$0xff] %vm2410, %v3151
      %3184 = vst.msk [vmem:[#allocation5 + $0xf8] sm:$0xff] %vm2410, %v3152
      %3185 = vst.msk [vmem:[#allocation5 + $0x110] sm:$0xff] %vm2410, %v3153
      %3186 = vst.msk [vmem:[#allocation5 + $0x128] sm:$0xff] %vm2410, %v3154
      %3187 = vst.msk [vmem:[#allocation5 + $0x140] sm:$0xff] %vm2410, %v3155
      %3188 = vst.msk [vmem:[#allocation5 + $0x158] sm:$0xff] %vm2410, %v3156
      %3189 = vst.msk [vmem:[#allocation5 + $0x170] sm:$0xff] %vm2410, %v3157
      %3190 = vst.msk [vmem:[#allocation5 + $0x188] sm:$0xff] %vm2410, %v3158
      %3191 = vst.msk [vmem:[#allocation5 + $0x1a0] sm:$0xff] %vm2410, %v3159
      %3192 = vst.msk [vmem:[#allocation5 + $0x1b8] sm:$0xff] %vm2410, %v3160
      %3193 = vst.msk [vmem:[#allocation5 + $0x1d0] sm:$0xff] %vm2410, %v3161
      %3194 = vst.msk [vmem:[#allocation5 + $0x1e8] sm:$0xff] %vm2410, %v3162
      %3195 = vst.msk [vmem:[#allocation5 + $0x200] sm:$0xff] %vm2410, %v3163
      %3196 = vst.msk [vmem:[#allocation5 + $0x218] sm:$0xff] %vm2410, %v3164
      %3197 = vst.msk [vmem:[#allocation5 + $0x230] sm:$0xff] %vm2410, %v3165
      %3198 = vst.msk [vmem:[#allocation5 + $0x248] sm:$0xff] %vm2410, %v3166
      %3199 = vst.msk [vmem:[#allocation5 + $0x260] sm:$0xff] %vm2410, %v3167
      %3200 = vst.msk [vmem:[#allocation5 + $0x278] sm:$0xff] %vm2410, %v3168
      %3201 = vst.msk [vmem:[#allocation5 + $0x290] sm:$0xff] %vm2410, %v3169
      %3202 = vst.msk [vmem:[#allocation5 + $0x2a8] sm:$0xff] %vm2410, %v3170
      %3203 = vst.msk [vmem:[#allocation5 + $0x2c0] sm:$0xff] %vm2410, %v3171
      %3204 = vst.msk [vmem:[#allocation5 + $0x2d8] sm:$0xff] %vm2410, %v3172
      %3205 = vst.msk [vmem:[#allocation5 + $0x2f0] sm:$0xff] %vm2410, %v3173
      %v3206 = vld [vmem:[%s2466 + $0x2] sm:$0xff]
      %v3207 = vld [vmem:[%s2466 + $0xa] sm:$0xff]
      %v3208 = vld [vmem:[%s2466 + $0x1a] sm:$0xff]
      %v3209 = vld [vmem:[%s2466 + $0x22] sm:$0xff]
      %v3210 = vld [vmem:[%s2466 + $0x32] sm:$0xff]
      %v3211 = vld [vmem:[%s2466 + $0x3a] sm:$0xff]
      %v3212 = vld [vmem:[%s2466 + $0x4a] sm:$0xff]
      %v3213 = vld [vmem:[%s2466 + $0x52] sm:$0xff]
      %v3214 = vld [vmem:[%s2466 + $0x62] sm:$0xff]
      %v3215 = vld [vmem:[%s2466 + $0x6a] sm:$0xff]
      %v3216 = vld [vmem:[%s2466 + $0x7a] sm:$0xff]
      %v3217 = vld [vmem:[%s2466 + $0x82] sm:$0xff]
      %v3218 = vld [vmem:[%s2466 + $0x92] sm:$0xff]
      %v3219 = vld [vmem:[%s2466 + $0x9a] sm:$0xff]
      %v3220 = vld [vmem:[%s2466 + $0xaa] sm:$0xff]
      %v3221 = vld [vmem:[%s2466 + $0xb2] sm:$0xff]
      %v3222 = vld [vmem:[%s2466 + $0xc2] sm:$0xff]
      %v3223 = vld [vmem:[%s2466 + $0xca] sm:$0xff]
      %v3224 = vld [vmem:[%s2466 + $0xda] sm:$0xff]
      %v3225 = vld [vmem:[%s2466 + $0xe2] sm:$0xff]
      %v3226 = vld [vmem:[%s2466 + $0xf2] sm:$0xff]
      %v3227 = vld [vmem:[%s2466 + $0xfa] sm:$0xff]
      %v3228 = vld [vmem:[%s2466 + $0x10a] sm:$0xff]
      %v3229 = vld [vmem:[%s2466 + $0x112] sm:$0xff]
      %v3230 = vld [vmem:[%s2466 + $0x122] sm:$0xff]
      %v3231 = vld [vmem:[%s2466 + $0x12a] sm:$0xff]
      %v3232 = vld [vmem:[%s2466 + $0x13a] sm:$0xff]
      %v3233 = vld [vmem:[%s2466 + $0x142] sm:$0xff]
      %v3234 = vld [vmem:[%s2466 + $0x152] sm:$0xff]
      %v3235 = vld [vmem:[%s2466 + $0x15a] sm:$0xff]
      %v3236 = vld [vmem:[%s2466 + $0x16a] sm:$0xff]
      %v3237 = vld [vmem:[%s2466 + $0x172] sm:$0xff]
      %3270 = vrot.lane.b32.xlu0 %v3206, 32
      %v3271 = vpop.permute.xlu0 %3270
      %3272 = vrot.lane.b32.xlu0 %v3207, 32
      %v3273 = vpop.permute.xlu0 %3272
      %3274 = vrot.lane.b32.xlu0 %v3208, 32
      %v3275 = vpop.permute.xlu0 %3274
      %3276 = vrot.lane.b32.xlu0 %v3209, 32
      %v3277 = vpop.permute.xlu0 %3276
      %3278 = vrot.lane.b32.xlu0 %v3210, 32
      %v3279 = vpop.permute.xlu0 %3278
      %3280 = vrot.lane.b32.xlu0 %v3211, 32
      %v3281 = vpop.permute.xlu0 %3280
      %3282 = vrot.lane.b32.xlu0 %v3212, 32
      %v3283 = vpop.permute.xlu0 %3282
      %3284 = vrot.lane.b32.xlu0 %v3213, 32
      %v3285 = vpop.permute.xlu0 %3284
      %3286 = vrot.lane.b32.xlu0 %v3214, 32
      %v3287 = vpop.permute.xlu0 %3286
      %3288 = vrot.lane.b32.xlu0 %v3215, 32
      %v3289 = vpop.permute.xlu0 %3288
      %3290 = vrot.lane.b32.xlu0 %v3216, 32
      %v3291 = vpop.permute.xlu0 %3290
      %3292 = vrot.lane.b32.xlu0 %v3217, 32
      %v3293 = vpop.permute.xlu0 %3292
      %3294 = vrot.lane.b32.xlu0 %v3218, 32
      %v3295 = vpop.permute.xlu0 %3294
      %3296 = vrot.lane.b32.xlu0 %v3219, 32
      %v3297 = vpop.permute.xlu0 %3296
      %3298 = vrot.lane.b32.xlu0 %v3220, 32
      %v3299 = vpop.permute.xlu0 %3298
      %3300 = vrot.lane.b32.xlu0 %v3221, 32
      %v3301 = vpop.permute.xlu0 %3300
      %3302 = vrot.lane.b32.xlu0 %v3222, 32
      %v3303 = vpop.permute.xlu0 %3302
      %3304 = vrot.lane.b32.xlu0 %v3223, 32
      %v3305 = vpop.permute.xlu0 %3304
      %3306 = vrot.lane.b32.xlu0 %v3224, 32
      %v3307 = vpop.permute.xlu0 %3306
      %3308 = vrot.lane.b32.xlu0 %v3225, 32
      %v3309 = vpop.permute.xlu0 %3308
      %3310 = vrot.lane.b32.xlu0 %v3226, 32
      %v3311 = vpop.permute.xlu0 %3310
      %3312 = vrot.lane.b32.xlu0 %v3227, 32
      %v3313 = vpop.permute.xlu0 %3312
      %3314 = vrot.lane.b32.xlu0 %v3228, 32
      %v3315 = vpop.permute.xlu0 %3314
      %3316 = vrot.lane.b32.xlu0 %v3229, 32
      %v3317 = vpop.permute.xlu0 %3316
      %3318 = vrot.lane.b32.xlu0 %v3230, 32
      %v3319 = vpop.permute.xlu0 %3318
      %3320 = vrot.lane.b32.xlu0 %v3231, 32
      %v3321 = vpop.permute.xlu0 %3320
      %3322 = vrot.lane.b32.xlu0 %v3232, 32
      %v3323 = vpop.permute.xlu0 %3322
      %3324 = vrot.lane.b32.xlu0 %v3233, 32
      %v3325 = vpop.permute.xlu0 %3324
      %3326 = vrot.lane.b32.xlu0 %v3234, 32
      %v3327 = vpop.permute.xlu0 %3326
      %3328 = vrot.lane.b32.xlu0 %v3235, 32
      %v3329 = vpop.permute.xlu0 %3328
      %3330 = vrot.lane.b32.xlu0 %v3236, 32
      %v3331 = vpop.permute.xlu0 %3330
      %3332 = vrot.lane.b32.xlu0 %v3237, 32
      %v3333 = vpop.permute.xlu0 %3332
      %3366 = vst.msk [vmem:[#allocation5 + $0x8] sm:$0xff] %vm2723, %v3271
      %3367 = vst.msk [vmem:[#allocation5 + $0x20] sm:$0xff] %vm2723, %v3273
      %3368 = vst.msk [vmem:[#allocation5 + $0x38] sm:$0xff] %vm2723, %v3275
      %3369 = vst.msk [vmem:[#allocation5 + $0x50] sm:$0xff] %vm2723, %v3277
      %3370 = vst.msk [vmem:[#allocation5 + $0x68] sm:$0xff] %vm2723, %v3279
      %3371 = vst.msk [vmem:[#allocation5 + $0x80] sm:$0xff] %vm2723, %v3281
      %3372 = vst.msk [vmem:[#allocation5 + $0x98] sm:$0xff] %vm2723, %v3283
      %3373 = vst.msk [vmem:[#allocation5 + $0xb0] sm:$0xff] %vm2723, %v3285
      %3374 = vst.msk [vmem:[#allocation5 + $0xc8] sm:$0xff] %vm2723, %v3287
      %3375 = vst.msk [vmem:[#allocation5 + $0xe0] sm:$0xff] %vm2723, %v3289
      %3376 = vst.msk [vmem:[#allocation5 + $0xf8] sm:$0xff] %vm2723, %v3291
      %3377 = vst.msk [vmem:[#allocation5 + $0x110] sm:$0xff] %vm2723, %v3293
      %3378 = vst.msk [vmem:[#allocation5 + $0x128] sm:$0xff] %vm2723, %v3295
      %3379 = vst.msk [vmem:[#allocation5 + $0x140] sm:$0xff] %vm2723, %v3297
      %3380 = vst.msk [vmem:[#allocation5 + $0x158] sm:$0xff] %vm2723, %v3299
      %3381 = vst.msk [vmem:[#allocation5 + $0x170] sm:$0xff] %vm2723, %v3301
      %3382 = vst.msk [vmem:[#allocation5 + $0x188] sm:$0xff] %vm2723, %v3303
      %3383 = vst.msk [vmem:[#allocation5 + $0x1a0] sm:$0xff] %vm2723, %v3305
      %3384 = vst.msk [vmem:[#allocation5 + $0x1b8] sm:$0xff] %vm2723, %v3307
      %3385 = vst.msk [vmem:[#allocation5 + $0x1d0] sm:$0xff] %vm2723, %v3309
      %3386 = vst.msk [vmem:[#allocation5 + $0x1e8] sm:$0xff] %vm2723, %v3311
      %3387 = vst.msk [vmem:[#allocation5 + $0x200] sm:$0xff] %vm2723, %v3313
      %3388 = vst.msk [vmem:[#allocation5 + $0x218] sm:$0xff] %vm2723, %v3315
      %3389 = vst.msk [vmem:[#allocation5 + $0x230] sm:$0xff] %vm2723, %v3317
      %3390 = vst.msk [vmem:[#allocation5 + $0x248] sm:$0xff] %vm2723, %v3319
      %3391 = vst.msk [vmem:[#allocation5 + $0x260] sm:$0xff] %vm2723, %v3321
      %3392 = vst.msk [vmem:[#allocation5 + $0x278] sm:$0xff] %vm2723, %v3323
      %3393 = vst.msk [vmem:[#allocation5 + $0x290] sm:$0xff] %vm2723, %v3325
      %3394 = vst.msk [vmem:[#allocation5 + $0x2a8] sm:$0xff] %vm2723, %v3327
      %3395 = vst.msk [vmem:[#allocation5 + $0x2c0] sm:$0xff] %vm2723, %v3329
      %3396 = vst.msk [vmem:[#allocation5 + $0x2d8] sm:$0xff] %vm2723, %v3331
      %3397 = vst.msk [vmem:[#allocation5 + $0x2f0] sm:$0xff] %vm2723, %v3333
      %s3398 = scalar_lea.vmem [#allocation4], 48
      %v3399 = vld [vmem:[%s3398] sm:$0xff]
      %v3400 = vld [vmem:[%s3398 + $0x8] sm:$0xff]
      %v3401 = vld [vmem:[%s3398 + $0x18] sm:$0xff]
      %v3402 = vld [vmem:[%s3398 + $0x20] sm:$0xff]
      %v3403 = vld [vmem:[%s3398 + $0x30] sm:$0xff]
      %v3404 = vld [vmem:[%s3398 + $0x38] sm:$0xff]
      %v3405 = vld [vmem:[%s3398 + $0x48] sm:$0xff]
      %v3406 = vld [vmem:[%s3398 + $0x50] sm:$0xff]
      %v3407 = vld [vmem:[%s3398 + $0x60] sm:$0xff]
      %v3408 = vld [vmem:[%s3398 + $0x68] sm:$0xff]
      %v3409 = vld [vmem:[%s3398 + $0x78] sm:$0xff]
      %v3410 = vld [vmem:[%s3398 + $0x80] sm:$0xff]
      %v3411 = vld [vmem:[%s3398 + $0x90] sm:$0xff]
      %v3412 = vld [vmem:[%s3398 + $0x98] sm:$0xff]
      %v3413 = vld [vmem:[%s3398 + $0xa8] sm:$0xff]
      %v3414 = vld [vmem:[%s3398 + $0xb0] sm:$0xff]
      %v3415 = vld [vmem:[%s3398 + $0xc0] sm:$0xff]
      %v3416 = vld [vmem:[%s3398 + $0xc8] sm:$0xff]
      %v3417 = vld [vmem:[%s3398 + $0xd8] sm:$0xff]
      %v3418 = vld [vmem:[%s3398 + $0xe0] sm:$0xff]
      %v3419 = vld [vmem:[%s3398 + $0xf0] sm:$0xff]
      %v3420 = vld [vmem:[%s3398 + $0xf8] sm:$0xff]
      %v3421 = vld [vmem:[%s3398 + $0x108] sm:$0xff]
      %v3422 = vld [vmem:[%s3398 + $0x110] sm:$0xff]
      %v3423 = vld [vmem:[%s3398 + $0x120] sm:$0xff]
      %v3424 = vld [vmem:[%s3398 + $0x128] sm:$0xff]
      %v3425 = vld [vmem:[%s3398 + $0x138] sm:$0xff]
      %v3426 = vld [vmem:[%s3398 + $0x140] sm:$0xff]
      %v3427 = vld [vmem:[%s3398 + $0x150] sm:$0xff]
      %v3428 = vld [vmem:[%s3398 + $0x158] sm:$0xff]
      %v3429 = vld [vmem:[%s3398 + $0x168] sm:$0xff]
      %v3430 = vld [vmem:[%s3398 + $0x170] sm:$0xff]
      %3463 = vrot.lane.b32.xlu0 %v3399, 64
      %v3464 = vpop.permute.xlu0 %3463
      %3465 = vrot.lane.b32.xlu0 %v3400, 64
      %v3466 = vpop.permute.xlu0 %3465
      %3467 = vrot.lane.b32.xlu0 %v3401, 64
      %v3468 = vpop.permute.xlu0 %3467
      %3469 = vrot.lane.b32.xlu0 %v3402, 64
      %v3470 = vpop.permute.xlu0 %3469
      %3471 = vrot.lane.b32.xlu0 %v3403, 64
      %v3472 = vpop.permute.xlu0 %3471
      %3473 = vrot.lane.b32.xlu0 %v3404, 64
      %v3474 = vpop.permute.xlu0 %3473
      %3475 = vrot.lane.b32.xlu0 %v3405, 64
      %v3476 = vpop.permute.xlu0 %3475
      %3477 = vrot.lane.b32.xlu0 %v3406, 64
      %v3478 = vpop.permute.xlu0 %3477
      %3479 = vrot.lane.b32.xlu0 %v3407, 64
      %v3480 = vpop.permute.xlu0 %3479
      %3481 = vrot.lane.b32.xlu0 %v3408, 64
      %v3482 = vpop.permute.xlu0 %3481
      %3483 = vrot.lane.b32.xlu0 %v3409, 64
      %v3484 = vpop.permute.xlu0 %3483
      %3485 = vrot.lane.b32.xlu0 %v3410, 64
      %v3486 = vpop.permute.xlu0 %3485
      %3487 = vrot.lane.b32.xlu0 %v3411, 64
      %v3488 = vpop.permute.xlu0 %3487
      %3489 = vrot.lane.b32.xlu0 %v3412, 64
      %v3490 = vpop.permute.xlu0 %3489
      %3491 = vrot.lane.b32.xlu0 %v3413, 64
      %v3492 = vpop.permute.xlu0 %3491
      %3493 = vrot.lane.b32.xlu0 %v3414, 64
      %v3494 = vpop.permute.xlu0 %3493
      %3495 = vrot.lane.b32.xlu0 %v3415, 64
      %v3496 = vpop.permute.xlu0 %3495
      %3497 = vrot.lane.b32.xlu0 %v3416, 64
      %v3498 = vpop.permute.xlu0 %3497
      %3499 = vrot.lane.b32.xlu0 %v3417, 64
      %v3500 = vpop.permute.xlu0 %3499
      %3501 = vrot.lane.b32.xlu0 %v3418, 64
      %v3502 = vpop.permute.xlu0 %3501
      %3503 = vrot.lane.b32.xlu0 %v3419, 64
      %v3504 = vpop.permute.xlu0 %3503
      %3505 = vrot.lane.b32.xlu0 %v3420, 64
      %v3506 = vpop.permute.xlu0 %3505
      %3507 = vrot.lane.b32.xlu0 %v3421, 64
      %v3508 = vpop.permute.xlu0 %3507
      %3509 = vrot.lane.b32.xlu0 %v3422, 64
      %v3510 = vpop.permute.xlu0 %3509
      %3511 = vrot.lane.b32.xlu0 %v3423, 64
      %v3512 = vpop.permute.xlu0 %3511
      %3513 = vrot.lane.b32.xlu0 %v3424, 64
      %v3514 = vpop.permute.xlu0 %3513
      %3515 = vrot.lane.b32.xlu0 %v3425, 64
      %v3516 = vpop.permute.xlu0 %3515
      %3517 = vrot.lane.b32.xlu0 %v3426, 64
      %v3518 = vpop.permute.xlu0 %3517
      %3519 = vrot.lane.b32.xlu0 %v3427, 64
      %v3520 = vpop.permute.xlu0 %3519
      %3521 = vrot.lane.b32.xlu0 %v3428, 64
      %v3522 = vpop.permute.xlu0 %3521
      %3523 = vrot.lane.b32.xlu0 %v3429, 64
      %v3524 = vpop.permute.xlu0 %3523
      %3525 = vrot.lane.b32.xlu0 %v3430, 64
      %v3526 = vpop.permute.xlu0 %3525
      %3559 = vst.msk [vmem:[#allocation5 + $0x8] sm:$0xff] %vm2916, %v3464
      %3560 = vst.msk [vmem:[#allocation5 + $0x20] sm:$0xff] %vm2916, %v3466
      %3561 = vst.msk [vmem:[#allocation5 + $0x38] sm:$0xff] %vm2916, %v3468
      %3562 = vst.msk [vmem:[#allocation5 + $0x50] sm:$0xff] %vm2916, %v3470
      %3563 = vst.msk [vmem:[#allocation5 + $0x68] sm:$0xff] %vm2916, %v3472
      %3564 = vst.msk [vmem:[#allocation5 + $0x80] sm:$0xff] %vm2916, %v3474
      %3565 = vst.msk [vmem:[#allocation5 + $0x98] sm:$0xff] %vm2916, %v3476
      %3566 = vst.msk [vmem:[#allocation5 + $0xb0] sm:$0xff] %vm2916, %v3478
      %3567 = vst.msk [vmem:[#allocation5 + $0xc8] sm:$0xff] %vm2916, %v3480
      %3568 = vst.msk [vmem:[#allocation5 + $0xe0] sm:$0xff] %vm2916, %v3482
      %3569 = vst.msk [vmem:[#allocation5 + $0xf8] sm:$0xff] %vm2916, %v3484
      %3570 = vst.msk [vmem:[#allocation5 + $0x110] sm:$0xff] %vm2916, %v3486
      %3571 = vst.msk [vmem:[#allocation5 + $0x128] sm:$0xff] %vm2916, %v3488
      %3572 = vst.msk [vmem:[#allocation5 + $0x140] sm:$0xff] %vm2916, %v3490
      %3573 = vst.msk [vmem:[#allocation5 + $0x158] sm:$0xff] %vm2916, %v3492
      %3574 = vst.msk [vmem:[#allocation5 + $0x170] sm:$0xff] %vm2916, %v3494
      %3575 = vst.msk [vmem:[#allocation5 + $0x188] sm:$0xff] %vm2916, %v3496
      %3576 = vst.msk [vmem:[#allocation5 + $0x1a0] sm:$0xff] %vm2916, %v3498
      %3577 = vst.msk [vmem:[#allocation5 + $0x1b8] sm:$0xff] %vm2916, %v3500
      %3578 = vst.msk [vmem:[#allocation5 + $0x1d0] sm:$0xff] %vm2916, %v3502
      %3579 = vst.msk [vmem:[#allocation5 + $0x1e8] sm:$0xff] %vm2916, %v3504
      %3580 = vst.msk [vmem:[#allocation5 + $0x200] sm:$0xff] %vm2916, %v3506
      %3581 = vst.msk [vmem:[#allocation5 + $0x218] sm:$0xff] %vm2916, %v3508
      %3582 = vst.msk [vmem:[#allocation5 + $0x230] sm:$0xff] %vm2916, %v3510
      %3583 = vst.msk [vmem:[#allocation5 + $0x248] sm:$0xff] %vm2916, %v3512
      %3584 = vst.msk [vmem:[#allocation5 + $0x260] sm:$0xff] %vm2916, %v3514
      %3585 = vst.msk [vmem:[#allocation5 + $0x278] sm:$0xff] %vm2916, %v3516
      %3586 = vst.msk [vmem:[#allocation5 + $0x290] sm:$0xff] %vm2916, %v3518
      %3587 = vst.msk [vmem:[#allocation5 + $0x2a8] sm:$0xff] %vm2916, %v3520
      %3588 = vst.msk [vmem:[#allocation5 + $0x2c0] sm:$0xff] %vm2916, %v3522
      %3589 = vst.msk [vmem:[#allocation5 + $0x2d8] sm:$0xff] %vm2916, %v3524
      %3590 = vst.msk [vmem:[#allocation5 + $0x2f0] sm:$0xff] %vm2916, %v3526
      %v3591 = vld [vmem:[%s3398 + $0x1] sm:$0xff]
      %v3592 = vld [vmem:[%s3398 + $0x9] sm:$0xff]
      %v3593 = vld [vmem:[%s3398 + $0x19] sm:$0xff]
      %v3594 = vld [vmem:[%s3398 + $0x21] sm:$0xff]
      %v3595 = vld [vmem:[%s3398 + $0x31] sm:$0xff]
      %v3596 = vld [vmem:[%s3398 + $0x39] sm:$0xff]
      %v3597 = vld [vmem:[%s3398 + $0x49] sm:$0xff]
      %v3598 = vld [vmem:[%s3398 + $0x51] sm:$0xff]
      %v3599 = vld [vmem:[%s3398 + $0x61] sm:$0xff]
      %v3600 = vld [vmem:[%s3398 + $0x69] sm:$0xff]
      %v3601 = vld [vmem:[%s3398 + $0x79] sm:$0xff]
      %v3602 = vld [vmem:[%s3398 + $0x81] sm:$0xff]
      %v3603 = vld [vmem:[%s3398 + $0x91] sm:$0xff]
      %v3604 = vld [vmem:[%s3398 + $0x99] sm:$0xff]
      %v3605 = vld [vmem:[%s3398 + $0xa9] sm:$0xff]
      %v3606 = vld [vmem:[%s3398 + $0xb1] sm:$0xff]
      %v3607 = vld [vmem:[%s3398 + $0xc1] sm:$0xff]
      %v3608 = vld [vmem:[%s3398 + $0xc9] sm:$0xff]
      %v3609 = vld [vmem:[%s3398 + $0xd9] sm:$0xff]
      %v3610 = vld [vmem:[%s3398 + $0xe1] sm:$0xff]
      %v3611 = vld [vmem:[%s3398 + $0xf1] sm:$0xff]
      %v3612 = vld [vmem:[%s3398 + $0xf9] sm:$0xff]
      %v3613 = vld [vmem:[%s3398 + $0x109] sm:$0xff]
      %v3614 = vld [vmem:[%s3398 + $0x111] sm:$0xff]
      %v3615 = vld [vmem:[%s3398 + $0x121] sm:$0xff]
      %v3616 = vld [vmem:[%s3398 + $0x129] sm:$0xff]
      %v3617 = vld [vmem:[%s3398 + $0x139] sm:$0xff]
      %v3618 = vld [vmem:[%s3398 + $0x141] sm:$0xff]
      %v3619 = vld [vmem:[%s3398 + $0x151] sm:$0xff]
      %v3620 = vld [vmem:[%s3398 + $0x159] sm:$0xff]
      %v3621 = vld [vmem:[%s3398 + $0x169] sm:$0xff]
      %v3622 = vld [vmem:[%s3398 + $0x171] sm:$0xff]
      %3655 = vrot.lane.b32.xlu0 %v3591, 96
      %v3656 = vpop.permute.xlu0 %3655
      %3657 = vrot.lane.b32.xlu0 %v3592, 96
      %v3658 = vpop.permute.xlu0 %3657
      %3659 = vrot.lane.b32.xlu0 %v3593, 96
      %v3660 = vpop.permute.xlu0 %3659
      %3661 = vrot.lane.b32.xlu0 %v3594, 96
      %v3662 = vpop.permute.xlu0 %3661
      %3663 = vrot.lane.b32.xlu0 %v3595, 96
      %v3664 = vpop.permute.xlu0 %3663
      %3665 = vrot.lane.b32.xlu0 %v3596, 96
      %v3666 = vpop.permute.xlu0 %3665
      %3667 = vrot.lane.b32.xlu0 %v3597, 96
      %v3668 = vpop.permute.xlu0 %3667
      %3669 = vrot.lane.b32.xlu0 %v3598, 96
      %v3670 = vpop.permute.xlu0 %3669
      %3671 = vrot.lane.b32.xlu0 %v3599, 96
      %v3672 = vpop.permute.xlu0 %3671
      %3673 = vrot.lane.b32.xlu0 %v3600, 96
      %v3674 = vpop.permute.xlu0 %3673
      %3675 = vrot.lane.b32.xlu0 %v3601, 96
      %v3676 = vpop.permute.xlu0 %3675
      %3677 = vrot.lane.b32.xlu0 %v3602, 96
      %v3678 = vpop.permute.xlu0 %3677
      %3679 = vrot.lane.b32.xlu0 %v3603, 96
      %v3680 = vpop.permute.xlu0 %3679
      %3681 = vrot.lane.b32.xlu0 %v3604, 96
      %v3682 = vpop.permute.xlu0 %3681
      %3683 = vrot.lane.b32.xlu0 %v3605, 96
      %v3684 = vpop.permute.xlu0 %3683
      %3685 = vrot.lane.b32.xlu0 %v3606, 96
      %v3686 = vpop.permute.xlu0 %3685
      %3687 = vrot.lane.b32.xlu0 %v3607, 96
      %v3688 = vpop.permute.xlu0 %3687
      %3689 = vrot.lane.b32.xlu0 %v3608, 96
      %v3690 = vpop.permute.xlu0 %3689
      %3691 = vrot.lane.b32.xlu0 %v3609, 96
      %v3692 = vpop.permute.xlu0 %3691
      %3693 = vrot.lane.b32.xlu0 %v3610, 96
      %v3694 = vpop.permute.xlu0 %3693
      %3695 = vrot.lane.b32.xlu0 %v3611, 96
      %v3696 = vpop.permute.xlu0 %3695
      %3697 = vrot.lane.b32.xlu0 %v3612, 96
      %v3698 = vpop.permute.xlu0 %3697
      %3699 = vrot.lane.b32.xlu0 %v3613, 96
      %v3700 = vpop.permute.xlu0 %3699
      %3701 = vrot.lane.b32.xlu0 %v3614, 96
      %v3702 = vpop.permute.xlu0 %3701
      %3703 = vrot.lane.b32.xlu0 %v3615, 96
      %v3704 = vpop.permute.xlu0 %3703
      %3705 = vrot.lane.b32.xlu0 %v3616, 96
      %v3706 = vpop.permute.xlu0 %3705
      %3707 = vrot.lane.b32.xlu0 %v3617, 96
      %v3708 = vpop.permute.xlu0 %3707
      %3709 = vrot.lane.b32.xlu0 %v3618, 96
      %v3710 = vpop.permute.xlu0 %3709
      %3711 = vrot.lane.b32.xlu0 %v3619, 96
      %v3712 = vpop.permute.xlu0 %3711
      %3713 = vrot.lane.b32.xlu0 %v3620, 96
      %v3714 = vpop.permute.xlu0 %3713
      %3715 = vrot.lane.b32.xlu0 %v3621, 96
      %v3716 = vpop.permute.xlu0 %3715
      %3717 = vrot.lane.b32.xlu0 %v3622, 96
      %v3718 = vpop.permute.xlu0 %3717
      %3751 = vst.msk [vmem:[#allocation5 + $0x8] sm:$0xff] %vm3109, %v3656
      %3752 = vst.msk [vmem:[#allocation5 + $0x20] sm:$0xff] %vm3109, %v3658
      %3753 = vst.msk [vmem:[#allocation5 + $0x38] sm:$0xff] %vm3109, %v3660
      %3754 = vst.msk [vmem:[#allocation5 + $0x50] sm:$0xff] %vm3109, %v3662
      %3755 = vst.msk [vmem:[#allocation5 + $0x68] sm:$0xff] %vm3109, %v3664
      %3756 = vst.msk [vmem:[#allocation5 + $0x80] sm:$0xff] %vm3109, %v3666
      %3757 = vst.msk [vmem:[#allocation5 + $0x98] sm:$0xff] %vm3109, %v3668
      %3758 = vst.msk [vmem:[#allocation5 + $0xb0] sm:$0xff] %vm3109, %v3670
      %3759 = vst.msk [vmem:[#allocation5 + $0xc8] sm:$0xff] %vm3109, %v3672
      %3760 = vst.msk [vmem:[#allocation5 + $0xe0] sm:$0xff] %vm3109, %v3674
      %3761 = vst.msk [vmem:[#allocation5 + $0xf8] sm:$0xff] %vm3109, %v3676
      %3762 = vst.msk [vmem:[#allocation5 + $0x110] sm:$0xff] %vm3109, %v3678
      %3763 = vst.msk [vmem:[#allocation5 + $0x128] sm:$0xff] %vm3109, %v3680
      %3764 = vst.msk [vmem:[#allocation5 + $0x140] sm:$0xff] %vm3109, %v3682
      %3765 = vst.msk [vmem:[#allocation5 + $0x158] sm:$0xff] %vm3109, %v3684
      %3766 = vst.msk [vmem:[#allocation5 + $0x170] sm:$0xff] %vm3109, %v3686
      %3767 = vst.msk [vmem:[#allocation5 + $0x188] sm:$0xff] %vm3109, %v3688
      %3768 = vst.msk [vmem:[#allocation5 + $0x1a0] sm:$0xff] %vm3109, %v3690
      %3769 = vst.msk [vmem:[#allocation5 + $0x1b8] sm:$0xff] %vm3109, %v3692
      %3770 = vst.msk [vmem:[#allocation5 + $0x1d0] sm:$0xff] %vm3109, %v3694
      %3771 = vst.msk [vmem:[#allocation5 + $0x1e8] sm:$0xff] %vm3109, %v3696
      %3772 = vst.msk [vmem:[#allocation5 + $0x200] sm:$0xff] %vm3109, %v3698
      %3773 = vst.msk [vmem:[#allocation5 + $0x218] sm:$0xff] %vm3109, %v3700
      %3774 = vst.msk [vmem:[#allocation5 + $0x230] sm:$0xff] %vm3109, %v3702
      %3775 = vst.msk [vmem:[#allocation5 + $0x248] sm:$0xff] %vm3109, %v3704
      %3776 = vst.msk [vmem:[#allocation5 + $0x260] sm:$0xff] %vm3109, %v3706
      %3777 = vst.msk [vmem:[#allocation5 + $0x278] sm:$0xff] %vm3109, %v3708
      %3778 = vst.msk [vmem:[#allocation5 + $0x290] sm:$0xff] %vm3109, %v3710
      %3779 = vst.msk [vmem:[#allocation5 + $0x2a8] sm:$0xff] %vm3109, %v3712
      %3780 = vst.msk [vmem:[#allocation5 + $0x2c0] sm:$0xff] %vm3109, %v3714
      %3781 = vst.msk [vmem:[#allocation5 + $0x2d8] sm:$0xff] %vm3109, %v3716
      %3782 = vst.msk [vmem:[#allocation5 + $0x2f0] sm:$0xff] %vm3109, %v3718
      %v3783 = vld [vmem:[%s3398 + $0x2] sm:$0xff]
      %v3784 = vld [vmem:[%s3398 + $0xa] sm:$0xff]
      %v3785 = vld [vmem:[%s3398 + $0x1a] sm:$0xff]
      %v3786 = vld [vmem:[%s3398 + $0x22] sm:$0xff]
      %v3787 = vld [vmem:[%s3398 + $0x32] sm:$0xff]
      %v3788 = vld [vmem:[%s3398 + $0x3a] sm:$0xff]
      %v3789 = vld [vmem:[%s3398 + $0x4a] sm:$0xff]
      %v3790 = vld [vmem:[%s3398 + $0x52] sm:$0xff]
      %v3791 = vld [vmem:[%s3398 + $0x62] sm:$0xff]
      %v3792 = vld [vmem:[%s3398 + $0x6a] sm:$0xff]
      %v3793 = vld [vmem:[%s3398 + $0x7a] sm:$0xff]
      %v3794 = vld [vmem:[%s3398 + $0x82] sm:$0xff]
      %v3795 = vld [vmem:[%s3398 + $0x92] sm:$0xff]
      %v3796 = vld [vmem:[%s3398 + $0x9a] sm:$0xff]
      %v3797 = vld [vmem:[%s3398 + $0xaa] sm:$0xff]
      %v3798 = vld [vmem:[%s3398 + $0xb2] sm:$0xff]
      %v3799 = vld [vmem:[%s3398 + $0xc2] sm:$0xff]
      %v3800 = vld [vmem:[%s3398 + $0xca] sm:$0xff]
      %v3801 = vld [vmem:[%s3398 + $0xda] sm:$0xff]
      %v3802 = vld [vmem:[%s3398 + $0xe2] sm:$0xff]
      %v3803 = vld [vmem:[%s3398 + $0xf2] sm:$0xff]
      %v3804 = vld [vmem:[%s3398 + $0xfa] sm:$0xff]
      %v3805 = vld [vmem:[%s3398 + $0x10a] sm:$0xff]
      %v3806 = vld [vmem:[%s3398 + $0x112] sm:$0xff]
      %v3807 = vld [vmem:[%s3398 + $0x122] sm:$0xff]
      %v3808 = vld [vmem:[%s3398 + $0x12a] sm:$0xff]
      %v3809 = vld [vmem:[%s3398 + $0x13a] sm:$0xff]
      %v3810 = vld [vmem:[%s3398 + $0x142] sm:$0xff]
      %v3811 = vld [vmem:[%s3398 + $0x152] sm:$0xff]
      %v3812 = vld [vmem:[%s3398 + $0x15a] sm:$0xff]
      %v3813 = vld [vmem:[%s3398 + $0x16a] sm:$0xff]
      %v3814 = vld [vmem:[%s3398 + $0x172] sm:$0xff]
      %3815 = vst.msk [vmem:[#allocation5 + $0x10] sm:$0xff] %vm2410, %v3783
      %3816 = vst.msk [vmem:[#allocation5 + $0x28] sm:$0xff] %vm2410, %v3784
      %3817 = vst.msk [vmem:[#allocation5 + $0x40] sm:$0xff] %vm2410, %v3785
      %3818 = vst.msk [vmem:[#allocation5 + $0x58] sm:$0xff] %vm2410, %v3786
      %3819 = vst.msk [vmem:[#allocation5 + $0x70] sm:$0xff] %vm2410, %v3787
      %3820 = vst.msk [vmem:[#allocation5 + $0x88] sm:$0xff] %vm2410, %v3788
      %3821 = vst.msk [vmem:[#allocation5 + $0xa0] sm:$0xff] %vm2410, %v3789
      %3822 = vst.msk [vmem:[#allocation5 + $0xb8] sm:$0xff] %vm2410, %v3790
      %3823 = vst.msk [vmem:[#allocation5 + $0xd0] sm:$0xff] %vm2410, %v3791
      %3824 = vst.msk [vmem:[#allocation5 + $0xe8] sm:$0xff] %vm2410, %v3792
      %3825 = vst.msk [vmem:[#allocation5 + $0x100] sm:$0xff] %vm2410, %v3793
      %3826 = vst.msk [vmem:[#allocation5 + $0x118] sm:$0xff] %vm2410, %v3794
      %3827 = vst.msk [vmem:[#allocation5 + $0x130] sm:$0xff] %vm2410, %v3795
      %3828 = vst.msk [vmem:[#allocation5 + $0x148] sm:$0xff] %vm2410, %v3796
      %3829 = vst.msk [vmem:[#allocation5 + $0x160] sm:$0xff] %vm2410, %v3797
      %3830 = vst.msk [vmem:[#allocation5 + $0x178] sm:$0xff] %vm2410, %v3798
      %3831 = vst.msk [vmem:[#allocation5 + $0x190] sm:$0xff] %vm2410, %v3799
      %3832 = vst.msk [vmem:[#allocation5 + $0x1a8] sm:$0xff] %vm2410, %v3800
      %3833 = vst.msk [vmem:[#allocation5 + $0x1c0] sm:$0xff] %vm2410, %v3801
      %3834 = vst.msk [vmem:[#allocation5 + $0x1d8] sm:$0xff] %vm2410, %v3802
      %3835 = vst.msk [vmem:[#allocation5 + $0x1f0] sm:$0xff] %vm2410, %v3803
      %3836 = vst.msk [vmem:[#allocation5 + $0x208] sm:$0xff] %vm2410, %v3804
      %3837 = vst.msk [vmem:[#allocation5 + $0x220] sm:$0xff] %vm2410, %v3805
      %3838 = vst.msk [vmem:[#allocation5 + $0x238] sm:$0xff] %vm2410, %v3806
      %3839 = vst.msk [vmem:[#allocation5 + $0x250] sm:$0xff] %vm2410, %v3807
      %3840 = vst.msk [vmem:[#allocation5 + $0x268] sm:$0xff] %vm2410, %v3808
      %3841 = vst.msk [vmem:[#allocation5 + $0x280] sm:$0xff] %vm2410, %v3809
      %3842 = vst.msk [vmem:[#allocation5 + $0x298] sm:$0xff] %vm2410, %v3810
      %3843 = vst.msk [vmem:[#allocation5 + $0x2b0] sm:$0xff] %vm2410, %v3811
      %3844 = vst.msk [vmem:[#allocation5 + $0x2c8] sm:$0xff] %vm2410, %v3812
      %3845 = vst.msk [vmem:[#allocation5 + $0x2e0] sm:$0xff] %vm2410, %v3813
      %3846 = vst.msk [vmem:[#allocation5 + $0x2f8] sm:$0xff] %vm2410, %v3814
      %v3847 = vld [vmem:[#allocation5] sm:$0xff]
      %v3848 = vld [vmem:[#allocation5 + $0x8] sm:$0xff]
      %v3849 = vld [vmem:[#allocation5 + $0x10] sm:$0xff]
      %v3850 = vld [vmem:[#allocation5 + $0x18] sm:$0xff]
      %v3851 = vld [vmem:[#allocation5 + $0x20] sm:$0xff]
      %v3852 = vld [vmem:[#allocation5 + $0x28] sm:$0xff]
      %v3853 = vld [vmem:[#allocation5 + $0x30] sm:$0xff]
      %v3854 = vld [vmem:[#allocation5 + $0x38] sm:$0xff]
      %v3855 = vld [vmem:[#allocation5 + $0x40] sm:$0xff]
      %v3856 = vld [vmem:[#allocation5 + $0x48] sm:$0xff]
      %v3857 = vld [vmem:[#allocation5 + $0x50] sm:$0xff]
      %v3858 = vld [vmem:[#allocation5 + $0x58] sm:$0xff]
      %v3859 = vld [vmem:[#allocation5 + $0x60] sm:$0xff]
      %v3860 = vld [vmem:[#allocation5 + $0x68] sm:$0xff]
      %v3861 = vld [vmem:[#allocation5 + $0x70] sm:$0xff]
      %v3862 = vld [vmem:[#allocation5 + $0x78] sm:$0xff]
      %v3863 = vld [vmem:[#allocation5 + $0x80] sm:$0xff]
      %v3864 = vld [vmem:[#allocation5 + $0x88] sm:$0xff]
      %v3865 = vld [vmem:[#allocation5 + $0x90] sm:$0xff]
      %v3866 = vld [vmem:[#allocation5 + $0x98] sm:$0xff]
      %v3867 = vld [vmem:[#allocation5 + $0xa0] sm:$0xff]
      %v3868 = vld [vmem:[#allocation5 + $0xa8] sm:$0xff]
      %v3869 = vld [vmem:[#allocation5 + $0xb0] sm:$0xff]
      %v3870 = vld [vmem:[#allocation5 + $0xb8] sm:$0xff]
      %v3871 = vld [vmem:[#allocation5 + $0xc0] sm:$0xff]
      %v3872 = vld [vmem:[#allocation5 + $0xc8] sm:$0xff]
      %v3873 = vld [vmem:[#allocation5 + $0xd0] sm:$0xff]
      %v3874 = vld [vmem:[#allocation5 + $0xd8] sm:$0xff]
      %v3875 = vld [vmem:[#allocation5 + $0xe0] sm:$0xff]
      %v3876 = vld [vmem:[#allocation5 + $0xe8] sm:$0xff]
      %v3877 = vld [vmem:[#allocation5 + $0xf0] sm:$0xff]
      %v3878 = vld [vmem:[#allocation5 + $0xf8] sm:$0xff]
      %v3879 = vld [vmem:[#allocation5 + $0x100] sm:$0xff]
      %v3880 = vld [vmem:[#allocation5 + $0x108] sm:$0xff]
      %v3881 = vld [vmem:[#allocation5 + $0x110] sm:$0xff]
      %v3882 = vld [vmem:[#allocation5 + $0x118] sm:$0xff]
      %v3883 = vld [vmem:[#allocation5 + $0x120] sm:$0xff]
      %v3884 = vld [vmem:[#allocation5 + $0x128] sm:$0xff]
      %v3885 = vld [vmem:[#allocation5 + $0x130] sm:$0xff]
      %v3886 = vld [vmem:[#allocation5 + $0x138] sm:$0xff]
      %v3887 = vld [vmem:[#allocation5 + $0x140] sm:$0xff]
      %v3888 = vld [vmem:[#allocation5 + $0x148] sm:$0xff]
      %v3889 = vld [vmem:[#allocation5 + $0x150] sm:$0xff]
      %v3890 = vld [vmem:[#allocation5 + $0x158] sm:$0xff]
      %v3891 = vld [vmem:[#allocation5 + $0x160] sm:$0xff]
      %v3892 = vld [vmem:[#allocation5 + $0x168] sm:$0xff]
      %v3893 = vld [vmem:[#allocation5 + $0x170] sm:$0xff]
      %v3894 = vld [vmem:[#allocation5 + $0x178] sm:$0xff]
      %v3895 = vld [vmem:[#allocation5 + $0x180] sm:$0xff]
      %v3896 = vld [vmem:[#allocation5 + $0x188] sm:$0xff]
      %v3897 = vld [vmem:[#allocation5 + $0x190] sm:$0xff]
      %v3898 = vld [vmem:[#allocation5 + $0x198] sm:$0xff]
      %v3899 = vld [vmem:[#allocation5 + $0x1a0] sm:$0xff]
      %v3900 = vld [vmem:[#allocation5 + $0x1a8] sm:$0xff]
      %v3901 = vld [vmem:[#allocation5 + $0x1b0] sm:$0xff]
      %v3902 = vld [vmem:[#allocation5 + $0x1b8] sm:$0xff]
      %v3903 = vld [vmem:[#allocation5 + $0x1c0] sm:$0xff]
      %v3904 = vld [vmem:[#allocation5 + $0x1c8] sm:$0xff]
      %v3905 = vld [vmem:[#allocation5 + $0x1d0] sm:$0xff]
      %v3906 = vld [vmem:[#allocation5 + $0x1d8] sm:$0xff]
      %v3907 = vld [vmem:[#allocation5 + $0x1e0] sm:$0xff]
      %v3908 = vld [vmem:[#allocation5 + $0x1e8] sm:$0xff]
      %v3909 = vld [vmem:[#allocation5 + $0x1f0] sm:$0xff]
      %v3910 = vld [vmem:[#allocation5 + $0x1f8] sm:$0xff]
      %v3911 = vld [vmem:[#allocation5 + $0x200] sm:$0xff]
      %v3912 = vld [vmem:[#allocation5 + $0x208] sm:$0xff]
      %v3913 = vld [vmem:[#allocation5 + $0x210] sm:$0xff]
      %v3914 = vld [vmem:[#allocation5 + $0x218] sm:$0xff]
      %v3915 = vld [vmem:[#allocation5 + $0x220] sm:$0xff]
      %v3916 = vld [vmem:[#allocation5 + $0x228] sm:$0xff]
      %v3917 = vld [vmem:[#allocation5 + $0x230] sm:$0xff]
      %v3918 = vld [vmem:[#allocation5 + $0x238] sm:$0xff]
      %v3919 = vld [vmem:[#allocation5 + $0x240] sm:$0xff]
      %v3920 = vld [vmem:[#allocation5 + $0x248] sm:$0xff]
      %v3921 = vld [vmem:[#allocation5 + $0x250] sm:$0xff]
      %v3922 = vld [vmem:[#allocation5 + $0x258] sm:$0xff]
      %v3923 = vld [vmem:[#allocation5 + $0x260] sm:$0xff]
      %v3924 = vld [vmem:[#allocation5 + $0x268] sm:$0xff]
      %v3925 = vld [vmem:[#allocation5 + $0x270] sm:$0xff]
      %v3926 = vld [vmem:[#allocation5 + $0x278] sm:$0xff]
      %v3927 = vld [vmem:[#allocation5 + $0x280] sm:$0xff]
      %v3928 = vld [vmem:[#allocation5 + $0x288] sm:$0xff]
      %v3929 = vld [vmem:[#allocation5 + $0x290] sm:$0xff]
      %v3930 = vld [vmem:[#allocation5 + $0x298] sm:$0xff]
      %v3931 = vld [vmem:[#allocation5 + $0x2a0] sm:$0xff]
      %v3932 = vld [vmem:[#allocation5 + $0x2a8] sm:$0xff]
      %v3933 = vld [vmem:[#allocation5 + $0x2b0] sm:$0xff]
      %v3934 = vld [vmem:[#allocation5 + $0x2b8] sm:$0xff]
      %v3935 = vld [vmem:[#allocation5 + $0x2c0] sm:$0xff]
      %v3936 = vld [vmem:[#allocation5 + $0x2c8] sm:$0xff]
      %v3937 = vld [vmem:[#allocation5 + $0x2d0] sm:$0xff]
      %v3938 = vld [vmem:[#allocation5 + $0x2d8] sm:$0xff]
      %v3939 = vld [vmem:[#allocation5 + $0x2e0] sm:$0xff]
      %v3940 = vld [vmem:[#allocation5 + $0x2e8] sm:$0xff]
      %v3941 = vld [vmem:[#allocation5 + $0x2f0] sm:$0xff]
      %v3942 = vld [vmem:[#allocation5 + $0x2f8] sm:$0xff]
      %v3943 = vld [vmem:[%s3] sm:$0xff]
      %v3944 = vld [vmem:[%s3 + $0x8] sm:$0xff]
      %v3945 = vld [vmem:[%s3 + $0x10] sm:$0xff]
      %v3946 = vld [vmem:[%s3 + $0x18] sm:$0xff]
      %v3947 = vld [vmem:[%s3 + $0x20] sm:$0xff]
      %v3948 = vld [vmem:[%s3 + $0x28] sm:$0xff]
      %v3949 = vld [vmem:[%s3 + $0x30] sm:$0xff]
      %v3950 = vld [vmem:[%s3 + $0x38] sm:$0xff]
      %v3951 = vld [vmem:[%s3 + $0x40] sm:$0xff]
      %v3952 = vld [vmem:[%s3 + $0x48] sm:$0xff]
      %v3953 = vld [vmem:[%s3 + $0x50] sm:$0xff]
      %v3954 = vld [vmem:[%s3 + $0x58] sm:$0xff]
      %v3955 = vld [vmem:[%s3 + $0x60] sm:$0xff]
      %v3956 = vld [vmem:[%s3 + $0x68] sm:$0xff]
      %v3957 = vld [vmem:[%s3 + $0x70] sm:$0xff]
      %v3958 = vld [vmem:[%s3 + $0x78] sm:$0xff]
      %v3959 = vld [vmem:[%s3 + $0x80] sm:$0xff]
      %v3960 = vld [vmem:[%s3 + $0x88] sm:$0xff]
      %v3961 = vld [vmem:[%s3 + $0x90] sm:$0xff]
      %v3962 = vld [vmem:[%s3 + $0x98] sm:$0xff]
      %v3963 = vld [vmem:[%s3 + $0xa0] sm:$0xff]
      %v3964 = vld [vmem:[%s3 + $0xa8] sm:$0xff]
      %v3965 = vld [vmem:[%s3 + $0xb0] sm:$0xff]
      %v3966 = vld [vmem:[%s3 + $0xb8] sm:$0xff]
      %v3967 = vld [vmem:[%s3 + $0xc0] sm:$0xff]
      %v3968 = vld [vmem:[%s3 + $0xc8] sm:$0xff]
      %v3969 = vld [vmem:[%s3 + $0xd0] sm:$0xff]
      %v3970 = vld [vmem:[%s3 + $0xd8] sm:$0xff]
      %v3971 = vld [vmem:[%s3 + $0xe0] sm:$0xff]
      %v3972 = vld [vmem:[%s3 + $0xe8] sm:$0xff]
      %v3973 = vld [vmem:[%s3 + $0xf0] sm:$0xff]
      %v3974 = vld [vmem:[%s3 + $0xf8] sm:$0xff]
      %v3975 = vld [vmem:[%s3 + $0x100] sm:$0xff]
      %v3976 = vld [vmem:[%s3 + $0x108] sm:$0xff]
      %v3977 = vld [vmem:[%s3 + $0x110] sm:$0xff]
      %v3978 = vld [vmem:[%s3 + $0x118] sm:$0xff]
      %v3979 = vld [vmem:[%s4] sm:$0x1]
      %v3981 = vlaneseq
      %v3982 = vshrl.u32 %v3981, 7
      %v3983 = vsub.s32 0, %v3982
      %v3984 = vrot.slane %v3979, %v3983
      %v3987 = vsel %vm2410, %v3849, 0
      %v3990 = vsel %vm2410, %v3852, 0
      %v3993 = vsel %vm2410, %v3855, 0
      %v3996 = vsel %vm2410, %v3858, 0
      %v3999 = vsel %vm2410, %v3861, 0
      %v4002 = vsel %vm2410, %v3864, 0
      %v4005 = vsel %vm2410, %v3867, 0
      %v4008 = vsel %vm2410, %v3870, 0
      %v4011 = vsel %vm2410, %v3873, 0
      %v4014 = vsel %vm2410, %v3876, 0
      %v4017 = vsel %vm2410, %v3879, 0
      %v4020 = vsel %vm2410, %v3882, 0
      %v4023 = vsel %vm2410, %v3885, 0
      %v4026 = vsel %vm2410, %v3888, 0
      %v4029 = vsel %vm2410, %v3891, 0
      %v4032 = vsel %vm2410, %v3894, 0
      %v4035 = vsel %vm2410, %v3897, 0
      %v4038 = vsel %vm2410, %v3900, 0
      %v4041 = vsel %vm2410, %v3903, 0
      %v4044 = vsel %vm2410, %v3906, 0
      %v4047 = vsel %vm2410, %v3909, 0
      %v4050 = vsel %vm2410, %v3912, 0
      %v4053 = vsel %vm2410, %v3915, 0
      %v4056 = vsel %vm2410, %v3918, 0
      %v4059 = vsel %vm2410, %v3921, 0
      %v4062 = vsel %vm2410, %v3924, 0
      %v4065 = vsel %vm2410, %v3927, 0
      %v4068 = vsel %vm2410, %v3930, 0
      %v4071 = vsel %vm2410, %v3933, 0
      %v4074 = vsel %vm2410, %v3936, 0
      %v4077 = vsel %vm2410, %v3939, 0
      %v4080 = vsel %vm2410, %v3942, 0
      %4082 = vmatprep.subr.mxu0 0.0
      %4083 = vmatpush1.msra.mxu0 %v3943
      %4084 = vmatprep.subr.mxu0 0.0
      %4085 = vmatpush1.msra.mxu0 %v3944
      %4086 = vmatprep.subr.mxu0 0.0
      %4087 = vmatpush1.msra.mxu0 %v3945
      %4088 = vmatprep.subr.mxu0 0.0
      %4089 = vmatpush1.msra.mxu0 %v3946
      %4090 = vmatprep.subr.mxu0 0.0
      %4091 = vmatpush1.msra.mxu0 %v3947
      %4092 = vmatprep.subr.mxu0 0.0
      %4093 = vmatpush1.msra.mxu0 %v3948
      %4094 = vmatprep.subr.mxu0 0.0
      %4095 = vmatpush1.msra.mxu0 %v3949
      %4096 = vmatprep.subr.mxu0 0.0
      %4097 = vmatpush1.msra.mxu0 %v3950
      %4098 = vmatprep.subr.mxu0 0.0
      %4099 = vmatpush1.msra.mxu0 %v3951
      %4100 = vmatprep.subr.mxu0 0.0
      %4101 = vmatpush1.msra.mxu0 %v3952
      %4102 = vmatprep.subr.mxu0 0.0
      %4103 = vmatpush1.msra.mxu0 %v3953
      %4104 = vmatprep.subr.mxu0 0.0
      %4105 = vmatpush1.msra.mxu0 %v3954
      %4106 = vmatprep.subr.mxu0 0.0
      %4107 = vmatpush1.msra.mxu0 %v3955
      %4108 = vmatprep.subr.mxu0 0.0
      %4109 = vmatpush1.msra.mxu0 %v3956
      %4110 = vmatprep.subr.mxu0 0.0
      %4111 = vmatpush1.msra.mxu0 %v3957
      %4112 = vmatprep.subr.mxu0 0.0
      %4113 = vmatpush1.msra.mxu0 %v3958
      %4114 = vmatprep.subr.mxu0 0.0
      %4115 = vmatpush1.msra.mxu0 %v3959
      %4116 = vmatprep.subr.mxu0 0.0
      %4117 = vmatpush1.msra.mxu0 %v3960
      %4118 = vmatprep.subr.mxu0 0.0
      %4119 = vmatpush1.msra.mxu0 %v3961
      %4120 = vmatprep.subr.mxu0 0.0
      %4121 = vmatpush1.msra.mxu0 %v3962
      %4122 = vmatprep.subr.mxu0 0.0
      %4123 = vmatpush1.msra.mxu0 %v3963
      %4124 = vmatprep.subr.mxu0 0.0
      %4125 = vmatpush1.msra.mxu0 %v3964
      %4126 = vmatprep.subr.mxu0 0.0
      %4127 = vmatpush1.msra.mxu0 %v3965
      %4128 = vmatprep.subr.mxu0 0.0
      %4129 = vmatpush1.msra.mxu0 %v3966
      %4130 = vmatprep.subr.mxu0 0.0
      %4131 = vmatpush1.msra.mxu0 %v3967
      %4132 = vmatprep.subr.mxu0 0.0
      %4133 = vmatpush1.msra.mxu0 %v3968
      %4134 = vmatprep.subr.mxu0 0.0
      %4135 = vmatpush1.msra.mxu0 %v3969
      %4136 = vmatprep.subr.mxu0 0.0
      %4137 = vmatpush1.msra.mxu0 %v3970
      %4138 = vmatprep.subr.mxu0 0.0
      %4139 = vmatpush1.msra.mxu0 %v3971
      %4140 = vmatprep.subr.mxu0 0.0
      %4141 = vmatpush1.msra.mxu0 %v3972
      %4142 = vmatprep.subr.mxu0 0.0
      %4143 = vmatpush1.msra.mxu0 %v3973
      %4144 = vmatprep.subr.mxu0 0.0
      %4145 = vmatpush1.msra.mxu0 %v3974
      %4146 = vmatprep.mubr.f32.mxu0 %v3848
      %4147 = vmatmul.mubr.f32.gmra.mrb[0].mxu0 %v3847
      %v4148 = vpop.f32.mrb[0].mxu0
      %v4149 = vadd.f32 %v3984, %v4148
      %v4150 = vpop.f32.mrb[0].mxu0
      %4151 = vmatprep.mubr.f32.mxu0 %v3851
      %4152 = vmatmul.mubr.f32.gmra.mrb[0].mxu0 %v3850
      %v4153 = vpop.f32.mrb[0].mxu0
      %v4154 = vadd.f32 %v3984, %v4153
      %v4155 = vpop.f32.mrb[0].mxu0
      %4156 = vmatprep.mubr.f32.mxu0 %v3854
      %4157 = vmatmul.mubr.f32.gmra.mrb[0].mxu0 %v3853
      %v4158 = vpop.f32.mrb[0].mxu0
      %v4159 = vadd.f32 %v3984, %v4158
      %v4160 = vpop.f32.mrb[0].mxu0
      %4161 = vmatprep.mubr.f32.mxu0 %v3857
      %4162 = vmatmul.mubr.f32.gmra.mrb[0].mxu0 %v3856
      %v4163 = vpop.f32.mrb[0].mxu0
      %v4164 = vadd.f32 %v3984, %v4163
      %v4165 = vpop.f32.mrb[0].mxu0
      %4166 = vmatprep.mubr.f32.mxu0 %v3860
      %4167 = vmatmul.mubr.f32.gmra.mrb[0].mxu0 %v3859
      %v4168 = vpop.f32.mrb[0].mxu0
      %v4169 = vadd.f32 %v3984, %v4168
      %v4170 = vpop.f32.mrb[0].mxu0
      %4171 = vmatprep.mubr.f32.mxu0 %v3863
      %4172 = vmatmul.mubr.f32.gmra.mrb[0].mxu0 %v3862
      %v4173 = vpop.f32.mrb[0].mxu0
      %v4174 = vadd.f32 %v3984, %v4173
      %v4175 = vpop.f32.mrb[0].mxu0
      %4176 = vmatprep.mubr.f32.mxu0 %v3866
      %4177 = vmatmul.mubr.f32.gmra.mrb[0].mxu0 %v3865
      %v4178 = vpop.f32.mrb[0].mxu0
      %v4179 = vadd.f32 %v3984, %v4178
      %v4180 = vpop.f32.mrb[0].mxu0
      %4181 = vmatprep.mubr.f32.mxu0 %v3869
      %4182 = vmatmul.mubr.f32.gmra.mrb[0].mxu0 %v3868
      %v4183 = vpop.f32.mrb[0].mxu0
      %v4184 = vadd.f32 %v3984, %v4183
      %v4185 = vpop.f32.mrb[0].mxu0
      %4186 = vmatprep.mubr.f32.mxu0 %v3872
      %4187 = vmatmul.mubr.f32.gmra.mrb[0].mxu0 %v3871
      %v4188 = vpop.f32.mrb[0].mxu0
      %v4189 = vadd.f32 %v3984, %v4188
      %v4190 = vpop.f32.mrb[0].mxu0
      %4191 = vmatprep.mubr.f32.mxu0 %v3875
      %4192 = vmatmul.mubr.f32.gmra.mrb[0].mxu0 %v3874
      %v4193 = vpop.f32.mrb[0].mxu0
      %v4194 = vadd.f32 %v3984, %v4193
      %v4195 = vpop.f32.mrb[0].mxu0
      %4196 = vmatprep.mubr.f32.mxu0 %v3878
      %4197 = vmatmul.mubr.f32.gmra.mrb[0].mxu0 %v3877
      %v4198 = vpop.f32.mrb[0].mxu0
      %v4199 = vadd.f32 %v3984, %v4198
      %v4200 = vpop.f32.mrb[0].mxu0
      %4201 = vmatprep.mubr.f32.mxu0 %v3881
      %4202 = vmatmul.mubr.f32.gmra.mrb[0].mxu0 %v3880
      %v4203 = vpop.f32.mrb[0].mxu0
      %v4204 = vadd.f32 %v3984, %v4203
      %v4205 = vpop.f32.mrb[0].mxu0
      %4206 = vmatprep.mubr.f32.mxu0 %v3884
      %4207 = vmatmul.mubr.f32.gmra.mrb[0].mxu0 %v3883
      %v4208 = vpop.f32.mrb[0].mxu0
      %v4209 = vadd.f32 %v3984, %v4208
      %v4210 = vpop.f32.mrb[0].mxu0
      %4211 = vmatprep.mubr.f32.mxu0 %v3887
      %4212 = vmatmul.mubr.f32.gmra.mrb[0].mxu0 %v3886
      %v4213 = vpop.f32.mrb[0].mxu0
      %v4214 = vadd.f32 %v3984, %v4213
      %v4215 = vpop.f32.mrb[0].mxu0
      %4216 = vmatprep.mubr.f32.mxu0 %v3890
      %4217 = vmatmul.mubr.f32.gmra.mrb[0].mxu0 %v3889
      %v4218 = vpop.f32.mrb[0].mxu0
      %v4219 = vadd.f32 %v3984, %v4218
      %v4220 = vpop.f32.mrb[0].mxu0
      %4221 = vmatprep.mubr.f32.mxu0 %v3893
      %4222 = vmatmul.mubr.f32.gmra.mrb[0].mxu0 %v3892
      %v4223 = vpop.f32.mrb[0].mxu0
      %v4224 = vadd.f32 %v3984, %v4223
      %v4225 = vpop.f32.mrb[0].mxu0
      %4226 = vmatprep.mubr.f32.mxu0 %v3896
      %4227 = vmatmul.mubr.f32.gmra.mrb[0].mxu0 %v3895
      %v4228 = vpop.f32.mrb[0].mxu0
      %v4229 = vadd.f32 %v3984, %v4228
      %v4230 = vpop.f32.mrb[0].mxu0
      %4231 = vmatprep.mubr.f32.mxu0 %v3899
      %4232 = vmatmul.mubr.f32.gmra.mrb[0].mxu0 %v3898
      %v4233 = vpop.f32.mrb[0].mxu0
      %v4234 = vadd.f32 %v3984, %v4233
      %v4235 = vpop.f32.mrb[0].mxu0
      %4236 = vmatprep.mubr.f32.mxu0 %v3902
      %4237 = vmatmul.mubr.f32.gmra.mrb[0].mxu0 %v3901
      %v4238 = vpop.f32.mrb[0].mxu0
      %v4239 = vadd.f32 %v3984, %v4238
      %v4240 = vpop.f32.mrb[0].mxu0
      %4241 = vmatprep.mubr.f32.mxu0 %v3905
      %4242 = vmatmul.mubr.f32.gmra.mrb[0].mxu0 %v3904
      %v4243 = vpop.f32.mrb[0].mxu0
      %v4244 = vadd.f32 %v3984, %v4243
      %v4245 = vpop.f32.mrb[0].mxu0
      %4246 = vmatprep.mubr.f32.mxu0 %v3908
      %4247 = vmatmul.mubr.f32.gmra.mrb[0].mxu0 %v3907
      %v4248 = vpop.f32.mrb[0].mxu0
      %v4249 = vadd.f32 %v3984, %v4248
      %v4250 = vpop.f32.mrb[0].mxu0
      %4251 = vmatprep.mubr.f32.mxu0 %v3911
      %4252 = vmatmul.mubr.f32.gmra.mrb[0].mxu0 %v3910
      %v4253 = vpop.f32.mrb[0].mxu0
      %v4254 = vadd.f32 %v3984, %v4253
      %v4255 = vpop.f32.mrb[0].mxu0
      %4256 = vmatprep.mubr.f32.mxu0 %v3914
      %4257 = vmatmul.mubr.f32.gmra.mrb[0].mxu0 %v3913
      %v4258 = vpop.f32.mrb[0].mxu0
      %v4259 = vadd.f32 %v3984, %v4258
      %v4260 = vpop.f32.mrb[0].mxu0
      %4261 = vmatprep.mubr.f32.mxu0 %v3917
      %4262 = vmatmul.mubr.f32.gmra.mrb[0].mxu0 %v3916
      %v4263 = vpop.f32.mrb[0].mxu0
      %v4264 = vadd.f32 %v3984, %v4263
      %v4265 = vpop.f32.mrb[0].mxu0
      %4266 = vmatprep.mubr.f32.mxu0 %v3920
      %4267 = vmatmul.mubr.f32.gmra.mrb[0].mxu0 %v3919
      %v4268 = vpop.f32.mrb[0].mxu0
      %v4269 = vadd.f32 %v3984, %v4268
      %v4270 = vpop.f32.mrb[0].mxu0
      %4271 = vmatprep.mubr.f32.mxu0 %v3923
      %4272 = vmatmul.mubr.f32.gmra.mrb[0].mxu0 %v3922
      %v4273 = vpop.f32.mrb[0].mxu0
      %v4274 = vadd.f32 %v3984, %v4273
      %v4275 = vpop.f32.mrb[0].mxu0
      %4276 = vmatprep.mubr.f32.mxu0 %v3926
      %4277 = vmatmul.mubr.f32.gmra.mrb[0].mxu0 %v3925
      %v4278 = vpop.f32.mrb[0].mxu0
      %v4279 = vadd.f32 %v3984, %v4278
      %v4280 = vpop.f32.mrb[0].mxu0
      %4281 = vmatprep.mubr.f32.mxu0 %v3929
      %4282 = vmatmul.mubr.f32.gmra.mrb[0].mxu0 %v3928
      %v4283 = vpop.f32.mrb[0].mxu0
      %v4284 = vadd.f32 %v3984, %v4283
      %v4285 = vpop.f32.mrb[0].mxu0
      %4286 = vmatprep.mubr.f32.mxu0 %v3932
      %4287 = vmatmul.mubr.f32.gmra.mrb[0].mxu0 %v3931
      %v4288 = vpop.f32.mrb[0].mxu0
      %v4289 = vadd.f32 %v3984, %v4288
      %v4290 = vpop.f32.mrb[0].mxu0
      %4291 = vmatprep.mubr.f32.mxu0 %v3935
      %4292 = vmatmul.mubr.f32.gmra.mrb[0].mxu0 %v3934
      %v4293 = vpop.f32.mrb[0].mxu0
      %v4294 = vadd.f32 %v3984, %v4293
      %v4295 = vpop.f32.mrb[0].mxu0
      %4296 = vmatprep.mubr.f32.mxu0 %v3938
      %4297 = vmatmul.mubr.f32.gmra.mrb[0].mxu0 %v3937
      %v4298 = vpop.f32.mrb[0].mxu0
      %v4299 = vadd.f32 %v3984, %v4298
      %v4300 = vpop.f32.mrb[0].mxu0
      %4301 = vmatprep.mubr.f32.mxu0 %v3941
      %4302 = vmatmul.mubr.f32.gmra.mrb[0].mxu0 %v3940
      %v4303 = vpop.f32.mrb[0].mxu0
      %v4304 = vadd.f32 %v3984, %v4303
      %v4305 = vpop.f32.mrb[0].mxu0
      %4306 = vdwg.mxu0
      %4307 = vmatprep.subr.mxu0 0.0
      %4308 = vmatpush1.msra.mxu0 %v3975
      %4309 = vmatprep.subr.mxu0 0.0
      %4310 = vmatpush1.msra.mxu0 %v3976
      %4311 = vmatprep.subr.mxu0 0.0
      %4312 = vmatpush1.msra.mxu0 %v3977
      %4313 = vmatprep.subr.mxu0 0.0
      %4314 = vmatpush1.msra.mxu0 %v3978
      %4315 = vmatprep.subr.mxu0 0.0
      %4316 = vmatpush1.msra.mxu0 0.0
      %4317 = vmatprep.subr.mxu0 0.0
      %4318 = vmatpush1.msra.mxu0 0.0
      %4319 = vmatprep.subr.mxu0 0.0
      %4320 = vmatpush1.msra.mxu0 0.0
      %4321 = vmatprep.subr.mxu0 0.0
      %4322 = vmatpush1.msra.mxu0 0.0
      %4323 = vmatprep.subr.mxu0 0.0
      %4324 = vmatpush1.msra.mxu0 0.0
      %4325 = vmatprep.subr.mxu0 0.0
      %4326 = vmatpush1.msra.mxu0 0.0
      %4327 = vmatprep.subr.mxu0 0.0
      %4328 = vmatpush1.msra.mxu0 0.0
      %4329 = vmatprep.subr.mxu0 0.0
      %4330 = vmatpush1.msra.mxu0 0.0
      %4331 = vmatprep.subr.mxu0 0.0
      %4332 = vmatpush1.msra.mxu0 0.0
      %4333 = vmatprep.subr.mxu0 0.0
      %4334 = vmatpush1.msra.mxu0 0.0
      %4335 = vmatprep.subr.mxu0 0.0
      %4336 = vmatpush1.msra.mxu0 0.0
      %4337 = vmatprep.subr.mxu0 0.0
      %4338 = vmatpush1.msra.mxu0 0.0
      %4339 = vmatprep.subr.mxu0 0.0
      %4340 = vmatpush1.msra.mxu0 0.0
      %4341 = vmatprep.subr.mxu0 0.0
      %4342 = vmatpush1.msra.mxu0 0.0
      %4343 = vmatprep.subr.mxu0 0.0
      %4344 = vmatpush1.msra.mxu0 0.0
      %4345 = vmatprep.subr.mxu0 0.0
      %4346 = vmatpush1.msra.mxu0 0.0
      %4347 = vmatprep.subr.mxu0 0.0
      %4348 = vmatpush1.msra.mxu0 0.0
      %4349 = vmatprep.subr.mxu0 0.0
      %4350 = vmatpush1.msra.mxu0 0.0
      %4351 = vmatprep.subr.mxu0 0.0
      %4352 = vmatpush1.msra.mxu0 0.0
      %4353 = vmatprep.subr.mxu0 0.0
      %4354 = vmatpush1.msra.mxu0 0.0
      %4355 = vmatprep.subr.mxu0 0.0
      %4356 = vmatpush1.msra.mxu0 0.0
      %4357 = vmatprep.subr.mxu0 0.0
      %4358 = vmatpush1.msra.mxu0 0.0
      %4359 = vmatprep.subr.mxu0 0.0
      %4360 = vmatpush1.msra.mxu0 0.0
      %4361 = vmatprep.subr.mxu0 0.0
      %4362 = vmatpush1.msra.mxu0 0.0
      %4363 = vmatprep.subr.mxu0 0.0
      %4364 = vmatpush1.msra.mxu0 0.0
      %4365 = vmatprep.subr.mxu0 0.0
      %4366 = vmatpush1.msra.mxu0 0.0
      %4367 = vmatprep.subr.mxu0 0.0
      %4368 = vmatpush1.msra.mxu0 0.0
      %4369 = vmatprep.subr.mxu0 0.0
      %4370 = vmatpush1.msra.mxu0 0.0
      %4371 = vmatprep.mubr.f32.mxu0 0.0
      %4372 = vmatmul.mubr.f32.gmra.mrb[0].mxu0 %v3987
      %v4373 = vpop.f32.mrb[0].mxu0
      %v4374 = vadd.f32 %v4149, %v4373
      %v4375 = vpop.f32.mrb[0].mxu0
      %4376 = vmatprep.mubr.f32.mxu0 0.0
      %4377 = vmatmul.mubr.f32.gmra.mrb[0].mxu0 %v3990
      %v4378 = vpop.f32.mrb[0].mxu0
      %v4379 = vadd.f32 %v4154, %v4378
      %v4380 = vpop.f32.mrb[0].mxu0
      %4381 = vmatprep.mubr.f32.mxu0 0.0
      %4382 = vmatmul.mubr.f32.gmra.mrb[0].mxu0 %v3993
      %v4383 = vpop.f32.mrb[0].mxu0
      %v4384 = vadd.f32 %v4159, %v4383
      %v4385 = vpop.f32.mrb[0].mxu0
      %4386 = vmatprep.mubr.f32.mxu0 0.0
      %4387 = vmatmul.mubr.f32.gmra.mrb[0].mxu0 %v3996
      %v4388 = vpop.f32.mrb[0].mxu0
      %v4389 = vadd.f32 %v4164, %v4388
      %v4390 = vpop.f32.mrb[0].mxu0
      %4391 = vmatprep.mubr.f32.mxu0 0.0
      %4392 = vmatmul.mubr.f32.gmra.mrb[0].mxu0 %v3999
      %v4393 = vpop.f32.mrb[0].mxu0
      %v4394 = vadd.f32 %v4169, %v4393
      %v4395 = vpop.f32.mrb[0].mxu0
      %4396 = vmatprep.mubr.f32.mxu0 0.0
      %4397 = vmatmul.mubr.f32.gmra.mrb[0].mxu0 %v4002
      %v4398 = vpop.f32.mrb[0].mxu0
      %v4399 = vadd.f32 %v4174, %v4398
      %v4400 = vpop.f32.mrb[0].mxu0
      %4401 = vmatprep.mubr.f32.mxu0 0.0
      %4402 = vmatmul.mubr.f32.gmra.mrb[0].mxu0 %v4005
      %v4403 = vpop.f32.mrb[0].mxu0
      %v4404 = vadd.f32 %v4179, %v4403
      %v4405 = vpop.f32.mrb[0].mxu0
      %4406 = vmatprep.mubr.f32.mxu0 0.0
      %4407 = vmatmul.mubr.f32.gmra.mrb[0].mxu0 %v4008
      %v4408 = vpop.f32.mrb[0].mxu0
      %v4409 = vadd.f32 %v4184, %v4408
      %v4410 = vpop.f32.mrb[0].mxu0
      %4411 = vmatprep.mubr.f32.mxu0 0.0
      %4412 = vmatmul.mubr.f32.gmra.mrb[0].mxu0 %v4011
      %v4413 = vpop.f32.mrb[0].mxu0
      %v4414 = vadd.f32 %v4189, %v4413
      %v4415 = vpop.f32.mrb[0].mxu0
      %4416 = vmatprep.mubr.f32.mxu0 0.0
      %4417 = vmatmul.mubr.f32.gmra.mrb[0].mxu0 %v4014
      %v4418 = vpop.f32.mrb[0].mxu0
      %v4419 = vadd.f32 %v4194, %v4418
      %v4420 = vpop.f32.mrb[0].mxu0
      %4421 = vmatprep.mubr.f32.mxu0 0.0
      %4422 = vmatmul.mubr.f32.gmra.mrb[0].mxu0 %v4017
      %v4423 = vpop.f32.mrb[0].mxu0
      %v4424 = vadd.f32 %v4199, %v4423
      %v4425 = vpop.f32.mrb[0].mxu0
      %4426 = vmatprep.mubr.f32.mxu0 0.0
      %4427 = vmatmul.mubr.f32.gmra.mrb[0].mxu0 %v4020
      %v4428 = vpop.f32.mrb[0].mxu0
      %v4429 = vadd.f32 %v4204, %v4428
      %v4430 = vpop.f32.mrb[0].mxu0
      %4431 = vmatprep.mubr.f32.mxu0 0.0
      %4432 = vmatmul.mubr.f32.gmra.mrb[0].mxu0 %v4023
      %v4433 = vpop.f32.mrb[0].mxu0
      %v4434 = vadd.f32 %v4209, %v4433
      %v4435 = vpop.f32.mrb[0].mxu0
      %4436 = vmatprep.mubr.f32.mxu0 0.0
      %4437 = vmatmul.mubr.f32.gmra.mrb[0].mxu0 %v4026
      %v4438 = vpop.f32.mrb[0].mxu0
      %v4439 = vadd.f32 %v4214, %v4438
      %v4440 = vpop.f32.mrb[0].mxu0
      %4441 = vmatprep.mubr.f32.mxu0 0.0
      %4442 = vmatmul.mubr.f32.gmra.mrb[0].mxu0 %v4029
      %v4443 = vpop.f32.mrb[0].mxu0
      %v4444 = vadd.f32 %v4219, %v4443
      %v4445 = vpop.f32.mrb[0].mxu0
      %4446 = vmatprep.mubr.f32.mxu0 0.0
      %4447 = vmatmul.mubr.f32.gmra.mrb[0].mxu0 %v4032
      %v4448 = vpop.f32.mrb[0].mxu0
      %v4449 = vadd.f32 %v4224, %v4448
      %v4450 = vpop.f32.mrb[0].mxu0
      %4451 = vmatprep.mubr.f32.mxu0 0.0
      %4452 = vmatmul.mubr.f32.gmra.mrb[0].mxu0 %v4035
      %v4453 = vpop.f32.mrb[0].mxu0
      %v4454 = vadd.f32 %v4229, %v4453
      %v4455 = vpop.f32.mrb[0].mxu0
      %4456 = vmatprep.mubr.f32.mxu0 0.0
      %4457 = vmatmul.mubr.f32.gmra.mrb[0].mxu0 %v4038
      %v4458 = vpop.f32.mrb[0].mxu0
      %v4459 = vadd.f32 %v4234, %v4458
      %v4460 = vpop.f32.mrb[0].mxu0
      %4461 = vmatprep.mubr.f32.mxu0 0.0
      %4462 = vmatmul.mubr.f32.gmra.mrb[0].mxu0 %v4041
      %v4463 = vpop.f32.mrb[0].mxu0
      %v4464 = vadd.f32 %v4239, %v4463
      %v4465 = vpop.f32.mrb[0].mxu0
      %4466 = vmatprep.mubr.f32.mxu0 0.0
      %4467 = vmatmul.mubr.f32.gmra.mrb[0].mxu0 %v4044
      %v4468 = vpop.f32.mrb[0].mxu0
      %v4469 = vadd.f32 %v4244, %v4468
      %v4470 = vpop.f32.mrb[0].mxu0
      %4471 = vmatprep.mubr.f32.mxu0 0.0
      %4472 = vmatmul.mubr.f32.gmra.mrb[0].mxu0 %v4047
      %v4473 = vpop.f32.mrb[0].mxu0
      %v4474 = vadd.f32 %v4249, %v4473
      %v4475 = vpop.f32.mrb[0].mxu0
      %4476 = vmatprep.mubr.f32.mxu0 0.0
      %4477 = vmatmul.mubr.f32.gmra.mrb[0].mxu0 %v4050
      %v4478 = vpop.f32.mrb[0].mxu0
      %v4479 = vadd.f32 %v4254, %v4478
      %v4480 = vpop.f32.mrb[0].mxu0
      %4481 = vmatprep.mubr.f32.mxu0 0.0
      %4482 = vmatmul.mubr.f32.gmra.mrb[0].mxu0 %v4053
      %v4483 = vpop.f32.mrb[0].mxu0
      %v4484 = vadd.f32 %v4259, %v4483
      %v4485 = vpop.f32.mrb[0].mxu0
      %4486 = vmatprep.mubr.f32.mxu0 0.0
      %4487 = vmatmul.mubr.f32.gmra.mrb[0].mxu0 %v4056
      %v4488 = vpop.f32.mrb[0].mxu0
      %v4489 = vadd.f32 %v4264, %v4488
      %v4490 = vpop.f32.mrb[0].mxu0
      %4491 = vmatprep.mubr.f32.mxu0 0.0
      %4492 = vmatmul.mubr.f32.gmra.mrb[0].mxu0 %v4059
      %v4493 = vpop.f32.mrb[0].mxu0
      %v4494 = vadd.f32 %v4269, %v4493
      %v4495 = vpop.f32.mrb[0].mxu0
      %4496 = vmatprep.mubr.f32.mxu0 0.0
      %4497 = vmatmul.mubr.f32.gmra.mrb[0].mxu0 %v4062
      %v4498 = vpop.f32.mrb[0].mxu0
      %v4499 = vadd.f32 %v4274, %v4498
      %v4500 = vpop.f32.mrb[0].mxu0
      %4501 = vmatprep.mubr.f32.mxu0 0.0
      %4502 = vmatmul.mubr.f32.gmra.mrb[0].mxu0 %v4065
      %v4503 = vpop.f32.mrb[0].mxu0
      %v4504 = vadd.f32 %v4279, %v4503
      %v4505 = vpop.f32.mrb[0].mxu0
      %4506 = vmatprep.mubr.f32.mxu0 0.0
      %4507 = vmatmul.mubr.f32.gmra.mrb[0].mxu0 %v4068
      %v4508 = vpop.f32.mrb[0].mxu0
      %v4509 = vadd.f32 %v4284, %v4508
      %v4510 = vpop.f32.mrb[0].mxu0
      %4511 = vmatprep.mubr.f32.mxu0 0.0
      %4512 = vmatmul.mubr.f32.gmra.mrb[0].mxu0 %v4071
      %v4513 = vpop.f32.mrb[0].mxu0
      %v4514 = vadd.f32 %v4289, %v4513
      %v4515 = vpop.f32.mrb[0].mxu0
      %4516 = vmatprep.mubr.f32.mxu0 0.0
      %4517 = vmatmul.mubr.f32.gmra.mrb[0].mxu0 %v4074
      %v4518 = vpop.f32.mrb[0].mxu0
      %v4519 = vadd.f32 %v4294, %v4518
      %v4520 = vpop.f32.mrb[0].mxu0
      %4521 = vmatprep.mubr.f32.mxu0 0.0
      %4522 = vmatmul.mubr.f32.gmra.mrb[0].mxu0 %v4077
      %v4523 = vpop.f32.mrb[0].mxu0
      %v4524 = vadd.f32 %v4299, %v4523
      %v4525 = vpop.f32.mrb[0].mxu0
      %4526 = vmatprep.mubr.f32.mxu0 0.0
      %4527 = vmatmul.mubr.f32.gmra.mrb[0].mxu0 %v4080
      %v4528 = vpop.f32.mrb[0].mxu0
      %v4529 = vadd.f32 %v4304, %v4528
      %v4530 = vpop.f32.mrb[0].mxu0
      %4531 = vdwg.mxu0
      %v4532 = vmax.f32 %v4374, 0.0
      %v4533 = vmax.f32 %v4379, 0.0
      %v4534 = vmax.f32 %v4384, 0.0
      %v4535 = vmax.f32 %v4389, 0.0
      %v4536 = vmax.f32 %v4394, 0.0
      %v4537 = vmax.f32 %v4399, 0.0
      %v4538 = vmax.f32 %v4404, 0.0
      %v4539 = vmax.f32 %v4409, 0.0
      %v4540 = vmax.f32 %v4414, 0.0
      %v4541 = vmax.f32 %v4419, 0.0
      %v4542 = vmax.f32 %v4424, 0.0
      %v4543 = vmax.f32 %v4429, 0.0
      %v4544 = vmax.f32 %v4434, 0.0
      %v4545 = vmax.f32 %v4439, 0.0
      %v4546 = vmax.f32 %v4444, 0.0
      %v4547 = vmax.f32 %v4449, 0.0
      %v4548 = vmax.f32 %v4454, 0.0
      %v4549 = vmax.f32 %v4459, 0.0
      %v4550 = vmax.f32 %v4464, 0.0
      %v4551 = vmax.f32 %v4469, 0.0
      %v4552 = vmax.f32 %v4474, 0.0
      %v4553 = vmax.f32 %v4479, 0.0
      %v4554 = vmax.f32 %v4484, 0.0
      %v4555 = vmax.f32 %v4489, 0.0
      %v4556 = vmax.f32 %v4494, 0.0
      %v4557 = vmax.f32 %v4499, 0.0
      %v4558 = vmax.f32 %v4504, 0.0
      %v4559 = vmax.f32 %v4509, 0.0
      %v4560 = vmax.f32 %v4514, 0.0
      %v4561 = vmax.f32 %v4519, 0.0
      %v4562 = vmax.f32 %v4524, 0.0
      %v4563 = vmax.f32 %v4529, 0.0
      %v4564 = vld [vmem:[%s5] sm:$0xff]
      %v4565 = vld [vmem:[%s5 + $0x8] sm:$0xff]
      %v4566 = vld [vmem:[%s5 + $0x10] sm:$0xff]
      %v4567 = vld [vmem:[%s5 + $0x18] sm:$0xff]
      %v4568 = vld [vmem:[%s6] sm:$0x1]
      %v4570 = vlaneseq
      %v4571 = vshrl.u32 %v4570, 7
      %v4572 = vsub.s32 0, %v4571
      %v4573 = vrot.slane %v4568, %v4572
      %v4576 = vsel %vm2410, %v4532, 0
      %v4579 = vsel %vm2410, %v4533, 0
      %v4582 = vsel %vm2410, %v4534, 0
      %v4585 = vsel %vm2410, %v4535, 0
      %v4588 = vsel %vm2410, %v4536, 0
      %v4591 = vsel %vm2410, %v4537, 0
      %v4594 = vsel %vm2410, %v4538, 0
      %v4597 = vsel %vm2410, %v4539, 0
      %v4600 = vsel %vm2410, %v4540, 0
      %v4603 = vsel %vm2410, %v4541, 0
      %v4606 = vsel %vm2410, %v4542, 0
      %v4609 = vsel %vm2410, %v4543, 0
      %v4612 = vsel %vm2410, %v4544, 0
      %v4615 = vsel %vm2410, %v4545, 0
      %v4618 = vsel %vm2410, %v4546, 0
      %v4621 = vsel %vm2410, %v4547, 0
      %v4624 = vsel %vm2410, %v4548, 0
      %v4627 = vsel %vm2410, %v4549, 0
      %v4630 = vsel %vm2410, %v4550, 0
      %v4633 = vsel %vm2410, %v4551, 0
      %v4636 = vsel %vm2410, %v4552, 0
      %v4639 = vsel %vm2410, %v4553, 0
      %v4642 = vsel %vm2410, %v4554, 0
      %v4645 = vsel %vm2410, %v4555, 0
      %v4648 = vsel %vm2410, %v4556, 0
      %v4651 = vsel %vm2410, %v4557, 0
      %v4654 = vsel %vm2410, %v4558, 0
      %v4657 = vsel %vm2410, %v4559, 0
      %v4660 = vsel %vm2410, %v4560, 0
      %v4663 = vsel %vm2410, %v4561, 0
      %v4666 = vsel %vm2410, %v4562, 0
      %v4669 = vsel %vm2410, %v4563, 0
      %4671 = vmatprep.subr.mxu0 0.0
      %4672 = vmatpush1.msra.mxu0 %v4564
      %4673 = vmatprep.subr.mxu0 0.0
      %4674 = vmatpush1.msra.mxu0 %v4565
      %4675 = vmatprep.subr.mxu0 0.0
      %4676 = vmatpush1.msra.mxu0 %v4566
      %4677 = vmatprep.subr.mxu0 0.0
      %4678 = vmatpush1.msra.mxu0 %v4567
      %4679 = vmatprep.subr.mxu0 0.0
      %4680 = vmatpush1.msra.mxu0 0.0
      %4681 = vmatprep.subr.mxu0 0.0
      %4682 = vmatpush1.msra.mxu0 0.0
      %4683 = vmatprep.subr.mxu0 0.0
      %4684 = vmatpush1.msra.mxu0 0.0
      %4685 = vmatprep.subr.mxu0 0.0
      %4686 = vmatpush1.msra.mxu0 0.0
      %4687 = vmatprep.subr.mxu0 0.0
      %4688 = vmatpush1.msra.mxu0 0.0
      %4689 = vmatprep.subr.mxu0 0.0
      %4690 = vmatpush1.msra.mxu0 0.0
      %4691 = vmatprep.subr.mxu0 0.0
      %4692 = vmatpush1.msra.mxu0 0.0
      %4693 = vmatprep.subr.mxu0 0.0
      %4694 = vmatpush1.msra.mxu0 0.0
      %4695 = vmatprep.subr.mxu0 0.0
      %4696 = vmatpush1.msra.mxu0 0.0
      %4697 = vmatprep.subr.mxu0 0.0
      %4698 = vmatpush1.msra.mxu0 0.0
      %4699 = vmatprep.subr.mxu0 0.0
      %4700 = vmatpush1.msra.mxu0 0.0
      %4701 = vmatprep.subr.mxu0 0.0
      %4702 = vmatpush1.msra.mxu0 0.0
      %4703 = vmatprep.subr.mxu0 0.0
      %4704 = vmatpush1.msra.mxu0 0.0
      %4705 = vmatprep.subr.mxu0 0.0
      %4706 = vmatpush1.msra.mxu0 0.0
      %4707 = vmatprep.subr.mxu0 0.0
      %4708 = vmatpush1.msra.mxu0 0.0
      %4709 = vmatprep.subr.mxu0 0.0
      %4710 = vmatpush1.msra.mxu0 0.0
      %4711 = vmatprep.subr.mxu0 0.0
      %4712 = vmatpush1.msra.mxu0 0.0
      %4713 = vmatprep.subr.mxu0 0.0
      %4714 = vmatpush1.msra.mxu0 0.0
      %4715 = vmatprep.subr.mxu0 0.0
      %4716 = vmatpush1.msra.mxu0 0.0
      %4717 = vmatprep.subr.mxu0 0.0
      %4718 = vmatpush1.msra.mxu0 0.0
      %4719 = vmatprep.subr.mxu0 0.0
      %4720 = vmatpush1.msra.mxu0 0.0
      %4721 = vmatprep.subr.mxu0 0.0
      %4722 = vmatpush1.msra.mxu0 0.0
      %4723 = vmatprep.subr.mxu0 0.0
      %4724 = vmatpush1.msra.mxu0 0.0
      %4725 = vmatprep.subr.mxu0 0.0
      %4726 = vmatpush1.msra.mxu0 0.0
      %4727 = vmatprep.subr.mxu0 0.0
      %4728 = vmatpush1.msra.mxu0 0.0
      %4729 = vmatprep.subr.mxu0 0.0
      %4730 = vmatpush1.msra.mxu0 0.0
      %4731 = vmatprep.subr.mxu0 0.0
      %4732 = vmatpush1.msra.mxu0 0.0
      %4733 = vmatprep.subr.mxu0 0.0
      %4734 = vmatpush1.msra.mxu0 0.0
      %4735 = vmatprep.mubr.f32.mxu0 0.0
      %4736 = vmatmul.mubr.f32.gmra.mrb[0].mxu0 %v4576
      %v4737 = vpop.f32.mrb[0].mxu0
      %v4738 = vadd.f32 %v4573, %v4737
      %v4739 = vpop.f32.mrb[0].mxu0
      %4740 = vmatprep.mubr.f32.mxu0 0.0
      %4741 = vmatmul.mubr.f32.gmra.mrb[0].mxu0 %v4579
      %v4742 = vpop.f32.mrb[0].mxu0
      %v4743 = vadd.f32 %v4573, %v4742
      %v4744 = vpop.f32.mrb[0].mxu0
      %4745 = vmatprep.mubr.f32.mxu0 0.0
      %4746 = vmatmul.mubr.f32.gmra.mrb[0].mxu0 %v4582
      %v4747 = vpop.f32.mrb[0].mxu0
      %v4748 = vadd.f32 %v4573, %v4747
      %v4749 = vpop.f32.mrb[0].mxu0
      %4750 = vmatprep.mubr.f32.mxu0 0.0
      %4751 = vmatmul.mubr.f32.gmra.mrb[0].mxu0 %v4585
      %v4752 = vpop.f32.mrb[0].mxu0
      %v4753 = vadd.f32 %v4573, %v4752
      %v4754 = vpop.f32.mrb[0].mxu0
      %4755 = vmatprep.mubr.f32.mxu0 0.0
      %4756 = vmatmul.mubr.f32.gmra.mrb[0].mxu0 %v4588
      %v4757 = vpop.f32.mrb[0].mxu0
      %v4758 = vadd.f32 %v4573, %v4757
      %v4759 = vpop.f32.mrb[0].mxu0
      %4760 = vmatprep.mubr.f32.mxu0 0.0
      %4761 = vmatmul.mubr.f32.gmra.mrb[0].mxu0 %v4591
      %v4762 = vpop.f32.mrb[0].mxu0
      %v4763 = vadd.f32 %v4573, %v4762
      %v4764 = vpop.f32.mrb[0].mxu0
      %4765 = vmatprep.mubr.f32.mxu0 0.0
      %4766 = vmatmul.mubr.f32.gmra.mrb[0].mxu0 %v4594
      %v4767 = vpop.f32.mrb[0].mxu0
      %v4768 = vadd.f32 %v4573, %v4767
      %v4769 = vpop.f32.mrb[0].mxu0
      %4770 = vmatprep.mubr.f32.mxu0 0.0
      %4771 = vmatmul.mubr.f32.gmra.mrb[0].mxu0 %v4597
      %v4772 = vpop.f32.mrb[0].mxu0
      %v4773 = vadd.f32 %v4573, %v4772
      %v4774 = vpop.f32.mrb[0].mxu0
      %4775 = vmatprep.mubr.f32.mxu0 0.0
      %4776 = vmatmul.mubr.f32.gmra.mrb[0].mxu0 %v4600
      %v4777 = vpop.f32.mrb[0].mxu0
      %v4778 = vadd.f32 %v4573, %v4777
      %v4779 = vpop.f32.mrb[0].mxu0
      %4780 = vmatprep.mubr.f32.mxu0 0.0
      %4781 = vmatmul.mubr.f32.gmra.mrb[0].mxu0 %v4603
      %v4782 = vpop.f32.mrb[0].mxu0
      %v4783 = vadd.f32 %v4573, %v4782
      %v4784 = vpop.f32.mrb[0].mxu0
      %4785 = vmatprep.mubr.f32.mxu0 0.0
      %4786 = vmatmul.mubr.f32.gmra.mrb[0].mxu0 %v4606
      %v4787 = vpop.f32.mrb[0].mxu0
      %v4788 = vadd.f32 %v4573, %v4787
      %v4789 = vpop.f32.mrb[0].mxu0
      %4790 = vmatprep.mubr.f32.mxu0 0.0
      %4791 = vmatmul.mubr.f32.gmra.mrb[0].mxu0 %v4609
      %v4792 = vpop.f32.mrb[0].mxu0
      %v4793 = vadd.f32 %v4573, %v4792
      %v4794 = vpop.f32.mrb[0].mxu0
      %4795 = vmatprep.mubr.f32.mxu0 0.0
      %4796 = vmatmul.mubr.f32.gmra.mrb[0].mxu0 %v4612
      %v4797 = vpop.f32.mrb[0].mxu0
      %v4798 = vadd.f32 %v4573, %v4797
      %v4799 = vpop.f32.mrb[0].mxu0
      %4800 = vmatprep.mubr.f32.mxu0 0.0
      %4801 = vmatmul.mubr.f32.gmra.mrb[0].mxu0 %v4615
      %v4802 = vpop.f32.mrb[0].mxu0
      %v4803 = vadd.f32 %v4573, %v4802
      %v4804 = vpop.f32.mrb[0].mxu0
      %4805 = vmatprep.mubr.f32.mxu0 0.0
      %4806 = vmatmul.mubr.f32.gmra.mrb[0].mxu0 %v4618
      %v4807 = vpop.f32.mrb[0].mxu0
      %v4808 = vadd.f32 %v4573, %v4807
      %v4809 = vpop.f32.mrb[0].mxu0
      %4810 = vmatprep.mubr.f32.mxu0 0.0
      %4811 = vmatmul.mubr.f32.gmra.mrb[0].mxu0 %v4621
      %v4812 = vpop.f32.mrb[0].mxu0
      %v4813 = vadd.f32 %v4573, %v4812
      %v4814 = vpop.f32.mrb[0].mxu0
      %4815 = vmatprep.mubr.f32.mxu0 0.0
      %4816 = vmatmul.mubr.f32.gmra.mrb[0].mxu0 %v4624
      %v4817 = vpop.f32.mrb[0].mxu0
      %v4818 = vadd.f32 %v4573, %v4817
      %v4819 = vpop.f32.mrb[0].mxu0
      %4820 = vmatprep.mubr.f32.mxu0 0.0
      %4821 = vmatmul.mubr.f32.gmra.mrb[0].mxu0 %v4627
      %v4822 = vpop.f32.mrb[0].mxu0
      %v4823 = vadd.f32 %v4573, %v4822
      %v4824 = vpop.f32.mrb[0].mxu0
      %4825 = vmatprep.mubr.f32.mxu0 0.0
      %4826 = vmatmul.mubr.f32.gmra.mrb[0].mxu0 %v4630
      %v4827 = vpop.f32.mrb[0].mxu0
      %v4828 = vadd.f32 %v4573, %v4827
      %v4829 = vpop.f32.mrb[0].mxu0
      %4830 = vmatprep.mubr.f32.mxu0 0.0
      %4831 = vmatmul.mubr.f32.gmra.mrb[0].mxu0 %v4633
      %v4832 = vpop.f32.mrb[0].mxu0
      %v4833 = vadd.f32 %v4573, %v4832
      %v4834 = vpop.f32.mrb[0].mxu0
      %4835 = vmatprep.mubr.f32.mxu0 0.0
      %4836 = vmatmul.mubr.f32.gmra.mrb[0].mxu0 %v4636
      %v4837 = vpop.f32.mrb[0].mxu0
      %v4838 = vadd.f32 %v4573, %v4837
      %v4839 = vpop.f32.mrb[0].mxu0
      %4840 = vmatprep.mubr.f32.mxu0 0.0
      %4841 = vmatmul.mubr.f32.gmra.mrb[0].mxu0 %v4639
      %v4842 = vpop.f32.mrb[0].mxu0
      %v4843 = vadd.f32 %v4573, %v4842
      %v4844 = vpop.f32.mrb[0].mxu0
      %4845 = vmatprep.mubr.f32.mxu0 0.0
      %4846 = vmatmul.mubr.f32.gmra.mrb[0].mxu0 %v4642
      %v4847 = vpop.f32.mrb[0].mxu0
      %v4848 = vadd.f32 %v4573, %v4847
      %v4849 = vpop.f32.mrb[0].mxu0
      %4850 = vmatprep.mubr.f32.mxu0 0.0
      %4851 = vmatmul.mubr.f32.gmra.mrb[0].mxu0 %v4645
      %v4852 = vpop.f32.mrb[0].mxu0
      %v4853 = vadd.f32 %v4573, %v4852
      %v4854 = vpop.f32.mrb[0].mxu0
      %4855 = vmatprep.mubr.f32.mxu0 0.0
      %4856 = vmatmul.mubr.f32.gmra.mrb[0].mxu0 %v4648
      %v4857 = vpop.f32.mrb[0].mxu0
      %v4858 = vadd.f32 %v4573, %v4857
      %v4859 = vpop.f32.mrb[0].mxu0
      %4860 = vmatprep.mubr.f32.mxu0 0.0
      %4861 = vmatmul.mubr.f32.gmra.mrb[0].mxu0 %v4651
      %v4862 = vpop.f32.mrb[0].mxu0
      %v4863 = vadd.f32 %v4573, %v4862
      %v4864 = vpop.f32.mrb[0].mxu0
      %4865 = vmatprep.mubr.f32.mxu0 0.0
      %4866 = vmatmul.mubr.f32.gmra.mrb[0].mxu0 %v4654
      %v4867 = vpop.f32.mrb[0].mxu0
      %v4868 = vadd.f32 %v4573, %v4867
      %v4869 = vpop.f32.mrb[0].mxu0
      %4870 = vmatprep.mubr.f32.mxu0 0.0
      %4871 = vmatmul.mubr.f32.gmra.mrb[0].mxu0 %v4657
      %v4872 = vpop.f32.mrb[0].mxu0
      %v4873 = vadd.f32 %v4573, %v4872
      %v4874 = vpop.f32.mrb[0].mxu0
      %4875 = vmatprep.mubr.f32.mxu0 0.0
      %4876 = vmatmul.mubr.f32.gmra.mrb[0].mxu0 %v4660
      %v4877 = vpop.f32.mrb[0].mxu0
      %v4878 = vadd.f32 %v4573, %v4877
      %v4879 = vpop.f32.mrb[0].mxu0
      %4880 = vmatprep.mubr.f32.mxu0 0.0
      %4881 = vmatmul.mubr.f32.gmra.mrb[0].mxu0 %v4663
      %v4882 = vpop.f32.mrb[0].mxu0
      %v4883 = vadd.f32 %v4573, %v4882
      %v4884 = vpop.f32.mrb[0].mxu0
      %4885 = vmatprep.mubr.f32.mxu0 0.0
      %4886 = vmatmul.mubr.f32.gmra.mrb[0].mxu0 %v4666
      %v4887 = vpop.f32.mrb[0].mxu0
      %v4888 = vadd.f32 %v4573, %v4887
      %v4889 = vpop.f32.mrb[0].mxu0
      %4890 = vmatprep.mubr.f32.mxu0 0.0
      %4891 = vmatmul.mubr.f32.gmra.mrb[0].mxu0 %v4669
      %v4892 = vpop.f32.mrb[0].mxu0
      %v4893 = vadd.f32 %v4573, %v4892
      %v4894 = vpop.f32.mrb[0].mxu0
      %4895 = vdwg.mxu0
      %4896 = vxpose.xlu0.b32.start [1/16] %v4738, 128
      %4897 = vxpose.xlu0.b32.cont [2/16] %v4743, 128
      %4898 = vxpose.xlu0.b32.cont [3/16] %v4748, 128
      %4899 = vxpose.xlu0.b32.cont [4/16] %v4753, 128
      %4900 = vxpose.xlu0.b32.cont [5/16] %v4758, 128
      %4901 = vxpose.xlu0.b32.cont [6/16] %v4763, 128
      %4902 = vxpose.xlu0.b32.cont [7/16] %v4768, 128
      %4903 = vxpose.xlu0.b32.cont [8/16] %v4773, 128
      %4904 = vxpose.xlu0.b32.cont [9/16] %v4778, 128
      %4905 = vxpose.xlu0.b32.cont [10/16] %v4783, 128
      %4906 = vxpose.xlu0.b32.cont [11/16] %v4788, 128
      %4907 = vxpose.xlu0.b32.cont [12/16] %v4793, 128
      %4908 = vxpose.xlu0.b32.cont [13/16] %v4798, 128
      %4909 = vxpose.xlu0.b32.cont [14/16] %v4803, 128
      %4910 = vxpose.xlu0.b32.cont [15/16] %v4808, 128
      %4911 = vxpose.xlu0.b32.end [16/16] %v4813, 128
      %v4912 = vpop.trf.xlu0
      %v4913 = vpop.trf.xlu0
      %v4914 = vpop.trf.xlu0
      %v4915 = vpop.trf.xlu0
      %v4916 = vpop.trf.xlu0
      %v4917 = vpop.trf.xlu0
      %v4918 = vpop.trf.xlu0
      %v4919 = vpop.trf.xlu0
      %v4920 = vpop.trf.xlu0
      %v4921 = vpop.trf.xlu0
      %v4922 = vpop.trf.xlu0
      %v4923 = vpop.trf.xlu0
      %v4924 = vpop.trf.xlu0
      %v4925 = vpop.trf.xlu0
      %v4926 = vpop.trf.xlu0
      %v4927 = vpop.trf.xlu0
      %4928 = vxpose.xlu0.b32.start [1/16] %v4818, 128
      %4929 = vxpose.xlu0.b32.cont [2/16] %v4823, 128
      %4930 = vxpose.xlu0.b32.cont [3/16] %v4828, 128
      %4931 = vxpose.xlu0.b32.cont [4/16] %v4833, 128
      %4932 = vxpose.xlu0.b32.cont [5/16] %v4838, 128
      %4933 = vxpose.xlu0.b32.cont [6/16] %v4843, 128
      %4934 = vxpose.xlu0.b32.cont [7/16] %v4848, 128
      %4935 = vxpose.xlu0.b32.cont [8/16] %v4853, 128
      %4936 = vxpose.xlu0.b32.cont [9/16] %v4858, 128
      %4937 = vxpose.xlu0.b32.cont [10/16] %v4863, 128
      %4938 = vxpose.xlu0.b32.cont [11/16] %v4868, 128
      %4939 = vxpose.xlu0.b32.cont [12/16] %v4873, 128
      %4940 = vxpose.xlu0.b32.cont [13/16] %v4878, 128
      %4941 = vxpose.xlu0.b32.cont [14/16] %v4883, 128
      %4942 = vxpose.xlu0.b32.cont [15/16] %v4888, 128
      %4943 = vxpose.xlu0.b32.end [16/16] %v4893, 128
      %v4944 = vpop.trf.xlu0
      %v4945 = vpop.trf.xlu0
      %v4946 = vpop.trf.xlu0
      %v4947 = vpop.trf.xlu0
      %v4948 = vpop.trf.xlu0
      %v4949 = vpop.trf.xlu0
      %v4950 = vpop.trf.xlu0
      %v4951 = vpop.trf.xlu0
      %v4952 = vpop.trf.xlu0
      %v4953 = vpop.trf.xlu0
      %v4954 = vpop.trf.xlu0
      %v4955 = vpop.trf.xlu0
      %v4956 = vpop.trf.xlu0
      %v4957 = vpop.trf.xlu0
      %v4958 = vpop.trf.xlu0
      %v4959 = vpop.trf.xlu0
      %v4962 = vcombine.low %v4912, %v4944
      %4964 = vst [vmem:[%s278] sm:$0xff] %v4962
      %p4965 = scmp.lt.s32.totalorder %s18, 1
      %s4966 = scalar_select %p4965, %s18, 1
      %s4967 = smul.addr %s4966, 2
      %s4968 = smul.addr %s4967, 4
      %s4969 = scalar_lea.vmem %s7, %s4968
      // Predicated region
      $region49: #{simple_cnn_forward.1} parent=47 // pred_check
        %p4970 = pneg %p188
      $region50: #{simple_cnn_forward.1} parent=47 // pred_check_branch
        %4972 = sbr.rel (%p4970) target = $region52
      $region51: #{simple_cnn_forward.1} parent=47 // pred_region
        _
      $region52: #{simple_cnn_forward.1} parent=47 // pred_fallthru
        _
    $region48: #{simple_cnn_forward.1} parent=5 // pred_fallthru
      _
    %p4973 = scmp.le.s32.totalorder 2, %s13
    // Predicated region
    $region53: #{simple_cnn_forward.1} parent=5 // pred_check
      %p4974 = pneg %p4973
    $region54: #{simple_cnn_forward.1} parent=5 // pred_check_branch
      %4976 = sbr.rel (%p4974) target = $region56
    $region55: #{simple_cnn_forward.1} parent=5 // pred_region
      %s4977 = ssub.s32 %s13, 2
      // Predicated region
      $region57: #{simple_cnn_forward.1} parent=55 // pred_check
        %p4978 = pneg %p194
      $region58: #{simple_cnn_forward.1} parent=55 // pred_check_branch
        %4980 = sbr.rel (%p4978) target = $region60
      $region59: #{simple_cnn_forward.1} parent=55 // pred_region
        %p4981 = scmp.lt.s32.totalorder %s19, 1
        %s4982 = scalar_select %p4981, %s19, 1
        %s4983 = smul.addr %s4982, 2
        %s4984 = smul.addr %s4983, 4
        %s4985 = scalar_lea.vmem %s7, %s4984
      $region60: #{simple_cnn_forward.1} parent=55 // pred_fallthru
        _
    $region56: #{simple_cnn_forward.1} parent=5 // pred_fallthru
      _
  $region6: #{simple_cnn_forward.1} parent=0 // loop_footer
    %s17 = sadd.s32 1, %s13
  $region7: #{simple_cnn_forward.1} parent=0 // loop_footer_branch
    %12 = sbr.rel target = $region3
  $region8: #{simple_cnn_forward.1} parent=0 // loop_exit
    _

</llo_original>
